<compile_context>
chip_gen: v5e
topology: v5e:2x2
jax: 0.10.0
libtpu: 0.0.40
codegen_flags: <defaults>
</compile_context>

<pallas_src>
import functools

import jax
import jax.numpy as jnp
import numpy as np
from jax import lax
from jax.experimental import pallas as pl
from jax.experimental.pallas import tpu as pltpu


# ----------------------------------------------------------------------------
# Fused kernel: encode(query) + encode(passage) + scores + cross-entropy loss
# ----------------------------------------------------------------------------
def yotta_fused_kernel(qx_ref, qm_ref, px_ref, pm_ref, w_ref, b_ref,
                       scores_ref, loss_ref, q_out_ref, p_out_ref,
                       *, temperature):
    bsz = qx_ref.shape[0]
    inv_t = 1.0 / temperature          # trace-time constant (no per-elem divide)
    inv_b = 1.0 / bsz

    # --- sentence_pooling_method == 'mean': masked mean pool ----------------
    # Pooling commutes with the per-token linear stand-in encoder, so pool
    # BEFORE the matmul (S-fold cheaper).  Exact divide kept (cost is a [2B,1]
    # op; pl.reciprocal(approx=True) would also work within test tolerances).
    def pool(x, m):
        s = jnp.sum(x * m[:, :, None], axis=1)          # [B, D]
        d = jnp.sum(m, axis=1, keepdims=True)           # [B, 1]
        return s / d

    pooled = jnp.concatenate(
        [pool(qx_ref[...], qm_ref[...]), pool(px_ref[...], pm_ref[...])],
        axis=0)                                          # [2B, D] f32

    # --- stand-in encoder dense layer: bf16 MXU operands, f32 accumulation --
    reps = jnp.dot(pooled.astype(w_ref.dtype), w_ref[...],
                   preferred_element_type=jnp.float32) + b_ref[...]

    # --- F.normalize(dim=-1)  (normlized=True path) --------------------------
    sq = jnp.sum(reps * reps, axis=-1, keepdims=True)
    reps = reps * lax.rsqrt(jnp.maximum(sq, 1e-24))      # [2B, D] f32

    q_out_ref[...] = reps[:bsz].astype(q_out_ref.dtype)
    p_out_ref[...] = reps[bsz:].astype(p_out_ref.dtype)

    # --- one gram matmul gives all four similarity blocks -------------------
    reps_mxu = reps.astype(jnp.bfloat16)
    dn = (((1,), (1,)), ((), ()))                        # contract last dims == A @ A.T
    sim = lax.dot_general(reps_mxu, reps_mxu, dn,
                          preferred_element_type=jnp.float32)   # [2B, 2B]

    qq = sim[:bsz, :bsz]
    qp = sim[:bsz, bsz:]
    pq = sim[bsz:, :bsz]                                 # == (q@p.T).T
    pp = sim[bsz:, bsz:]

    rows = lax.broadcasted_iota(jnp.int32, (bsz, bsz), 0)
    cols = lax.broadcasted_iota(jnp.int32, (bsz, bsz), 1)
    eye = rows == cols
    qq = jnp.where(eye, 0.0, qq)                         # scores_q[eye] = 0
    pp = jnp.where(eye, 0.0, pp)                         # scores_p[eye] = 0

    # assemble full [B, 4B] row slab and do ONE lane-dense store
    scores = jnp.concatenate([qp, qq, pp, pq], axis=1) * inv_t   # [B, 4B]
    scores_ref[...] = scores

    # --- mean cross-entropy vs target = arange(B) ----------------------------
    mx = jnp.max(scores, axis=1, keepdims=True)
    lse = mx + jnp.log(jnp.sum(jnp.exp(scores - mx), axis=1, keepdims=True))
    tgt = jnp.sum(jnp.where(eye, qp, 0.0), axis=1, keepdims=True) * inv_t
    loss_ref[...] = jnp.sum(lse - tgt, keepdims=True) * inv_b     # (1, 1)


def yotta_embedder_forward(q_x, q_mask, p_x, p_mask, w, b, temperature):
    """q_x/p_x: [B,S,D] f32 token features; q_mask/p_mask: [B,S] f32;
    w: [D,D] f32 stand-in encoder weight; b: [1,D] f32 bias."""
    bsz, s, d = q_x.shape
    w_mxu = w.astype(jnp.bfloat16)                       # cast MXU weight once
    kernel = functools.partial(yotta_fused_kernel, temperature=temperature)
    scores, loss, q_reps, p_reps = pl.pallas_call(
        kernel,
        out_shape=(
            jax.ShapeDtypeStruct((bsz, 4 * bsz), jnp.float32),   # scores
            jax.ShapeDtypeStruct((1, 1), jnp.float32),           # loss
            jax.ShapeDtypeStruct((bsz, d), jnp.float32),         # q_reps
            jax.ShapeDtypeStruct((bsz, d), jnp.float32),         # p_reps
        ),
        grid_spec=pltpu.PrefetchScalarGridSpec(
            num_scalar_prefetch=0,
            grid=(1,),                                   # single fused step
            in_specs=[
                pl.BlockSpec((bsz, s, d), lambda i: (0, 0, 0)),  # q tokens
                pl.BlockSpec((bsz, s), lambda i: (0, 0)),        # q mask
                pl.BlockSpec((bsz, s, d), lambda i: (0, 0, 0)),  # p tokens
                pl.BlockSpec((bsz, s), lambda i: (0, 0)),        # p mask
                pl.BlockSpec((d, d), lambda i: (0, 0)),          # W (resident)
                pl.BlockSpec((1, d), lambda i: (0, 0)),          # bias (resident)
            ],
            out_specs=(
                pl.BlockSpec((bsz, 4 * bsz), lambda i: (0, 0)),
                pl.BlockSpec((1, 1), lambda i: (0, 0)),
                pl.BlockSpec((bsz, d), lambda i: (0, 0)),
                pl.BlockSpec((bsz, d), lambda i: (0, 0)),
            ),
        ),
        compiler_params=pltpu.CompilerParams(
            dimension_semantics=("arbitrary",),
        ),
    )(q_x, q_mask, p_x, p_mask, w_mxu, b)
    return loss[0, 0], scores, q_reps, p_reps


# ----------------------------------------------------------------------------
# Pure-JAX reference (mirrors the PyTorch module semantics, full f32)
# ----------------------------------------------------------------------------
def reference_forward(q_x, q_mask, p_x, p_mask, w, b, temperature):
    def enc(x, m):
        h = jnp.einsum("bsd,de->bse", x, w) + b[None, :, :]
        s = jnp.sum(h * m[:, :, None], axis=1)
        d = jnp.sum(m, axis=1, keepdims=True)
        reps = s / d
        reps = reps / jnp.sqrt(jnp.maximum(jnp.sum(reps**2, -1, keepdims=True), 1e-24))
        return reps

    q = enc(q_x, q_mask)
    p = enc(p_x, p_mask)
    bsz = q.shape[0]
    qp = q @ p.T
    qq = q @ q.T
    pp = p @ p.T
    eye = jnp.eye(bsz, dtype=bool)
    qq = jnp.where(eye, 0.0, qq)
    pp = jnp.where(eye, 0.0, pp)
    scores = jnp.concatenate([qp, qq, pp, qp.T], axis=1) / temperature
    lse = jax.scipy.special.logsumexp(scores, axis=1)
    loss = jnp.mean(lse - scores[jnp.arange(bsz), jnp.arange(bsz)])
    return loss, scores, q, p


if __name__ == "__main__":
    # lane-dense small config: D and 4*B are multiples of 128
    B, S, D = 32, 16, 128
    temperature = 0.05          # normlized=True -> temperature active

    key = jax.random.PRNGKey(0)
    k1, k2, k3, k4 = jax.random.split(key, 4)

    # deterministic "model" parameters (stand-in encoder dense layer)
    w = jax.random.normal(k1, (D, D), jnp.float32) * 0.1
    b = jax.random.normal(k2, (1, D), jnp.float32) * 0.01

    # query / passage features: token embeddings + attention masks
    q_x = jax.random.normal(k3, (B, S, D), jnp.float32)
    p_x = jax.random.normal(k4, (B, S, D), jnp.float32)
    lens_q = 1 + (jnp.arange(B) * 7) % S
    lens_p = 1 + (jnp.arange(B) * 5 + 3) % S
    pos = jnp.arange(S)[None, :]
    q_mask = (pos < lens_q[:, None]).astype(jnp.float32)
    p_mask = (pos < lens_p[:, None]).astype(jnp.float32)

    loss, scores, q_reps, p_reps = yotta_embedder_forward(
        q_x, q_mask, p_x, p_mask, w, b, temperature)
    jax.block_until_ready((loss, scores, q_reps, p_reps))

    ref_loss, ref_scores, ref_q, ref_p = reference_forward(
        q_x, q_mask, p_x, p_mask, w, b, temperature)

    # tolerances account for bf16 MXU operands (f32 accumulation) in the kernel
    np.testing.assert_allclose(np.asarray(q_reps), np.asarray(ref_q),
                               rtol=2e-2, atol=5e-3)
    np.testing.assert_allclose(np.asarray(p_reps), np.asarray(ref_p),
                               rtol=2e-2, atol=5e-3)
    np.testing.assert_allclose(np.asarray(scores), np.asarray(ref_scores),
                               rtol=5e-2, atol=0.25)
    np.testing.assert_allclose(float(loss), float(ref_loss),
                               rtol=5e-2, atol=0.15)

    print("KERNEL_OK")
</pallas_src>

<mosaic_0001>
module attributes {stable_mosaic.version = 11 : i64} {
  func.func @yotta_fused_kernel(%arg0: i32, %arg1: memref<32x16x128xf32, #tpu.memory_space<vmem>>, %arg2: memref<32x16xf32, #tpu.memory_space<vmem>>, %arg3: memref<32x16x128xf32, #tpu.memory_space<vmem>>, %arg4: memref<32x16xf32, #tpu.memory_space<vmem>>, %arg5: memref<128x128xbf16, #tpu.memory_space<vmem>>, %arg6: memref<1x128xf32, #tpu.memory_space<vmem>>, %arg7: memref<32x128xf32, #tpu.memory_space<vmem>>, %arg8: memref<1x1xf32, #tpu.memory_space<vmem>>, %arg9: memref<32x128xf32, #tpu.memory_space<vmem>>, %arg10: memref<32x128xf32, #tpu.memory_space<vmem>>) attributes {dimension_semantics = [#tpu.dimension_semantics<arbitrary>], iteration_bounds = array<i64: 1>, scalar_prefetch = 0 : i64, scratch_operands = 0 : i64, tpu.core_type = #tpu.core_type<tc>, window_params = [{pipeline_mode = #tpu.pipeline_mode<synchronous>, transform_indices = @transform_0, window_bounds = array<i64: 32, 16, 128>}, {pipeline_mode = #tpu.pipeline_mode<synchronous>, transform_indices = @transform_1, window_bounds = array<i64: 32, 16>}, {pipeline_mode = #tpu.pipeline_mode<synchronous>, transform_indices = @transform_2, window_bounds = array<i64: 32, 16, 128>}, {pipeline_mode = #tpu.pipeline_mode<synchronous>, transform_indices = @transform_3, window_bounds = array<i64: 32, 16>}, {pipeline_mode = #tpu.pipeline_mode<synchronous>, transform_indices = @transform_4, window_bounds = array<i64: 128, 128>}, {pipeline_mode = #tpu.pipeline_mode<synchronous>, transform_indices = @transform_5, window_bounds = array<i64: 1, 128>}, {pipeline_mode = #tpu.pipeline_mode<synchronous>, transform_indices = @transform_6, window_bounds = array<i64: 32, 128>}, {pipeline_mode = #tpu.pipeline_mode<synchronous>, transform_indices = @transform_7, window_bounds = array<i64: 1, 1>}, {pipeline_mode = #tpu.pipeline_mode<synchronous>, transform_indices = @transform_8, window_bounds = array<i64: 32, 128>}, {pipeline_mode = #tpu.pipeline_mode<synchronous>, transform_indices = @transform_9, window_bounds = array<i64: 32, 128>}]} {
    %c0 = arith.constant 0 : index
    %c0_0 = arith.constant 0 : index
    %c0_1 = arith.constant 0 : index
    %0 = vector.load %arg1[%c0, %c0_0, %c0_1] : memref<32x16x128xf32, #tpu.memory_space<vmem>>, vector<32x16x128xf32>
    %c0_2 = arith.constant 0 : index
    %c0_3 = arith.constant 0 : index
    %1 = vector.load %arg2[%c0_2, %c0_3] : memref<32x16xf32, #tpu.memory_space<vmem>>, vector<32x16xf32>
    %2 = vector.shape_cast %1 : vector<32x16xf32> to vector<32x16x1xf32>
    %3 = vector.broadcast %2 : vector<32x16x1xf32> to vector<32x16x128xf32>
    %4 = arith.mulf %0, %3 : vector<32x16x128xf32>
    %cst = arith.constant dense<0.000000e+00> : vector<32x128xf32>
    %5 = vector.multi_reduction <add>, %4, %cst [1] : vector<32x16x128xf32> to vector<32x128xf32>
    %cst_4 = arith.constant dense<0.000000e+00> : vector<32xf32>
    %6 = vector.multi_reduction <add>, %1, %cst_4 [1] : vector<32x16xf32> to vector<32xf32>
    %7 = vector.shape_cast %6 : vector<32xf32> to vector<32x1xf32>
    %8 = vector.broadcast %7 : vector<32x1xf32> to vector<32x128xf32>
    %9 = arith.divf %5, %8 : vector<32x128xf32>
    %c0_5 = arith.constant 0 : index
    %c0_6 = arith.constant 0 : index
    %c0_7 = arith.constant 0 : index
    %10 = vector.load %arg3[%c0_5, %c0_6, %c0_7] : memref<32x16x128xf32, #tpu.memory_space<vmem>>, vector<32x16x128xf32>
    %c0_8 = arith.constant 0 : index
    %c0_9 = arith.constant 0 : index
    %11 = vector.load %arg4[%c0_8, %c0_9] : memref<32x16xf32, #tpu.memory_space<vmem>>, vector<32x16xf32>
    %12 = vector.shape_cast %11 : vector<32x16xf32> to vector<32x16x1xf32>
    %13 = vector.broadcast %12 : vector<32x16x1xf32> to vector<32x16x128xf32>
    %14 = arith.mulf %10, %13 : vector<32x16x128xf32>
    %cst_10 = arith.constant dense<0.000000e+00> : vector<32x128xf32>
    %15 = vector.multi_reduction <add>, %14, %cst_10 [1] : vector<32x16x128xf32> to vector<32x128xf32>
    %cst_11 = arith.constant dense<0.000000e+00> : vector<32xf32>
    %16 = vector.multi_reduction <add>, %11, %cst_11 [1] : vector<32x16xf32> to vector<32xf32>
    %17 = vector.shape_cast %16 : vector<32xf32> to vector<32x1xf32>
    %18 = vector.broadcast %17 : vector<32x1xf32> to vector<32x128xf32>
    %19 = arith.divf %15, %18 : vector<32x128xf32>
    %20 = tpu.concatenate %9, %19 in 0 : vector<32x128xf32>, vector<32x128xf32> -> vector<64x128xf32>
    %21 = arith.truncf %20 : vector<64x128xf32> to vector<64x128xbf16>
    %c0_12 = arith.constant 0 : index
    %c0_13 = arith.constant 0 : index
    %22 = vector.load %arg5[%c0_12, %c0_13] : memref<128x128xbf16, #tpu.memory_space<vmem>>, vector<128x128xbf16>
    %cst_14 = arith.constant dense<0.000000e+00> : vector<64x128xf32>
    %23 = tpu.matmul %21, %22, %cst_14 {dimension_numbers = #tpu.dot_dimension_numbers<[1], [0], [0], [1], [0, 0, 1, 1], [], []>} : vector<64x128xbf16>, vector<128x128xbf16>, vector<64x128xf32> -> vector<64x128xf32>
    %c0_15 = arith.constant 0 : index
    %c0_16 = arith.constant 0 : index
    %24 = vector.load %arg6[%c0_15, %c0_16] : memref<1x128xf32, #tpu.memory_space<vmem>>, vector<1x128xf32>
    %25 = vector.broadcast %24 : vector<1x128xf32> to vector<64x128xf32>
    %26 = arith.addf %23, %25 : vector<64x128xf32>
    %27 = arith.mulf %26, %26 : vector<64x128xf32>
    %cst_17 = arith.constant dense<0.000000e+00> : vector<64xf32>
    %28 = vector.multi_reduction <add>, %27, %cst_17 [1] : vector<64x128xf32> to vector<64xf32>
    %29 = vector.shape_cast %28 : vector<64xf32> to vector<64x1xf32>
    %cst_18 = arith.constant 1.000000e-24 : f32
    %30 = vector.broadcast %cst_18 : f32 to vector<64x1xf32>
    %31 = arith.maximumf %29, %30 : vector<64x1xf32>
    %32 = math.rsqrt %31 : vector<64x1xf32>
    %33 = vector.broadcast %32 : vector<64x1xf32> to vector<64x128xf32>
    %34 = arith.mulf %26, %33 : vector<64x128xf32>
    %35 = vector.extract_strided_slice %34 {offsets = [0, 0], sizes = [32, 128], strides = [1, 1]} : vector<64x128xf32> to vector<32x128xf32>
    %c0_19 = arith.constant 0 : index
    %c0_20 = arith.constant 0 : index
    %36 = vector.load %arg9[%c0_19, %c0_20] : memref<32x128xf32, #tpu.memory_space<vmem>>, vector<32x128xf32>
    tpu.vector_store %arg9[%c0_19, %c0_20], %35 {strides = array<i32>} : memref<32x128xf32, #tpu.memory_space<vmem>>, vector<32x128xf32>,
    %37 = vector.extract_strided_slice %34 {offsets = [32, 0], sizes = [32, 128], strides = [1, 1]} : vector<64x128xf32> to vector<32x128xf32>
    %c0_21 = arith.constant 0 : index
    %c0_22 = arith.constant 0 : index
    %38 = vector.load %arg10[%c0_21, %c0_22] : memref<32x128xf32, #tpu.memory_space<vmem>>, vector<32x128xf32>
    tpu.vector_store %arg10[%c0_21, %c0_22], %37 {strides = array<i32>} : memref<32x128xf32, #tpu.memory_space<vmem>>, vector<32x128xf32>,
    %39 = arith.truncf %34 : vector<64x128xf32> to vector<64x128xbf16>
    %cst_23 = arith.constant dense<0.000000e+00> : vector<64x64xf32>
    %40 = tpu.matmul %39, %39, %cst_23 {dimension_numbers = #tpu.dot_dimension_numbers<[1], [1], [0], [0], [0, 0, 1, 0], [], []>} : vector<64x128xbf16>, vector<64x128xbf16>, vector<64x64xf32> -> vector<64x64xf32>
    %41 = vector.extract_strided_slice %40 {offsets = [0, 0], sizes = [32, 32], strides = [1, 1]} : vector<64x64xf32> to vector<32x32xf32>
    %42 = vector.extract_strided_slice %40 {offsets = [0, 32], sizes = [32, 32], strides = [1, 1]} : vector<64x64xf32> to vector<32x32xf32>
    %43 = vector.extract_strided_slice %40 {offsets = [32, 0], sizes = [32, 32], strides = [1, 1]} : vector<64x64xf32> to vector<32x32xf32>
    %44 = vector.extract_strided_slice %40 {offsets = [32, 32], sizes = [32, 32], strides = [1, 1]} : vector<64x64xf32> to vector<32x32xf32>
    %45 = tpu.iota {dimensions = array<i32: 0>} : vector<32x32xi32>
    %46 = tpu.iota {dimensions = array<i32: 1>} : vector<32x32xi32>
    %47 = arith.cmpi eq, %45, %46 : vector<32x32xi32>
    %cst_24 = arith.constant 0.000000e+00 : f32
    %48 = vector.broadcast %cst_24 : f32 to vector<32x32xf32>
    %49 = arith.select %47, %48, %41 : vector<32x32xi1>, vector<32x32xf32>
    %cst_25 = arith.constant 0.000000e+00 : f32
    %50 = vector.broadcast %cst_25 : f32 to vector<32x32xf32>
    %51 = arith.select %47, %50, %44 : vector<32x32xi1>, vector<32x32xf32>
    %52 = tpu.concatenate %42, %49, %51, %43 in 1 : vector<32x32xf32>, vector<32x32xf32>, vector<32x32xf32>, vector<32x32xf32> -> vector<32x128xf32>
    %cst_26 = arith.constant 2.000000e+01 : f32
    %53 = vector.broadcast %cst_26 : f32 to vector<32x128xf32>
    %54 = arith.mulf %52, %53 : vector<32x128xf32>
    %c0_27 = arith.constant 0 : index
    %c0_28 = arith.constant 0 : index
    %55 = vector.load %arg7[%c0_27, %c0_28] : memref<32x128xf32, #tpu.memory_space<vmem>>, vector<32x128xf32>
    tpu.vector_store %arg7[%c0_27, %c0_28], %54 {strides = array<i32>} : memref<32x128xf32, #tpu.memory_space<vmem>>, vector<32x128xf32>,
    %cst_29 = arith.constant dense<0xFF800000> : vector<32xf32>
    %56 = vector.multi_reduction <maximumf>, %54, %cst_29 [1] : vector<32x128xf32> to vector<32xf32>
    %57 = vector.shape_cast %56 : vector<32xf32> to vector<32x1xf32>
    %58 = vector.broadcast %57 : vector<32x1xf32> to vector<32x128xf32>
    %59 = arith.subf %54, %58 : vector<32x128xf32>
    %60 = math.exp %59 : vector<32x128xf32>
    %cst_30 = arith.constant dense<0.000000e+00> : vector<32xf32>
    %61 = vector.multi_reduction <add>, %60, %cst_30 [1] : vector<32x128xf32> to vector<32xf32>
    %62 = vector.shape_cast %61 : vector<32xf32> to vector<32x1xf32>
    %63 = math.log %62 : vector<32x1xf32>
    %64 = arith.addf %57, %63 : vector<32x1xf32>
    %cst_31 = arith.constant 0.000000e+00 : f32
    %65 = vector.broadcast %cst_31 : f32 to vector<32x32xf32>
    %66 = arith.select %47, %42, %65 : vector<32x32xi1>, vector<32x32xf32>
    %cst_32 = arith.constant dense<0.000000e+00> : vector<32xf32>
    %67 = vector.multi_reduction <add>, %66, %cst_32 [1] : vector<32x32xf32> to vector<32xf32>
    %68 = vector.shape_cast %67 : vector<32xf32> to vector<32x1xf32>
    %cst_33 = arith.constant 2.000000e+01 : f32
    %69 = vector.broadcast %cst_33 : f32 to vector<32x1xf32>
    %70 = arith.mulf %68, %69 : vector<32x1xf32>
    %71 = arith.subf %64, %70 : vector<32x1xf32>
    %72 = vector.shape_cast %71 : vector<32x1xf32> to vector<1x32x1xf32>
    %cst_34 = arith.constant dense<0.000000e+00> : vector<1xf32>
    %73 = vector.multi_reduction <add>, %72, %cst_34 [1, 2] : vector<1x32x1xf32> to vector<1xf32>
    %74 = vector.shape_cast %73 : vector<1xf32> to vector<1x1x1xf32>
    %75 = vector.extract %74[0, 0, 0] : f32 from vector<1x1x1xf32>
    %76 = vector.broadcast %75 : f32 to vector<1x1xf32>
    %cst_35 = arith.constant 3.125000e-02 : f32
    %77 = vector.broadcast %cst_35 : f32 to vector<1x1xf32>
    %78 = arith.mulf %76, %77 : vector<1x1xf32>
    %c0_36 = arith.constant 0 : index
    %c0_37 = arith.constant 0 : index
    %79 = vector.load %arg8[%c0_36, %c0_37] : memref<1x1xf32, #tpu.memory_space<vmem>>, vector<1x1xf32>
    tpu.vector_store %arg8[%c0_36, %c0_37], %78 {strides = array<i32>} : memref<1x1xf32, #tpu.memory_space<vmem>>, vector<1x1xf32>,
    return
  }
  func.func @transform_0(%arg0: i32) -> (i32, i32, i32) {
    %c0_i32 = arith.constant 0 : i32
    %c0_i32_0 = arith.constant 0 : i32
    %c0_i32_1 = arith.constant 0 : i32
    %c0_i32_2 = arith.constant 0 : i32
    return %c0_i32, %c0_i32_0, %c0_i32_1 : i32, i32, i32
  }
  func.func @transform_1(%arg0: i32) -> (i32, i32) {
    %c0_i32 = arith.constant 0 : i32
    %c0_i32_0 = arith.constant 0 : i32
    %c0_i32_1 = arith.constant 0 : i32
    return %c0_i32, %c0_i32_0 : i32, i32
  }
  func.func @transform_2(%arg0: i32) -> (i32, i32, i32) {
    %c0_i32 = arith.constant 0 : i32
    %c0_i32_0 = arith.constant 0 : i32
    %c0_i32_1 = arith.constant 0 : i32
    %c0_i32_2 = arith.constant 0 : i32
    return %c0_i32, %c0_i32_0, %c0_i32_1 : i32, i32, i32
  }
  func.func @transform_3(%arg0: i32) -> (i32, i32) {
    %c0_i32 = arith.constant 0 : i32
    %c0_i32_0 = arith.constant 0 : i32
    %c0_i32_1 = arith.constant 0 : i32
    return %c0_i32, %c0_i32_0 : i32, i32
  }
  func.func @transform_4(%arg0: i32) -> (i32, i32) {
    %c0_i32 = arith.constant 0 : i32
    %c0_i32_0 = arith.constant 0 : i32
    %c0_i32_1 = arith.constant 0 : i32
    return %c0_i32, %c0_i32_0 : i32, i32
  }
  func.func @transform_5(%arg0: i32) -> (i32, i32) {
    %c0_i32 = arith.constant 0 : i32
    %c0_i32_0 = arith.constant 0 : i32
    %c0_i32_1 = arith.constant 0 : i32
    return %c0_i32, %c0_i32_0 : i32, i32
  }
  func.func @transform_6(%arg0: i32) -> (i32, i32) {
    %c0_i32 = arith.constant 0 : i32
    %c0_i32_0 = arith.constant 0 : i32
    %c0_i32_1 = arith.constant 0 : i32
    return %c0_i32, %c0_i32_0 : i32, i32
  }
  func.func @transform_7(%arg0: i32) -> (i32, i32) {
    %c0_i32 = arith.constant 0 : i32
    %c0_i32_0 = arith.constant 0 : i32
    %c0_i32_1 = arith.constant 0 : i32
    return %c0_i32, %c0_i32_0 : i32, i32
  }
  func.func @transform_8(%arg0: i32) -> (i32, i32) {
    %c0_i32 = arith.constant 0 : i32
    %c0_i32_0 = arith.constant 0 : i32
    %c0_i32_1 = arith.constant 0 : i32
    return %c0_i32, %c0_i32_0 : i32, i32
  }
  func.func @transform_9(%arg0: i32) -> (i32, i32) {
    %c0_i32 = arith.constant 0 : i32
    %c0_i32_0 = arith.constant 0 : i32
    %c0_i32_1 = arith.constant 0 : i32
    return %c0_i32, %c0_i32_0 : i32, i32
  }
}

</mosaic_0001>

<llo_original>
// kernel: tpu_custom_call.1
$region0: #{tpu_custom_call.1}
  #allocation0 [shape = 'u32[]', space=smem, size = 0x4, offset = 0x4, fixed_abs, tag = 'smem constant byte address 0x4 - core index']
  #allocation1 [shape = 'u32[72,128]{1,0:T(1,128)}', space=vmem, size = 0x9000, scoped, tag = 'internal scratch']
  %s0 = inlined_call_operand.hbm [shape: f32[32,16,128], index: 0, kind: input, shape index: {}]
  %s1 = inlined_call_operand.vmem [shape: f32[32,16], index: 1, kind: input, shape index: {}]
  %s2 = inlined_call_operand.hbm [shape: f32[32,16,128], index: 2, kind: input, shape index: {}]
  %s3 = inlined_call_operand.vmem [shape: f32[32,16], index: 3, kind: input, shape index: {}]
  %s4 = inlined_call_operand.vmem [shape: bf16[128,128], index: 4, kind: input, shape index: {}]
  %s5 = inlined_call_operand.vmem [shape: f32[1,128], index: 5, kind: input, shape index: {}]
  %s6 = inlined_call_operand.hbm [shape: f32[32,128], index: 6, kind: output, shape index: {0}]
  %s7 = inlined_call_operand.hbm [shape: f32[1,1], index: 7, kind: output, shape index: {1}]
  %s8 = inlined_call_operand.hbm [shape: f32[32,128], index: 8, kind: output, shape index: {2}]
  %s9 = inlined_call_operand.hbm [shape: f32[32,128], index: 9, kind: output, shape index: {3}]
  %10 = xla_tuple %s6, %s7, %s8, %s9
  %s11 = sld [smem:[#allocation0]]
  $region66: #{tpu_custom_call.1} parent=0
    _
  %s13 = ssub.s32 1, %s11
  %s14 = scalar_select 0, %s13, %s11
  $region1: #{tpu_custom_call.1} parent=0
    #allocation2 [shape = 'u8[262144]{0}', space=vmem, size = 0x40000, scoped, tag = 'input window, operand 0, single buffered']
    #allocation3 [shape = 's32[1]{0}', space=sflag, size = 0x4, scoped, tag = 'scoped memory for tpu_custom_call.1']
    #allocation4 [shape = 's32[1]{0}', space=sflag, size = 0x4, scoped, tag = 'scoped memory for tpu_custom_call.1']
    #allocation5 [shape = 'u8[262144]{0}', space=vmem, size = 0x40000, scoped, tag = 'input window, operand 2, single buffered']
    #allocation6 [shape = 's32[1]{0}', space=sflag, size = 0x4, scoped, tag = 'scoped memory for tpu_custom_call.1']
    #allocation7 [shape = 'u8[16384]{0}', space=vmem, size = 0x4000, scoped, tag = 'output window, operand 0, single buffered']
    #allocation8 [shape = 'u8[512]{0}', space=vmem, size = 0x400, scoped, tag = 'output window, operand 1, single buffered']
    #allocation9 [shape = 's32[1]{0}', space=sflag, size = 0x4, scoped, tag = 'scoped memory for tpu_custom_call.1']
    #allocation10 [shape = 'u8[16384]{0}', space=vmem, size = 0x4000, scoped, tag = 'output window, operand 2, single buffered']
    #allocation11 [shape = 'u8[16384]{0}', space=vmem, size = 0x4000, scoped, tag = 'output window, operand 3, single buffered']
    #allocation12 [shape = 's32[1]{0}', space=sflag, size = 0x4, scoped, tag = 'scoped memory for tpu_custom_call.1']
    %15 = vsyncpa [#allocation3], 0
    %16 = vsyncpa [#allocation6], 0
    %17 = vsyncpa [#allocation4], 0
    %18 = vsyncpa [#allocation9], 0
    %19 = vsyncpa [#allocation12], 0
    // Predicated region
    $region2: #{tpu_custom_call.1} parent=1 // pred_check
      _
    $region3: #{tpu_custom_call.1} parent=1 // pred_check_branch
      %21 = sbr.rel (0) target = $region5
    $region4: #{tpu_custom_call.1} parent=1 // pred_region
      %23 = vsyncadd [#allocation3], 0
      %s24 = sshll.u32 %s0, 4
      %s25 = int_to_ptr.hbm [resolvable:$true] %s24
      %s26 = sshll.u32 [#allocation2], 4
      %s27 = int_to_ptr.vmem [resolvable:$true] %s26
      %32 = dma.hbm_to_vmem [thread:$0]  %s25, 8192, %s27, [#allocation3], 128, 128, 8
    $region5: #{tpu_custom_call.1} parent=1 // pred_fallthru
      _
    // Predicated region
    $region6: #{tpu_custom_call.1} parent=1 // pred_check
      _
    $region7: #{tpu_custom_call.1} parent=1 // pred_check_branch
      %34 = sbr.rel (0) target = $region9
    $region8: #{tpu_custom_call.1} parent=1 // pred_region
      _
    $region9: #{tpu_custom_call.1} parent=1 // pred_fallthru
      _
    // Predicated region
    $region10: #{tpu_custom_call.1} parent=1 // pred_check
      _
    $region11: #{tpu_custom_call.1} parent=1 // pred_check_branch
      %36 = sbr.rel (0) target = $region13
    $region12: #{tpu_custom_call.1} parent=1 // pred_region
      %38 = vsyncadd [#allocation6], 0
      %s39 = sshll.u32 %s2, 4
      %s40 = int_to_ptr.hbm [resolvable:$true] %s39
      %s41 = sshll.u32 [#allocation5], 4
      %s42 = int_to_ptr.vmem [resolvable:$true] %s41
      %47 = dma.hbm_to_vmem [thread:$0]  %s40, 8192, %s42, [#allocation6], 128, 128, 8
    $region13: #{tpu_custom_call.1} parent=1 // pred_fallthru
      _
    // Predicated region
    $region14: #{tpu_custom_call.1} parent=1 // pred_check
      _
    $region15: #{tpu_custom_call.1} parent=1 // pred_check_branch
      %49 = sbr.rel (0) target = $region17
    $region16: #{tpu_custom_call.1} parent=1 // pred_region
      _
    $region17: #{tpu_custom_call.1} parent=1 // pred_fallthru
      _
    // Predicated region
    $region18: #{tpu_custom_call.1} parent=1 // pred_check
      _
    $region19: #{tpu_custom_call.1} parent=1 // pred_check_branch
      %51 = sbr.rel (0) target = $region21
    $region20: #{tpu_custom_call.1} parent=1 // pred_region
      _
    $region21: #{tpu_custom_call.1} parent=1 // pred_fallthru
      _
    // Predicated region
    $region22: #{tpu_custom_call.1} parent=1 // pred_check
      _
    $region23: #{tpu_custom_call.1} parent=1 // pred_check_branch
      %53 = sbr.rel (0) target = $region25
    $region24: #{tpu_custom_call.1} parent=1 // pred_region
      _
    $region25: #{tpu_custom_call.1} parent=1 // pred_fallthru
      _
    // Predicated region
    $region26: #{tpu_custom_call.1} parent=1 // pred_check
      _
    $region27: #{tpu_custom_call.1} parent=1 // pred_check_branch
      %55 = sbr.rel (0) target = $region29
    $region28: #{tpu_custom_call.1} parent=1 // pred_region
      %57 = dma.done [#allocation3], 8192
    $region29: #{tpu_custom_call.1} parent=1 // pred_fallthru
      _
    // Predicated region
    $region30: #{tpu_custom_call.1} parent=1 // pred_check
      _
    $region31: #{tpu_custom_call.1} parent=1 // pred_check_branch
      %59 = sbr.rel (0) target = $region33
    $region32: #{tpu_custom_call.1} parent=1 // pred_region
      %61 = dma.done [#allocation6], 8192
    $region33: #{tpu_custom_call.1} parent=1 // pred_fallthru
      _
    %v63 = vld [vmem:[#allocation2] sm:$0xff]
    %v64 = vld [vmem:[#allocation2 + $0x8] sm:$0xff]
    %v65 = vld [vmem:[#allocation2 + $0x10] sm:$0xff]
    %v66 = vld [vmem:[#allocation2 + $0x18] sm:$0xff]
    %v67 = vld [vmem:[#allocation2 + $0x20] sm:$0xff]
    %v68 = vld [vmem:[#allocation2 + $0x28] sm:$0xff]
    %v69 = vld [vmem:[#allocation2 + $0x30] sm:$0xff]
    %v70 = vld [vmem:[#allocation2 + $0x38] sm:$0xff]
    %v71 = vld [vmem:[#allocation2 + $0x40] sm:$0xff]
    %v72 = vld [vmem:[#allocation2 + $0x48] sm:$0xff]
    %v73 = vld [vmem:[#allocation2 + $0x50] sm:$0xff]
    %v74 = vld [vmem:[#allocation2 + $0x58] sm:$0xff]
    %v75 = vld [vmem:[#allocation2 + $0x60] sm:$0xff]
    %v76 = vld [vmem:[#allocation2 + $0x68] sm:$0xff]
    %v77 = vld [vmem:[#allocation2 + $0x70] sm:$0xff]
    %v78 = vld [vmem:[#allocation2 + $0x78] sm:$0xff]
    %v79 = vld [vmem:[#allocation2 + $0x80] sm:$0xff]
    %v80 = vld [vmem:[#allocation2 + $0x88] sm:$0xff]
    %v81 = vld [vmem:[#allocation2 + $0x90] sm:$0xff]
    %v82 = vld [vmem:[#allocation2 + $0x98] sm:$0xff]
    %v83 = vld [vmem:[#allocation2 + $0xa0] sm:$0xff]
    %v84 = vld [vmem:[#allocation2 + $0xa8] sm:$0xff]
    %v85 = vld [vmem:[#allocation2 + $0xb0] sm:$0xff]
    %v86 = vld [vmem:[#allocation2 + $0xb8] sm:$0xff]
    %v87 = vld [vmem:[#allocation2 + $0xc0] sm:$0xff]
    %v88 = vld [vmem:[#allocation2 + $0xc8] sm:$0xff]
    %v89 = vld [vmem:[#allocation2 + $0xd0] sm:$0xff]
    %v90 = vld [vmem:[#allocation2 + $0xd8] sm:$0xff]
    %v91 = vld [vmem:[#allocation2 + $0xe0] sm:$0xff]
    %v92 = vld [vmem:[#allocation2 + $0xe8] sm:$0xff]
    %v93 = vld [vmem:[#allocation2 + $0xf0] sm:$0xff]
    %v94 = vld [vmem:[#allocation2 + $0xf8] sm:$0xff]
    %v95 = vld [vmem:[#allocation2 + $0x100] sm:$0xff]
    %v96 = vld [vmem:[#allocation2 + $0x108] sm:$0xff]
    %v97 = vld [vmem:[#allocation2 + $0x110] sm:$0xff]
    %v98 = vld [vmem:[#allocation2 + $0x118] sm:$0xff]
    %v99 = vld [vmem:[#allocation2 + $0x120] sm:$0xff]
    %v100 = vld [vmem:[#allocation2 + $0x128] sm:$0xff]
    %v101 = vld [vmem:[#allocation2 + $0x130] sm:$0xff]
    %v102 = vld [vmem:[#allocation2 + $0x138] sm:$0xff]
    %v103 = vld [vmem:[#allocation2 + $0x140] sm:$0xff]
    %v104 = vld [vmem:[#allocation2 + $0x148] sm:$0xff]
    %v105 = vld [vmem:[#allocation2 + $0x150] sm:$0xff]
    %v106 = vld [vmem:[#allocation2 + $0x158] sm:$0xff]
    %v107 = vld [vmem:[#allocation2 + $0x160] sm:$0xff]
    %v108 = vld [vmem:[#allocation2 + $0x168] sm:$0xff]
    %v109 = vld [vmem:[#allocation2 + $0x170] sm:$0xff]
    %v110 = vld [vmem:[#allocation2 + $0x178] sm:$0xff]
    %v111 = vld [vmem:[#allocation2 + $0x180] sm:$0xff]
    %v112 = vld [vmem:[#allocation2 + $0x188] sm:$0xff]
    %v113 = vld [vmem:[#allocation2 + $0x190] sm:$0xff]
    %v114 = vld [vmem:[#allocation2 + $0x198] sm:$0xff]
    %v115 = vld [vmem:[#allocation2 + $0x1a0] sm:$0xff]
    %v116 = vld [vmem:[#allocation2 + $0x1a8] sm:$0xff]
    %v117 = vld [vmem:[#allocation2 + $0x1b0] sm:$0xff]
    %v118 = vld [vmem:[#allocation2 + $0x1b8] sm:$0xff]
    %v119 = vld [vmem:[#allocation2 + $0x1c0] sm:$0xff]
    %v120 = vld [vmem:[#allocation2 + $0x1c8] sm:$0xff]
    %v121 = vld [vmem:[#allocation2 + $0x1d0] sm:$0xff]
    %v122 = vld [vmem:[#allocation2 + $0x1d8] sm:$0xff]
    %v123 = vld [vmem:[#allocation2 + $0x1e0] sm:$0xff]
    %v124 = vld [vmem:[#allocation2 + $0x1e8] sm:$0xff]
    %v125 = vld [vmem:[#allocation2 + $0x1f0] sm:$0xff]
    %v126 = vld [vmem:[#allocation2 + $0x1f8] sm:$0xff]
    %v127 = vld [vmem:[%s1] sm:$0xff]
    %v128 = vld [vmem:[%s1 + $0x8] sm:$0xff]
    %v129 = vld [vmem:[%s1 + $0x10] sm:$0xff]
    %v130 = vld [vmem:[%s1 + $0x18] sm:$0xff]
    %v131 = vperm.slane %v127, 0
    %v132 = vlaneseq
    %v133 = vshrl.u32 %v132, 7
    %135 = vset.pattern.permute.xlu0 %v133
    %136 = vperm.xlu0 %135, %v131
    %v137 = vpop.permute.xlu0 %136
    %v138 = vlaneseq
    %v139 = vshrl.u32 %v138, 7
    %v140 = vadd.s32 %v139, 8
    %141 = vset.pattern.permute.xlu0 %v140
    %142 = vperm.xlu0 %141, %v131
    %v143 = vpop.permute.xlu0 %142
    %v144 = vperm.slane %v127, 1
    %v145 = vlaneseq
    %v146 = vshrl.u32 %v145, 7
    %148 = vset.pattern.permute.xlu0 %v146
    %149 = vperm.xlu0 %148, %v144
    %v150 = vpop.permute.xlu0 %149
    %v151 = vlaneseq
    %v152 = vshrl.u32 %v151, 7
    %v153 = vadd.s32 %v152, 8
    %154 = vset.pattern.permute.xlu0 %v153
    %155 = vperm.xlu0 %154, %v144
    %v156 = vpop.permute.xlu0 %155
    %v157 = vperm.slane %v127, 2
    %v158 = vlaneseq
    %v159 = vshrl.u32 %v158, 7
    %161 = vset.pattern.permute.xlu0 %v159
    %162 = vperm.xlu0 %161, %v157
    %v163 = vpop.permute.xlu0 %162
    %v164 = vlaneseq
    %v165 = vshrl.u32 %v164, 7
    %v166 = vadd.s32 %v165, 8
    %167 = vset.pattern.permute.xlu0 %v166
    %168 = vperm.xlu0 %167, %v157
    %v169 = vpop.permute.xlu0 %168
    %v170 = vperm.slane %v127, 3
    %v171 = vlaneseq
    %v172 = vshrl.u32 %v171, 7
    %174 = vset.pattern.permute.xlu0 %v172
    %175 = vperm.xlu0 %174, %v170
    %v176 = vpop.permute.xlu0 %175
    %v177 = vlaneseq
    %v178 = vshrl.u32 %v177, 7
    %v179 = vadd.s32 %v178, 8
    %180 = vset.pattern.permute.xlu0 %v179
    %181 = vperm.xlu0 %180, %v170
    %v182 = vpop.permute.xlu0 %181
    %v183 = vperm.slane %v127, 4
    %v184 = vlaneseq
    %v185 = vshrl.u32 %v184, 7
    %187 = vset.pattern.permute.xlu0 %v185
    %188 = vperm.xlu0 %187, %v183
    %v189 = vpop.permute.xlu0 %188
    %v190 = vlaneseq
    %v191 = vshrl.u32 %v190, 7
    %v192 = vadd.s32 %v191, 8
    %193 = vset.pattern.permute.xlu0 %v192
    %194 = vperm.xlu0 %193, %v183
    %v195 = vpop.permute.xlu0 %194
    %v196 = vperm.slane %v127, 5
    %v197 = vlaneseq
    %v198 = vshrl.u32 %v197, 7
    %200 = vset.pattern.permute.xlu0 %v198
    %201 = vperm.xlu0 %200, %v196
    %v202 = vpop.permute.xlu0 %201
    %v203 = vlaneseq
    %v204 = vshrl.u32 %v203, 7
    %v205 = vadd.s32 %v204, 8
    %206 = vset.pattern.permute.xlu0 %v205
    %207 = vperm.xlu0 %206, %v196
    %v208 = vpop.permute.xlu0 %207
    %v209 = vperm.slane %v127, 6
    %v210 = vlaneseq
    %v211 = vshrl.u32 %v210, 7
    %213 = vset.pattern.permute.xlu0 %v211
    %214 = vperm.xlu0 %213, %v209
    %v215 = vpop.permute.xlu0 %214
    %v216 = vlaneseq
    %v217 = vshrl.u32 %v216, 7
    %v218 = vadd.s32 %v217, 8
    %219 = vset.pattern.permute.xlu0 %v218
    %220 = vperm.xlu0 %219, %v209
    %v221 = vpop.permute.xlu0 %220
    %v222 = vperm.slane %v127, 7
    %v223 = vlaneseq
    %v224 = vshrl.u32 %v223, 7
    %226 = vset.pattern.permute.xlu0 %v224
    %227 = vperm.xlu0 %226, %v222
    %v228 = vpop.permute.xlu0 %227
    %v229 = vlaneseq
    %v230 = vshrl.u32 %v229, 7
    %v231 = vadd.s32 %v230, 8
    %232 = vset.pattern.permute.xlu0 %v231
    %233 = vperm.xlu0 %232, %v222
    %v234 = vpop.permute.xlu0 %233
    %v235 = vperm.slane %v128, 0
    %v236 = vlaneseq
    %v237 = vshrl.u32 %v236, 7
    %239 = vset.pattern.permute.xlu0 %v237
    %240 = vperm.xlu0 %239, %v235
    %v241 = vpop.permute.xlu0 %240
    %v242 = vlaneseq
    %v243 = vshrl.u32 %v242, 7
    %v244 = vadd.s32 %v243, 8
    %245 = vset.pattern.permute.xlu0 %v244
    %246 = vperm.xlu0 %245, %v235
    %v247 = vpop.permute.xlu0 %246
    %v248 = vperm.slane %v128, 1
    %v249 = vlaneseq
    %v250 = vshrl.u32 %v249, 7
    %252 = vset.pattern.permute.xlu0 %v250
    %253 = vperm.xlu0 %252, %v248
    %v254 = vpop.permute.xlu0 %253
    %v255 = vlaneseq
    %v256 = vshrl.u32 %v255, 7
    %v257 = vadd.s32 %v256, 8
    %258 = vset.pattern.permute.xlu0 %v257
    %259 = vperm.xlu0 %258, %v248
    %v260 = vpop.permute.xlu0 %259
    %v261 = vperm.slane %v128, 2
    %v262 = vlaneseq
    %v263 = vshrl.u32 %v262, 7
    %265 = vset.pattern.permute.xlu0 %v263
    %266 = vperm.xlu0 %265, %v261
    %v267 = vpop.permute.xlu0 %266
    %v268 = vlaneseq
    %v269 = vshrl.u32 %v268, 7
    %v270 = vadd.s32 %v269, 8
    %271 = vset.pattern.permute.xlu0 %v270
    %272 = vperm.xlu0 %271, %v261
    %v273 = vpop.permute.xlu0 %272
    %v274 = vperm.slane %v128, 3
    %v275 = vlaneseq
    %v276 = vshrl.u32 %v275, 7
    %278 = vset.pattern.permute.xlu0 %v276
    %279 = vperm.xlu0 %278, %v274
    %v280 = vpop.permute.xlu0 %279
    %v281 = vlaneseq
    %v282 = vshrl.u32 %v281, 7
    %v283 = vadd.s32 %v282, 8
    %284 = vset.pattern.permute.xlu0 %v283
    %285 = vperm.xlu0 %284, %v274
    %v286 = vpop.permute.xlu0 %285
    %v287 = vperm.slane %v128, 4
    %v288 = vlaneseq
    %v289 = vshrl.u32 %v288, 7
    %291 = vset.pattern.permute.xlu0 %v289
    %292 = vperm.xlu0 %291, %v287
    %v293 = vpop.permute.xlu0 %292
    %v294 = vlaneseq
    %v295 = vshrl.u32 %v294, 7
    %v296 = vadd.s32 %v295, 8
    %297 = vset.pattern.permute.xlu0 %v296
    %298 = vperm.xlu0 %297, %v287
    %v299 = vpop.permute.xlu0 %298
    %v300 = vperm.slane %v128, 5
    %v301 = vlaneseq
    %v302 = vshrl.u32 %v301, 7
    %304 = vset.pattern.permute.xlu0 %v302
    %305 = vperm.xlu0 %304, %v300
    %v306 = vpop.permute.xlu0 %305
    %v307 = vlaneseq
    %v308 = vshrl.u32 %v307, 7
    %v309 = vadd.s32 %v308, 8
    %310 = vset.pattern.permute.xlu0 %v309
    %311 = vperm.xlu0 %310, %v300
    %v312 = vpop.permute.xlu0 %311
    %v313 = vperm.slane %v128, 6
    %v314 = vlaneseq
    %v315 = vshrl.u32 %v314, 7
    %317 = vset.pattern.permute.xlu0 %v315
    %318 = vperm.xlu0 %317, %v313
    %v319 = vpop.permute.xlu0 %318
    %v320 = vlaneseq
    %v321 = vshrl.u32 %v320, 7
    %v322 = vadd.s32 %v321, 8
    %323 = vset.pattern.permute.xlu0 %v322
    %324 = vperm.xlu0 %323, %v313
    %v325 = vpop.permute.xlu0 %324
    %v326 = vperm.slane %v128, 7
    %v327 = vlaneseq
    %v328 = vshrl.u32 %v327, 7
    %330 = vset.pattern.permute.xlu0 %v328
    %331 = vperm.xlu0 %330, %v326
    %v332 = vpop.permute.xlu0 %331
    %v333 = vlaneseq
    %v334 = vshrl.u32 %v333, 7
    %v335 = vadd.s32 %v334, 8
    %336 = vset.pattern.permute.xlu0 %v335
    %337 = vperm.xlu0 %336, %v326
    %v338 = vpop.permute.xlu0 %337
    %v339 = vperm.slane %v129, 0
    %v340 = vlaneseq
    %v341 = vshrl.u32 %v340, 7
    %343 = vset.pattern.permute.xlu0 %v341
    %344 = vperm.xlu0 %343, %v339
    %v345 = vpop.permute.xlu0 %344
    %v346 = vlaneseq
    %v347 = vshrl.u32 %v346, 7
    %v348 = vadd.s32 %v347, 8
    %349 = vset.pattern.permute.xlu0 %v348
    %350 = vperm.xlu0 %349, %v339
    %v351 = vpop.permute.xlu0 %350
    %v352 = vperm.slane %v129, 1
    %v353 = vlaneseq
    %v354 = vshrl.u32 %v353, 7
    %356 = vset.pattern.permute.xlu0 %v354
    %357 = vperm.xlu0 %356, %v352
    %v358 = vpop.permute.xlu0 %357
    %v359 = vlaneseq
    %v360 = vshrl.u32 %v359, 7
    %v361 = vadd.s32 %v360, 8
    %362 = vset.pattern.permute.xlu0 %v361
    %363 = vperm.xlu0 %362, %v352
    %v364 = vpop.permute.xlu0 %363
    %v365 = vperm.slane %v129, 2
    %v366 = vlaneseq
    %v367 = vshrl.u32 %v366, 7
    %369 = vset.pattern.permute.xlu0 %v367
    %370 = vperm.xlu0 %369, %v365
    %v371 = vpop.permute.xlu0 %370
    %v372 = vlaneseq
    %v373 = vshrl.u32 %v372, 7
    %v374 = vadd.s32 %v373, 8
    %375 = vset.pattern.permute.xlu0 %v374
    %376 = vperm.xlu0 %375, %v365
    %v377 = vpop.permute.xlu0 %376
    %v378 = vperm.slane %v129, 3
    %v379 = vlaneseq
    %v380 = vshrl.u32 %v379, 7
    %382 = vset.pattern.permute.xlu0 %v380
    %383 = vperm.xlu0 %382, %v378
    %v384 = vpop.permute.xlu0 %383
    %v385 = vlaneseq
    %v386 = vshrl.u32 %v385, 7
    %v387 = vadd.s32 %v386, 8
    %388 = vset.pattern.permute.xlu0 %v387
    %389 = vperm.xlu0 %388, %v378
    %v390 = vpop.permute.xlu0 %389
    %v391 = vperm.slane %v129, 4
    %v392 = vlaneseq
    %v393 = vshrl.u32 %v392, 7
    %395 = vset.pattern.permute.xlu0 %v393
    %396 = vperm.xlu0 %395, %v391
    %v397 = vpop.permute.xlu0 %396
    %v398 = vlaneseq
    %v399 = vshrl.u32 %v398, 7
    %v400 = vadd.s32 %v399, 8
    %401 = vset.pattern.permute.xlu0 %v400
    %402 = vperm.xlu0 %401, %v391
    %v403 = vpop.permute.xlu0 %402
    %v404 = vperm.slane %v129, 5
    %v405 = vlaneseq
    %v406 = vshrl.u32 %v405, 7
    %408 = vset.pattern.permute.xlu0 %v406
    %409 = vperm.xlu0 %408, %v404
    %v410 = vpop.permute.xlu0 %409
    %v411 = vlaneseq
    %v412 = vshrl.u32 %v411, 7
    %v413 = vadd.s32 %v412, 8
    %414 = vset.pattern.permute.xlu0 %v413
    %415 = vperm.xlu0 %414, %v404
    %v416 = vpop.permute.xlu0 %415
    %v417 = vperm.slane %v129, 6
    %v418 = vlaneseq
    %v419 = vshrl.u32 %v418, 7
    %421 = vset.pattern.permute.xlu0 %v419
    %422 = vperm.xlu0 %421, %v417
    %v423 = vpop.permute.xlu0 %422
    %v424 = vlaneseq
    %v425 = vshrl.u32 %v424, 7
    %v426 = vadd.s32 %v425, 8
    %427 = vset.pattern.permute.xlu0 %v426
    %428 = vperm.xlu0 %427, %v417
    %v429 = vpop.permute.xlu0 %428
    %v430 = vperm.slane %v129, 7
    %v431 = vlaneseq
    %v432 = vshrl.u32 %v431, 7
    %434 = vset.pattern.permute.xlu0 %v432
    %435 = vperm.xlu0 %434, %v430
    %v436 = vpop.permute.xlu0 %435
    %v437 = vlaneseq
    %v438 = vshrl.u32 %v437, 7
    %v439 = vadd.s32 %v438, 8
    %440 = vset.pattern.permute.xlu0 %v439
    %441 = vperm.xlu0 %440, %v430
    %v442 = vpop.permute.xlu0 %441
    %v443 = vperm.slane %v130, 0
    %v444 = vlaneseq
    %v445 = vshrl.u32 %v444, 7
    %447 = vset.pattern.permute.xlu0 %v445
    %448 = vperm.xlu0 %447, %v443
    %v449 = vpop.permute.xlu0 %448
    %v450 = vlaneseq
    %v451 = vshrl.u32 %v450, 7
    %v452 = vadd.s32 %v451, 8
    %453 = vset.pattern.permute.xlu0 %v452
    %454 = vperm.xlu0 %453, %v443
    %v455 = vpop.permute.xlu0 %454
    %v456 = vperm.slane %v130, 1
    %v457 = vlaneseq
    %v458 = vshrl.u32 %v457, 7
    %460 = vset.pattern.permute.xlu0 %v458
    %461 = vperm.xlu0 %460, %v456
    %v462 = vpop.permute.xlu0 %461
    %v463 = vlaneseq
    %v464 = vshrl.u32 %v463, 7
    %v465 = vadd.s32 %v464, 8
    %466 = vset.pattern.permute.xlu0 %v465
    %467 = vperm.xlu0 %466, %v456
    %v468 = vpop.permute.xlu0 %467
    %v469 = vperm.slane %v130, 2
    %v470 = vlaneseq
    %v471 = vshrl.u32 %v470, 7
    %473 = vset.pattern.permute.xlu0 %v471
    %474 = vperm.xlu0 %473, %v469
    %v475 = vpop.permute.xlu0 %474
    %v476 = vlaneseq
    %v477 = vshrl.u32 %v476, 7
    %v478 = vadd.s32 %v477, 8
    %479 = vset.pattern.permute.xlu0 %v478
    %480 = vperm.xlu0 %479, %v469
    %v481 = vpop.permute.xlu0 %480
    %v482 = vperm.slane %v130, 3
    %v483 = vlaneseq
    %v484 = vshrl.u32 %v483, 7
    %486 = vset.pattern.permute.xlu0 %v484
    %487 = vperm.xlu0 %486, %v482
    %v488 = vpop.permute.xlu0 %487
    %v489 = vlaneseq
    %v490 = vshrl.u32 %v489, 7
    %v491 = vadd.s32 %v490, 8
    %492 = vset.pattern.permute.xlu0 %v491
    %493 = vperm.xlu0 %492, %v482
    %v494 = vpop.permute.xlu0 %493
    %v495 = vperm.slane %v130, 4
    %v496 = vlaneseq
    %v497 = vshrl.u32 %v496, 7
    %499 = vset.pattern.permute.xlu0 %v497
    %500 = vperm.xlu0 %499, %v495
    %v501 = vpop.permute.xlu0 %500
    %v502 = vlaneseq
    %v503 = vshrl.u32 %v502, 7
    %v504 = vadd.s32 %v503, 8
    %505 = vset.pattern.permute.xlu0 %v504
    %506 = vperm.xlu0 %505, %v495
    %v507 = vpop.permute.xlu0 %506
    %v508 = vperm.slane %v130, 5
    %v509 = vlaneseq
    %v510 = vshrl.u32 %v509, 7
    %512 = vset.pattern.permute.xlu0 %v510
    %513 = vperm.xlu0 %512, %v508
    %v514 = vpop.permute.xlu0 %513
    %v515 = vlaneseq
    %v516 = vshrl.u32 %v515, 7
    %v517 = vadd.s32 %v516, 8
    %518 = vset.pattern.permute.xlu0 %v517
    %519 = vperm.xlu0 %518, %v508
    %v520 = vpop.permute.xlu0 %519
    %v521 = vperm.slane %v130, 6
    %v522 = vlaneseq
    %v523 = vshrl.u32 %v522, 7
    %525 = vset.pattern.permute.xlu0 %v523
    %526 = vperm.xlu0 %525, %v521
    %v527 = vpop.permute.xlu0 %526
    %v528 = vlaneseq
    %v529 = vshrl.u32 %v528, 7
    %v530 = vadd.s32 %v529, 8
    %531 = vset.pattern.permute.xlu0 %v530
    %532 = vperm.xlu0 %531, %v521
    %v533 = vpop.permute.xlu0 %532
    %v534 = vperm.slane %v130, 7
    %v535 = vlaneseq
    %v536 = vshrl.u32 %v535, 7
    %538 = vset.pattern.permute.xlu0 %v536
    %539 = vperm.xlu0 %538, %v534
    %v540 = vpop.permute.xlu0 %539
    %v541 = vlaneseq
    %v542 = vshrl.u32 %v541, 7
    %v543 = vadd.s32 %v542, 8
    %544 = vset.pattern.permute.xlu0 %v543
    %545 = vperm.xlu0 %544, %v534
    %v546 = vpop.permute.xlu0 %545
    %v547 = vmul.f32 %v63, %v137
    %v548 = vmul.f32 %v64, %v143
    %v549 = vmul.f32 %v65, %v150
    %v550 = vmul.f32 %v66, %v156
    %v551 = vmul.f32 %v67, %v163
    %v552 = vmul.f32 %v68, %v169
    %v553 = vmul.f32 %v69, %v176
    %v554 = vmul.f32 %v70, %v182
    %v555 = vmul.f32 %v71, %v189
    %v556 = vmul.f32 %v72, %v195
    %v557 = vmul.f32 %v73, %v202
    %v558 = vmul.f32 %v74, %v208
    %v559 = vmul.f32 %v75, %v215
    %v560 = vmul.f32 %v76, %v221
    %v561 = vmul.f32 %v77, %v228
    %v562 = vmul.f32 %v78, %v234
    %v563 = vmul.f32 %v79, %v241
    %v564 = vmul.f32 %v80, %v247
    %v565 = vmul.f32 %v81, %v254
    %v566 = vmul.f32 %v82, %v260
    %v567 = vmul.f32 %v83, %v267
    %v568 = vmul.f32 %v84, %v273
    %v569 = vmul.f32 %v85, %v280
    %v570 = vmul.f32 %v86, %v286
    %v571 = vmul.f32 %v87, %v293
    %v572 = vmul.f32 %v88, %v299
    %v573 = vmul.f32 %v89, %v306
    %v574 = vmul.f32 %v90, %v312
    %v575 = vmul.f32 %v91, %v319
    %v576 = vmul.f32 %v92, %v325
    %v577 = vmul.f32 %v93, %v332
    %v578 = vmul.f32 %v94, %v338
    %v579 = vmul.f32 %v95, %v345
    %v580 = vmul.f32 %v96, %v351
    %v581 = vmul.f32 %v97, %v358
    %v582 = vmul.f32 %v98, %v364
    %v583 = vmul.f32 %v99, %v371
    %v584 = vmul.f32 %v100, %v377
    %v585 = vmul.f32 %v101, %v384
    %v586 = vmul.f32 %v102, %v390
    %v587 = vmul.f32 %v103, %v397
    %v588 = vmul.f32 %v104, %v403
    %v589 = vmul.f32 %v105, %v410
    %v590 = vmul.f32 %v106, %v416
    %v591 = vmul.f32 %v107, %v423
    %v592 = vmul.f32 %v108, %v429
    %v593 = vmul.f32 %v109, %v436
    %v594 = vmul.f32 %v110, %v442
    %v595 = vmul.f32 %v111, %v449
    %v596 = vmul.f32 %v112, %v455
    %v597 = vmul.f32 %v113, %v462
    %v598 = vmul.f32 %v114, %v468
    %v599 = vmul.f32 %v115, %v475
    %v600 = vmul.f32 %v116, %v481
    %v601 = vmul.f32 %v117, %v488
    %v602 = vmul.f32 %v118, %v494
    %v603 = vmul.f32 %v119, %v501
    %v604 = vmul.f32 %v120, %v507
    %v605 = vmul.f32 %v121, %v514
    %v606 = vmul.f32 %v122, %v520
    %v607 = vmul.f32 %v123, %v527
    %v608 = vmul.f32 %v124, %v533
    %v609 = vmul.f32 %v125, %v540
    %v610 = vmul.f32 %v126, %v546
    %v611 = vadd.f32 %v547, %v548
    %v612 = vrot.slane %v611, 4
    %v613 = vadd.f32 %v611, %v612
    %v614 = vrot.slane %v613, 2
    %v615 = vadd.f32 %v613, %v614
    %v616 = vrot.slane %v615, 1
    %v617 = vadd.f32 %v615, %v616
    %v618 = vadd.f32 %v549, %v550
    %v619 = vrot.slane %v618, 4
    %v620 = vadd.f32 %v618, %v619
    %v621 = vrot.slane %v620, 2
    %v622 = vadd.f32 %v620, %v621
    %v623 = vrot.slane %v622, 1
    %v624 = vadd.f32 %v622, %v623
    %v625 = vadd.f32 %v551, %v552
    %v626 = vrot.slane %v625, 4
    %v627 = vadd.f32 %v625, %v626
    %v628 = vrot.slane %v627, 2
    %v629 = vadd.f32 %v627, %v628
    %v630 = vrot.slane %v629, 1
    %v631 = vadd.f32 %v629, %v630
    %v632 = vadd.f32 %v553, %v554
    %v633 = vrot.slane %v632, 4
    %v634 = vadd.f32 %v632, %v633
    %v635 = vrot.slane %v634, 2
    %v636 = vadd.f32 %v634, %v635
    %v637 = vrot.slane %v636, 1
    %v638 = vadd.f32 %v636, %v637
    %v639 = vadd.f32 %v555, %v556
    %v640 = vrot.slane %v639, 4
    %v641 = vadd.f32 %v639, %v640
    %v642 = vrot.slane %v641, 2
    %v643 = vadd.f32 %v641, %v642
    %v644 = vrot.slane %v643, 1
    %v645 = vadd.f32 %v643, %v644
    %v646 = vadd.f32 %v557, %v558
    %v647 = vrot.slane %v646, 4
    %v648 = vadd.f32 %v646, %v647
    %v649 = vrot.slane %v648, 2
    %v650 = vadd.f32 %v648, %v649
    %v651 = vrot.slane %v650, 1
    %v652 = vadd.f32 %v650, %v651
    %v653 = vadd.f32 %v559, %v560
    %v654 = vrot.slane %v653, 4
    %v655 = vadd.f32 %v653, %v654
    %v656 = vrot.slane %v655, 2
    %v657 = vadd.f32 %v655, %v656
    %v658 = vrot.slane %v657, 1
    %v659 = vadd.f32 %v657, %v658
    %v660 = vadd.f32 %v561, %v562
    %v661 = vrot.slane %v660, 4
    %v662 = vadd.f32 %v660, %v661
    %v663 = vrot.slane %v662, 2
    %v664 = vadd.f32 %v662, %v663
    %v665 = vrot.slane %v664, 1
    %v666 = vadd.f32 %v664, %v665
    %v667 = vadd.f32 %v563, %v564
    %v668 = vrot.slane %v667, 4
    %v669 = vadd.f32 %v667, %v668
    %v670 = vrot.slane %v669, 2
    %v671 = vadd.f32 %v669, %v670
    %v672 = vrot.slane %v671, 1
    %v673 = vadd.f32 %v671, %v672
    %v674 = vadd.f32 %v565, %v566
    %v675 = vrot.slane %v674, 4
    %v676 = vadd.f32 %v674, %v675
    %v677 = vrot.slane %v676, 2
    %v678 = vadd.f32 %v676, %v677
    %v679 = vrot.slane %v678, 1
    %v680 = vadd.f32 %v678, %v679
    %v681 = vadd.f32 %v567, %v568
    %v682 = vrot.slane %v681, 4
    %v683 = vadd.f32 %v681, %v682
    %v684 = vrot.slane %v683, 2
    %v685 = vadd.f32 %v683, %v684
    %v686 = vrot.slane %v685, 1
    %v687 = vadd.f32 %v685, %v686
    %v688 = vadd.f32 %v569, %v570
    %v689 = vrot.slane %v688, 4
    %v690 = vadd.f32 %v688, %v689
    %v691 = vrot.slane %v690, 2
    %v692 = vadd.f32 %v690, %v691
    %v693 = vrot.slane %v692, 1
    %v694 = vadd.f32 %v692, %v693
    %v695 = vadd.f32 %v571, %v572
    %v696 = vrot.slane %v695, 4
    %v697 = vadd.f32 %v695, %v696
    %v698 = vrot.slane %v697, 2
    %v699 = vadd.f32 %v697, %v698
    %v700 = vrot.slane %v699, 1
    %v701 = vadd.f32 %v699, %v700
    %v702 = vadd.f32 %v573, %v574
    %v703 = vrot.slane %v702, 4
    %v704 = vadd.f32 %v702, %v703
    %v705 = vrot.slane %v704, 2
    %v706 = vadd.f32 %v704, %v705
    %v707 = vrot.slane %v706, 1
    %v708 = vadd.f32 %v706, %v707
    %v709 = vadd.f32 %v575, %v576
    %v710 = vrot.slane %v709, 4
    %v711 = vadd.f32 %v709, %v710
    %v712 = vrot.slane %v711, 2
    %v713 = vadd.f32 %v711, %v712
    %v714 = vrot.slane %v713, 1
    %v715 = vadd.f32 %v713, %v714
    %v716 = vadd.f32 %v577, %v578
    %v717 = vrot.slane %v716, 4
    %v718 = vadd.f32 %v716, %v717
    %v719 = vrot.slane %v718, 2
    %v720 = vadd.f32 %v718, %v719
    %v721 = vrot.slane %v720, 1
    %v722 = vadd.f32 %v720, %v721
    %v723 = vadd.f32 %v579, %v580
    %v724 = vrot.slane %v723, 4
    %v725 = vadd.f32 %v723, %v724
    %v726 = vrot.slane %v725, 2
    %v727 = vadd.f32 %v725, %v726
    %v728 = vrot.slane %v727, 1
    %v729 = vadd.f32 %v727, %v728
    %v730 = vadd.f32 %v581, %v582
    %v731 = vrot.slane %v730, 4
    %v732 = vadd.f32 %v730, %v731
    %v733 = vrot.slane %v732, 2
    %v734 = vadd.f32 %v732, %v733
    %v735 = vrot.slane %v734, 1
    %v736 = vadd.f32 %v734, %v735
    %v737 = vadd.f32 %v583, %v584
    %v738 = vrot.slane %v737, 4
    %v739 = vadd.f32 %v737, %v738
    %v740 = vrot.slane %v739, 2
    %v741 = vadd.f32 %v739, %v740
    %v742 = vrot.slane %v741, 1
    %v743 = vadd.f32 %v741, %v742
    %v744 = vadd.f32 %v585, %v586
    %v745 = vrot.slane %v744, 4
    %v746 = vadd.f32 %v744, %v745
    %v747 = vrot.slane %v746, 2
    %v748 = vadd.f32 %v746, %v747
    %v749 = vrot.slane %v748, 1
    %v750 = vadd.f32 %v748, %v749
    %v751 = vadd.f32 %v587, %v588
    %v752 = vrot.slane %v751, 4
    %v753 = vadd.f32 %v751, %v752
    %v754 = vrot.slane %v753, 2
    %v755 = vadd.f32 %v753, %v754
    %v756 = vrot.slane %v755, 1
    %v757 = vadd.f32 %v755, %v756
    %v758 = vadd.f32 %v589, %v590
    %v759 = vrot.slane %v758, 4
    %v760 = vadd.f32 %v758, %v759
    %v761 = vrot.slane %v760, 2
    %v762 = vadd.f32 %v760, %v761
    %v763 = vrot.slane %v762, 1
    %v764 = vadd.f32 %v762, %v763
    %v765 = vadd.f32 %v591, %v592
    %v766 = vrot.slane %v765, 4
    %v767 = vadd.f32 %v765, %v766
    %v768 = vrot.slane %v767, 2
    %v769 = vadd.f32 %v767, %v768
    %v770 = vrot.slane %v769, 1
    %v771 = vadd.f32 %v769, %v770
    %v772 = vadd.f32 %v593, %v594
    %v773 = vrot.slane %v772, 4
    %v774 = vadd.f32 %v772, %v773
    %v775 = vrot.slane %v774, 2
    %v776 = vadd.f32 %v774, %v775
    %v777 = vrot.slane %v776, 1
    %v778 = vadd.f32 %v776, %v777
    %v779 = vadd.f32 %v595, %v596
    %v780 = vrot.slane %v779, 4
    %v781 = vadd.f32 %v779, %v780
    %v782 = vrot.slane %v781, 2
    %v783 = vadd.f32 %v781, %v782
    %v784 = vrot.slane %v783, 1
    %v785 = vadd.f32 %v783, %v784
    %v786 = vadd.f32 %v597, %v598
    %v787 = vrot.slane %v786, 4
    %v788 = vadd.f32 %v786, %v787
    %v789 = vrot.slane %v788, 2
    %v790 = vadd.f32 %v788, %v789
    %v791 = vrot.slane %v790, 1
    %v792 = vadd.f32 %v790, %v791
    %v793 = vadd.f32 %v599, %v600
    %v794 = vrot.slane %v793, 4
    %v795 = vadd.f32 %v793, %v794
    %v796 = vrot.slane %v795, 2
    %v797 = vadd.f32 %v795, %v796
    %v798 = vrot.slane %v797, 1
    %v799 = vadd.f32 %v797, %v798
    %v800 = vadd.f32 %v601, %v602
    %v801 = vrot.slane %v800, 4
    %v802 = vadd.f32 %v800, %v801
    %v803 = vrot.slane %v802, 2
    %v804 = vadd.f32 %v802, %v803
    %v805 = vrot.slane %v804, 1
    %v806 = vadd.f32 %v804, %v805
    %v807 = vadd.f32 %v603, %v604
    %v808 = vrot.slane %v807, 4
    %v809 = vadd.f32 %v807, %v808
    %v810 = vrot.slane %v809, 2
    %v811 = vadd.f32 %v809, %v810
    %v812 = vrot.slane %v811, 1
    %v813 = vadd.f32 %v811, %v812
    %v814 = vadd.f32 %v605, %v606
    %v815 = vrot.slane %v814, 4
    %v816 = vadd.f32 %v814, %v815
    %v817 = vrot.slane %v816, 2
    %v818 = vadd.f32 %v816, %v817
    %v819 = vrot.slane %v818, 1
    %v820 = vadd.f32 %v818, %v819
    %v821 = vadd.f32 %v607, %v608
    %v822 = vrot.slane %v821, 4
    %v823 = vadd.f32 %v821, %v822
    %v824 = vrot.slane %v823, 2
    %v825 = vadd.f32 %v823, %v824
    %v826 = vrot.slane %v825, 1
    %v827 = vadd.f32 %v825, %v826
    %v828 = vadd.f32 %v609, %v610
    %v829 = vrot.slane %v828, 4
    %v830 = vadd.f32 %v828, %v829
    %v831 = vrot.slane %v830, 2
    %v832 = vadd.f32 %v830, %v831
    %v833 = vrot.slane %v832, 1
    %v834 = vadd.f32 %v832, %v833
    %vm835 = vcmask 130048
    %v836 = vsel %vm835, %v127, 0.0
    %837 = vadd.xlane.f32.xlu0 %v836
    %v838 = vpop.xlane.xlu0 %837
    %v839 = vsel %vm835, %v128, 0.0
    %840 = vadd.xlane.f32.xlu0 %v839
    %v841 = vpop.xlane.xlu0 %840
    %v842 = vsel %vm835, %v129, 0.0
    %843 = vadd.xlane.f32.xlu0 %v842
    %v844 = vpop.xlane.xlu0 %843
    %v845 = vsel %vm835, %v130, 0.0
    %846 = vadd.xlane.f32.xlu0 %v845
    %v847 = vpop.xlane.xlu0 %846
    %v852 = vrot.slane %v838, 1
    %v853 = vrot.slane %v838, 2
    %v854 = vrot.slane %v838, 3
    %v855 = vrot.slane %v838, 4
    %v856 = vrot.slane %v838, 5
    %v857 = vrot.slane %v838, 6
    %v858 = vrot.slane %v838, 7
    %v859 = vrot.slane %v841, 1
    %v860 = vrot.slane %v841, 2
    %v861 = vrot.slane %v841, 3
    %v862 = vrot.slane %v841, 4
    %v863 = vrot.slane %v841, 5
    %v864 = vrot.slane %v841, 6
    %v865 = vrot.slane %v841, 7
    %v866 = vrot.slane %v844, 1
    %v867 = vrot.slane %v844, 2
    %v868 = vrot.slane %v844, 3
    %v869 = vrot.slane %v844, 4
    %v870 = vrot.slane %v844, 5
    %v871 = vrot.slane %v844, 6
    %v872 = vrot.slane %v844, 7
    %v873 = vrot.slane %v847, 1
    %v874 = vrot.slane %v847, 2
    %v875 = vrot.slane %v847, 3
    %v876 = vrot.slane %v847, 4
    %v877 = vrot.slane %v847, 5
    %v878 = vrot.slane %v847, 6
    %v879 = vrot.slane %v847, 7
    %v912 = vrcp.pop %v838
    %v913 = vmul.f32 %v838, %v912
    %v914 = vsub.f32 1.0, %v913
    %v915 = vmul.f32 %v912, %v914
    %v916 = vadd.f32 %v912, %v915
    %vm917 = vweird.f32 %v838
    %vm918 = vweird.f32 %v912
    %vm919 = vmor %vm917, %vm918
    %v920 = vsel %vm919, %v912, %v916
    %v921 = vand.u32 2147483647, %v838
    %vm922 = vcmp.eq.f32.partialorder %v921, 8.507059e+37
    %v923 = vand.u32 %v838, 2147483648
    %v924 = vor.u32 1.1754944e-38, %v923
    %v925 = vsel %vm922, %v924, %v920
    %v926 = vmul.f32 %v617, %v925
    %v927 = vrcp.pop %v852
    %v928 = vmul.f32 %v852, %v927
    %v929 = vsub.f32 1.0, %v928
    %v930 = vmul.f32 %v927, %v929
    %v931 = vadd.f32 %v927, %v930
    %vm932 = vweird.f32 %v852
    %vm933 = vweird.f32 %v927
    %vm934 = vmor %vm932, %vm933
    %v935 = vsel %vm934, %v927, %v931
    %v936 = vand.u32 2147483647, %v852
    %vm937 = vcmp.eq.f32.partialorder %v936, 8.507059e+37
    %v938 = vand.u32 %v852, 2147483648
    %v939 = vor.u32 1.1754944e-38, %v938
    %v940 = vsel %vm937, %v939, %v935
    %v941 = vmul.f32 %v624, %v940
    %v942 = vrcp.pop %v853
    %v943 = vmul.f32 %v853, %v942
    %v944 = vsub.f32 1.0, %v943
    %v945 = vmul.f32 %v942, %v944
    %v946 = vadd.f32 %v942, %v945
    %vm947 = vweird.f32 %v853
    %vm948 = vweird.f32 %v942
    %vm949 = vmor %vm947, %vm948
    %v950 = vsel %vm949, %v942, %v946
    %v951 = vand.u32 2147483647, %v853
    %vm952 = vcmp.eq.f32.partialorder %v951, 8.507059e+37
    %v953 = vand.u32 %v853, 2147483648
    %v954 = vor.u32 1.1754944e-38, %v953
    %v955 = vsel %vm952, %v954, %v950
    %v956 = vmul.f32 %v631, %v955
    %v957 = vrcp.pop %v854
    %v958 = vmul.f32 %v854, %v957
    %v959 = vsub.f32 1.0, %v958
    %v960 = vmul.f32 %v957, %v959
    %v961 = vadd.f32 %v957, %v960
    %vm962 = vweird.f32 %v854
    %vm963 = vweird.f32 %v957
    %vm964 = vmor %vm962, %vm963
    %v965 = vsel %vm964, %v957, %v961
    %v966 = vand.u32 2147483647, %v854
    %vm967 = vcmp.eq.f32.partialorder %v966, 8.507059e+37
    %v968 = vand.u32 %v854, 2147483648
    %v969 = vor.u32 1.1754944e-38, %v968
    %v970 = vsel %vm967, %v969, %v965
    %v971 = vmul.f32 %v638, %v970
    %v972 = vrcp.pop %v855
    %v973 = vmul.f32 %v855, %v972
    %v974 = vsub.f32 1.0, %v973
    %v975 = vmul.f32 %v972, %v974
    %v976 = vadd.f32 %v972, %v975
    %vm977 = vweird.f32 %v855
    %vm978 = vweird.f32 %v972
    %vm979 = vmor %vm977, %vm978
    %v980 = vsel %vm979, %v972, %v976
    %v981 = vand.u32 2147483647, %v855
    %vm982 = vcmp.eq.f32.partialorder %v981, 8.507059e+37
    %v983 = vand.u32 %v855, 2147483648
    %v984 = vor.u32 1.1754944e-38, %v983
    %v985 = vsel %vm982, %v984, %v980
    %v986 = vmul.f32 %v645, %v985
    %v987 = vrcp.pop %v856
    %v988 = vmul.f32 %v856, %v987
    %v989 = vsub.f32 1.0, %v988
    %v990 = vmul.f32 %v987, %v989
    %v991 = vadd.f32 %v987, %v990
    %vm992 = vweird.f32 %v856
    %vm993 = vweird.f32 %v987
    %vm994 = vmor %vm992, %vm993
    %v995 = vsel %vm994, %v987, %v991
    %v996 = vand.u32 2147483647, %v856
    %vm997 = vcmp.eq.f32.partialorder %v996, 8.507059e+37
    %v998 = vand.u32 %v856, 2147483648
    %v999 = vor.u32 1.1754944e-38, %v998
    %v1000 = vsel %vm997, %v999, %v995
    %v1001 = vmul.f32 %v652, %v1000
    %v1002 = vrcp.pop %v857
    %v1003 = vmul.f32 %v857, %v1002
    %v1004 = vsub.f32 1.0, %v1003
    %v1005 = vmul.f32 %v1002, %v1004
    %v1006 = vadd.f32 %v1002, %v1005
    %vm1007 = vweird.f32 %v857
    %vm1008 = vweird.f32 %v1002
    %vm1009 = vmor %vm1007, %vm1008
    %v1010 = vsel %vm1009, %v1002, %v1006
    %v1011 = vand.u32 2147483647, %v857
    %vm1012 = vcmp.eq.f32.partialorder %v1011, 8.507059e+37
    %v1013 = vand.u32 %v857, 2147483648
    %v1014 = vor.u32 1.1754944e-38, %v1013
    %v1015 = vsel %vm1012, %v1014, %v1010
    %v1016 = vmul.f32 %v659, %v1015
    %v1017 = vrcp.pop %v858
    %v1018 = vmul.f32 %v858, %v1017
    %v1019 = vsub.f32 1.0, %v1018
    %v1020 = vmul.f32 %v1017, %v1019
    %v1021 = vadd.f32 %v1017, %v1020
    %vm1022 = vweird.f32 %v858
    %vm1023 = vweird.f32 %v1017
    %vm1024 = vmor %vm1022, %vm1023
    %v1025 = vsel %vm1024, %v1017, %v1021
    %v1026 = vand.u32 2147483647, %v858
    %vm1027 = vcmp.eq.f32.partialorder %v1026, 8.507059e+37
    %v1028 = vand.u32 %v858, 2147483648
    %v1029 = vor.u32 1.1754944e-38, %v1028
    %v1030 = vsel %vm1027, %v1029, %v1025
    %v1031 = vmul.f32 %v666, %v1030
    %v1032 = vrcp.pop %v841
    %v1033 = vmul.f32 %v841, %v1032
    %v1034 = vsub.f32 1.0, %v1033
    %v1035 = vmul.f32 %v1032, %v1034
    %v1036 = vadd.f32 %v1032, %v1035
    %vm1037 = vweird.f32 %v841
    %vm1038 = vweird.f32 %v1032
    %vm1039 = vmor %vm1037, %vm1038
    %v1040 = vsel %vm1039, %v1032, %v1036
    %v1041 = vand.u32 2147483647, %v841
    %vm1042 = vcmp.eq.f32.partialorder %v1041, 8.507059e+37
    %v1043 = vand.u32 %v841, 2147483648
    %v1044 = vor.u32 1.1754944e-38, %v1043
    %v1045 = vsel %vm1042, %v1044, %v1040
    %v1046 = vmul.f32 %v673, %v1045
    %v1047 = vrcp.pop %v859
    %v1048 = vmul.f32 %v859, %v1047
    %v1049 = vsub.f32 1.0, %v1048
    %v1050 = vmul.f32 %v1047, %v1049
    %v1051 = vadd.f32 %v1047, %v1050
    %vm1052 = vweird.f32 %v859
    %vm1053 = vweird.f32 %v1047
    %vm1054 = vmor %vm1052, %vm1053
    %v1055 = vsel %vm1054, %v1047, %v1051
    %v1056 = vand.u32 2147483647, %v859
    %vm1057 = vcmp.eq.f32.partialorder %v1056, 8.507059e+37
    %v1058 = vand.u32 %v859, 2147483648
    %v1059 = vor.u32 1.1754944e-38, %v1058
    %v1060 = vsel %vm1057, %v1059, %v1055
    %v1061 = vmul.f32 %v680, %v1060
    %v1062 = vrcp.pop %v860
    %v1063 = vmul.f32 %v860, %v1062
    %v1064 = vsub.f32 1.0, %v1063
    %v1065 = vmul.f32 %v1062, %v1064
    %v1066 = vadd.f32 %v1062, %v1065
    %vm1067 = vweird.f32 %v860
    %vm1068 = vweird.f32 %v1062
    %vm1069 = vmor %vm1067, %vm1068
    %v1070 = vsel %vm1069, %v1062, %v1066
    %v1071 = vand.u32 2147483647, %v860
    %vm1072 = vcmp.eq.f32.partialorder %v1071, 8.507059e+37
    %v1073 = vand.u32 %v860, 2147483648
    %v1074 = vor.u32 1.1754944e-38, %v1073
    %v1075 = vsel %vm1072, %v1074, %v1070
    %v1076 = vmul.f32 %v687, %v1075
    %v1077 = vrcp.pop %v861
    %v1078 = vmul.f32 %v861, %v1077
    %v1079 = vsub.f32 1.0, %v1078
    %v1080 = vmul.f32 %v1077, %v1079
    %v1081 = vadd.f32 %v1077, %v1080
    %vm1082 = vweird.f32 %v861
    %vm1083 = vweird.f32 %v1077
    %vm1084 = vmor %vm1082, %vm1083
    %v1085 = vsel %vm1084, %v1077, %v1081
    %v1086 = vand.u32 2147483647, %v861
    %vm1087 = vcmp.eq.f32.partialorder %v1086, 8.507059e+37
    %v1088 = vand.u32 %v861, 2147483648
    %v1089 = vor.u32 1.1754944e-38, %v1088
    %v1090 = vsel %vm1087, %v1089, %v1085
    %v1091 = vmul.f32 %v694, %v1090
    %v1092 = vrcp.pop %v862
    %v1093 = vmul.f32 %v862, %v1092
    %v1094 = vsub.f32 1.0, %v1093
    %v1095 = vmul.f32 %v1092, %v1094
    %v1096 = vadd.f32 %v1092, %v1095
    %vm1097 = vweird.f32 %v862
    %vm1098 = vweird.f32 %v1092
    %vm1099 = vmor %vm1097, %vm1098
    %v1100 = vsel %vm1099, %v1092, %v1096
    %v1101 = vand.u32 2147483647, %v862
    %vm1102 = vcmp.eq.f32.partialorder %v1101, 8.507059e+37
    %v1103 = vand.u32 %v862, 2147483648
    %v1104 = vor.u32 1.1754944e-38, %v1103
    %v1105 = vsel %vm1102, %v1104, %v1100
    %v1106 = vmul.f32 %v701, %v1105
    %v1107 = vrcp.pop %v863
    %v1108 = vmul.f32 %v863, %v1107
    %v1109 = vsub.f32 1.0, %v1108
    %v1110 = vmul.f32 %v1107, %v1109
    %v1111 = vadd.f32 %v1107, %v1110
    %vm1112 = vweird.f32 %v863
    %vm1113 = vweird.f32 %v1107
    %vm1114 = vmor %vm1112, %vm1113
    %v1115 = vsel %vm1114, %v1107, %v1111
    %v1116 = vand.u32 2147483647, %v863
    %vm1117 = vcmp.eq.f32.partialorder %v1116, 8.507059e+37
    %v1118 = vand.u32 %v863, 2147483648
    %v1119 = vor.u32 1.1754944e-38, %v1118
    %v1120 = vsel %vm1117, %v1119, %v1115
    %v1121 = vmul.f32 %v708, %v1120
    %v1122 = vrcp.pop %v864
    %v1123 = vmul.f32 %v864, %v1122
    %v1124 = vsub.f32 1.0, %v1123
    %v1125 = vmul.f32 %v1122, %v1124
    %v1126 = vadd.f32 %v1122, %v1125
    %vm1127 = vweird.f32 %v864
    %vm1128 = vweird.f32 %v1122
    %vm1129 = vmor %vm1127, %vm1128
    %v1130 = vsel %vm1129, %v1122, %v1126
    %v1131 = vand.u32 2147483647, %v864
    %vm1132 = vcmp.eq.f32.partialorder %v1131, 8.507059e+37
    %v1133 = vand.u32 %v864, 2147483648
    %v1134 = vor.u32 1.1754944e-38, %v1133
    %v1135 = vsel %vm1132, %v1134, %v1130
    %v1136 = vmul.f32 %v715, %v1135
    %v1137 = vrcp.pop %v865
    %v1138 = vmul.f32 %v865, %v1137
    %v1139 = vsub.f32 1.0, %v1138
    %v1140 = vmul.f32 %v1137, %v1139
    %v1141 = vadd.f32 %v1137, %v1140
    %vm1142 = vweird.f32 %v865
    %vm1143 = vweird.f32 %v1137
    %vm1144 = vmor %vm1142, %vm1143
    %v1145 = vsel %vm1144, %v1137, %v1141
    %v1146 = vand.u32 2147483647, %v865
    %vm1147 = vcmp.eq.f32.partialorder %v1146, 8.507059e+37
    %v1148 = vand.u32 %v865, 2147483648
    %v1149 = vor.u32 1.1754944e-38, %v1148
    %v1150 = vsel %vm1147, %v1149, %v1145
    %v1151 = vmul.f32 %v722, %v1150
    %v1152 = vrcp.pop %v844
    %v1153 = vmul.f32 %v844, %v1152
    %v1154 = vsub.f32 1.0, %v1153
    %v1155 = vmul.f32 %v1152, %v1154
    %v1156 = vadd.f32 %v1152, %v1155
    %vm1157 = vweird.f32 %v844
    %vm1158 = vweird.f32 %v1152
    %vm1159 = vmor %vm1157, %vm1158
    %v1160 = vsel %vm1159, %v1152, %v1156
    %v1161 = vand.u32 2147483647, %v844
    %vm1162 = vcmp.eq.f32.partialorder %v1161, 8.507059e+37
    %v1163 = vand.u32 %v844, 2147483648
    %v1164 = vor.u32 1.1754944e-38, %v1163
    %v1165 = vsel %vm1162, %v1164, %v1160
    %v1166 = vmul.f32 %v729, %v1165
    %v1167 = vrcp.pop %v866
    %v1168 = vmul.f32 %v866, %v1167
    %v1169 = vsub.f32 1.0, %v1168
    %v1170 = vmul.f32 %v1167, %v1169
    %v1171 = vadd.f32 %v1167, %v1170
    %vm1172 = vweird.f32 %v866
    %vm1173 = vweird.f32 %v1167
    %vm1174 = vmor %vm1172, %vm1173
    %v1175 = vsel %vm1174, %v1167, %v1171
    %v1176 = vand.u32 2147483647, %v866
    %vm1177 = vcmp.eq.f32.partialorder %v1176, 8.507059e+37
    %v1178 = vand.u32 %v866, 2147483648
    %v1179 = vor.u32 1.1754944e-38, %v1178
    %v1180 = vsel %vm1177, %v1179, %v1175
    %v1181 = vmul.f32 %v736, %v1180
    %v1182 = vrcp.pop %v867
    %v1183 = vmul.f32 %v867, %v1182
    %v1184 = vsub.f32 1.0, %v1183
    %v1185 = vmul.f32 %v1182, %v1184
    %v1186 = vadd.f32 %v1182, %v1185
    %vm1187 = vweird.f32 %v867
    %vm1188 = vweird.f32 %v1182
    %vm1189 = vmor %vm1187, %vm1188
    %v1190 = vsel %vm1189, %v1182, %v1186
    %v1191 = vand.u32 2147483647, %v867
    %vm1192 = vcmp.eq.f32.partialorder %v1191, 8.507059e+37
    %v1193 = vand.u32 %v867, 2147483648
    %v1194 = vor.u32 1.1754944e-38, %v1193
    %v1195 = vsel %vm1192, %v1194, %v1190
    %v1196 = vmul.f32 %v743, %v1195
    %v1197 = vrcp.pop %v868
    %v1198 = vmul.f32 %v868, %v1197
    %v1199 = vsub.f32 1.0, %v1198
    %v1200 = vmul.f32 %v1197, %v1199
    %v1201 = vadd.f32 %v1197, %v1200
    %vm1202 = vweird.f32 %v868
    %vm1203 = vweird.f32 %v1197
    %vm1204 = vmor %vm1202, %vm1203
    %v1205 = vsel %vm1204, %v1197, %v1201
    %v1206 = vand.u32 2147483647, %v868
    %vm1207 = vcmp.eq.f32.partialorder %v1206, 8.507059e+37
    %v1208 = vand.u32 %v868, 2147483648
    %v1209 = vor.u32 1.1754944e-38, %v1208
    %v1210 = vsel %vm1207, %v1209, %v1205
    %v1211 = vmul.f32 %v750, %v1210
    %v1212 = vrcp.pop %v869
    %v1213 = vmul.f32 %v869, %v1212
    %v1214 = vsub.f32 1.0, %v1213
    %v1215 = vmul.f32 %v1212, %v1214
    %v1216 = vadd.f32 %v1212, %v1215
    %vm1217 = vweird.f32 %v869
    %vm1218 = vweird.f32 %v1212
    %vm1219 = vmor %vm1217, %vm1218
    %v1220 = vsel %vm1219, %v1212, %v1216
    %v1221 = vand.u32 2147483647, %v869
    %vm1222 = vcmp.eq.f32.partialorder %v1221, 8.507059e+37
    %v1223 = vand.u32 %v869, 2147483648
    %v1224 = vor.u32 1.1754944e-38, %v1223
    %v1225 = vsel %vm1222, %v1224, %v1220
    %v1226 = vmul.f32 %v757, %v1225
    %v1227 = vrcp.pop %v870
    %v1228 = vmul.f32 %v870, %v1227
    %v1229 = vsub.f32 1.0, %v1228
    %v1230 = vmul.f32 %v1227, %v1229
    %v1231 = vadd.f32 %v1227, %v1230
    %vm1232 = vweird.f32 %v870
    %vm1233 = vweird.f32 %v1227
    %vm1234 = vmor %vm1232, %vm1233
    %v1235 = vsel %vm1234, %v1227, %v1231
    %v1236 = vand.u32 2147483647, %v870
    %vm1237 = vcmp.eq.f32.partialorder %v1236, 8.507059e+37
    %v1238 = vand.u32 %v870, 2147483648
    %v1239 = vor.u32 1.1754944e-38, %v1238
    %v1240 = vsel %vm1237, %v1239, %v1235
    %v1241 = vmul.f32 %v764, %v1240
    %v1242 = vrcp.pop %v871
    %v1243 = vmul.f32 %v871, %v1242
    %v1244 = vsub.f32 1.0, %v1243
    %v1245 = vmul.f32 %v1242, %v1244
    %v1246 = vadd.f32 %v1242, %v1245
    %vm1247 = vweird.f32 %v871
    %vm1248 = vweird.f32 %v1242
    %vm1249 = vmor %vm1247, %vm1248
    %v1250 = vsel %vm1249, %v1242, %v1246
    %v1251 = vand.u32 2147483647, %v871
    %vm1252 = vcmp.eq.f32.partialorder %v1251, 8.507059e+37
    %v1253 = vand.u32 %v871, 2147483648
    %v1254 = vor.u32 1.1754944e-38, %v1253
    %v1255 = vsel %vm1252, %v1254, %v1250
    %v1256 = vmul.f32 %v771, %v1255
    %v1257 = vrcp.pop %v872
    %v1258 = vmul.f32 %v872, %v1257
    %v1259 = vsub.f32 1.0, %v1258
    %v1260 = vmul.f32 %v1257, %v1259
    %v1261 = vadd.f32 %v1257, %v1260
    %vm1262 = vweird.f32 %v872
    %vm1263 = vweird.f32 %v1257
    %vm1264 = vmor %vm1262, %vm1263
    %v1265 = vsel %vm1264, %v1257, %v1261
    %v1266 = vand.u32 2147483647, %v872
    %vm1267 = vcmp.eq.f32.partialorder %v1266, 8.507059e+37
    %v1268 = vand.u32 %v872, 2147483648
    %v1269 = vor.u32 1.1754944e-38, %v1268
    %v1270 = vsel %vm1267, %v1269, %v1265
    %v1271 = vmul.f32 %v778, %v1270
    %v1272 = vrcp.pop %v847
    %v1273 = vmul.f32 %v847, %v1272
    %v1274 = vsub.f32 1.0, %v1273
    %v1275 = vmul.f32 %v1272, %v1274
    %v1276 = vadd.f32 %v1272, %v1275
    %vm1277 = vweird.f32 %v847
    %vm1278 = vweird.f32 %v1272
    %vm1279 = vmor %vm1277, %vm1278
    %v1280 = vsel %vm1279, %v1272, %v1276
    %v1281 = vand.u32 2147483647, %v847
    %vm1282 = vcmp.eq.f32.partialorder %v1281, 8.507059e+37
    %v1283 = vand.u32 %v847, 2147483648
    %v1284 = vor.u32 1.1754944e-38, %v1283
    %v1285 = vsel %vm1282, %v1284, %v1280
    %v1286 = vmul.f32 %v785, %v1285
    %v1287 = vrcp.pop %v873
    %v1288 = vmul.f32 %v873, %v1287
    %v1289 = vsub.f32 1.0, %v1288
    %v1290 = vmul.f32 %v1287, %v1289
    %v1291 = vadd.f32 %v1287, %v1290
    %vm1292 = vweird.f32 %v873
    %vm1293 = vweird.f32 %v1287
    %vm1294 = vmor %vm1292, %vm1293
    %v1295 = vsel %vm1294, %v1287, %v1291
    %v1296 = vand.u32 2147483647, %v873
    %vm1297 = vcmp.eq.f32.partialorder %v1296, 8.507059e+37
    %v1298 = vand.u32 %v873, 2147483648
    %v1299 = vor.u32 1.1754944e-38, %v1298
    %v1300 = vsel %vm1297, %v1299, %v1295
    %v1301 = vmul.f32 %v792, %v1300
    %v1302 = vrcp.pop %v874
    %v1303 = vmul.f32 %v874, %v1302
    %v1304 = vsub.f32 1.0, %v1303
    %v1305 = vmul.f32 %v1302, %v1304
    %v1306 = vadd.f32 %v1302, %v1305
    %vm1307 = vweird.f32 %v874
    %vm1308 = vweird.f32 %v1302
    %vm1309 = vmor %vm1307, %vm1308
    %v1310 = vsel %vm1309, %v1302, %v1306
    %v1311 = vand.u32 2147483647, %v874
    %vm1312 = vcmp.eq.f32.partialorder %v1311, 8.507059e+37
    %v1313 = vand.u32 %v874, 2147483648
    %v1314 = vor.u32 1.1754944e-38, %v1313
    %v1315 = vsel %vm1312, %v1314, %v1310
    %v1316 = vmul.f32 %v799, %v1315
    %v1317 = vrcp.pop %v875
    %v1318 = vmul.f32 %v875, %v1317
    %v1319 = vsub.f32 1.0, %v1318
    %v1320 = vmul.f32 %v1317, %v1319
    %v1321 = vadd.f32 %v1317, %v1320
    %vm1322 = vweird.f32 %v875
    %vm1323 = vweird.f32 %v1317
    %vm1324 = vmor %vm1322, %vm1323
    %v1325 = vsel %vm1324, %v1317, %v1321
    %v1326 = vand.u32 2147483647, %v875
    %vm1327 = vcmp.eq.f32.partialorder %v1326, 8.507059e+37
    %v1328 = vand.u32 %v875, 2147483648
    %v1329 = vor.u32 1.1754944e-38, %v1328
    %v1330 = vsel %vm1327, %v1329, %v1325
    %v1331 = vmul.f32 %v806, %v1330
    %v1332 = vrcp.pop %v876
    %v1333 = vmul.f32 %v876, %v1332
    %v1334 = vsub.f32 1.0, %v1333
    %v1335 = vmul.f32 %v1332, %v1334
    %v1336 = vadd.f32 %v1332, %v1335
    %vm1337 = vweird.f32 %v876
    %vm1338 = vweird.f32 %v1332
    %vm1339 = vmor %vm1337, %vm1338
    %v1340 = vsel %vm1339, %v1332, %v1336
    %v1341 = vand.u32 2147483647, %v876
    %vm1342 = vcmp.eq.f32.partialorder %v1341, 8.507059e+37
    %v1343 = vand.u32 %v876, 2147483648
    %v1344 = vor.u32 1.1754944e-38, %v1343
    %v1345 = vsel %vm1342, %v1344, %v1340
    %v1346 = vmul.f32 %v813, %v1345
    %v1347 = vrcp.pop %v877
    %v1348 = vmul.f32 %v877, %v1347
    %v1349 = vsub.f32 1.0, %v1348
    %v1350 = vmul.f32 %v1347, %v1349
    %v1351 = vadd.f32 %v1347, %v1350
    %vm1352 = vweird.f32 %v877
    %vm1353 = vweird.f32 %v1347
    %vm1354 = vmor %vm1352, %vm1353
    %v1355 = vsel %vm1354, %v1347, %v1351
    %v1356 = vand.u32 2147483647, %v877
    %vm1357 = vcmp.eq.f32.partialorder %v1356, 8.507059e+37
    %v1358 = vand.u32 %v877, 2147483648
    %v1359 = vor.u32 1.1754944e-38, %v1358
    %v1360 = vsel %vm1357, %v1359, %v1355
    %v1361 = vmul.f32 %v820, %v1360
    %v1362 = vrcp.pop %v878
    %v1363 = vmul.f32 %v878, %v1362
    %v1364 = vsub.f32 1.0, %v1363
    %v1365 = vmul.f32 %v1362, %v1364
    %v1366 = vadd.f32 %v1362, %v1365
    %vm1367 = vweird.f32 %v878
    %vm1368 = vweird.f32 %v1362
    %vm1369 = vmor %vm1367, %vm1368
    %v1370 = vsel %vm1369, %v1362, %v1366
    %v1371 = vand.u32 2147483647, %v878
    %vm1372 = vcmp.eq.f32.partialorder %v1371, 8.507059e+37
    %v1373 = vand.u32 %v878, 2147483648
    %v1374 = vor.u32 1.1754944e-38, %v1373
    %v1375 = vsel %vm1372, %v1374, %v1370
    %v1376 = vmul.f32 %v827, %v1375
    %v1377 = vrcp.pop %v879
    %v1378 = vmul.f32 %v879, %v1377
    %v1379 = vsub.f32 1.0, %v1378
    %v1380 = vmul.f32 %v1377, %v1379
    %v1381 = vadd.f32 %v1377, %v1380
    %vm1382 = vweird.f32 %v879
    %vm1383 = vweird.f32 %v1377
    %vm1384 = vmor %vm1382, %vm1383
    %v1385 = vsel %vm1384, %v1377, %v1381
    %v1386 = vand.u32 2147483647, %v879
    %vm1387 = vcmp.eq.f32.partialorder %v1386, 8.507059e+37
    %v1388 = vand.u32 %v879, 2147483648
    %v1389 = vor.u32 1.1754944e-38, %v1388
    %v1390 = vsel %vm1387, %v1389, %v1385
    %v1391 = vmul.f32 %v834, %v1390
    %v1392 = vld [vmem:[#allocation5] sm:$0xff]
    %v1393 = vld [vmem:[#allocation5 + $0x8] sm:$0xff]
    %v1394 = vld [vmem:[#allocation5 + $0x10] sm:$0xff]
    %v1395 = vld [vmem:[#allocation5 + $0x18] sm:$0xff]
    %v1396 = vld [vmem:[#allocation5 + $0x20] sm:$0xff]
    %v1397 = vld [vmem:[#allocation5 + $0x28] sm:$0xff]
    %v1398 = vld [vmem:[#allocation5 + $0x30] sm:$0xff]
    %v1399 = vld [vmem:[#allocation5 + $0x38] sm:$0xff]
    %v1400 = vld [vmem:[#allocation5 + $0x40] sm:$0xff]
    %v1401 = vld [vmem:[#allocation5 + $0x48] sm:$0xff]
    %v1402 = vld [vmem:[#allocation5 + $0x50] sm:$0xff]
    %v1403 = vld [vmem:[#allocation5 + $0x58] sm:$0xff]
    %v1404 = vld [vmem:[#allocation5 + $0x60] sm:$0xff]
    %v1405 = vld [vmem:[#allocation5 + $0x68] sm:$0xff]
    %v1406 = vld [vmem:[#allocation5 + $0x70] sm:$0xff]
    %v1407 = vld [vmem:[#allocation5 + $0x78] sm:$0xff]
    %v1408 = vld [vmem:[#allocation5 + $0x80] sm:$0xff]
    %v1409 = vld [vmem:[#allocation5 + $0x88] sm:$0xff]
    %v1410 = vld [vmem:[#allocation5 + $0x90] sm:$0xff]
    %v1411 = vld [vmem:[#allocation5 + $0x98] sm:$0xff]
    %v1412 = vld [vmem:[#allocation5 + $0xa0] sm:$0xff]
    %v1413 = vld [vmem:[#allocation5 + $0xa8] sm:$0xff]
    %v1414 = vld [vmem:[#allocation5 + $0xb0] sm:$0xff]
    %v1415 = vld [vmem:[#allocation5 + $0xb8] sm:$0xff]
    %v1416 = vld [vmem:[#allocation5 + $0xc0] sm:$0xff]
    %v1417 = vld [vmem:[#allocation5 + $0xc8] sm:$0xff]
    %v1418 = vld [vmem:[#allocation5 + $0xd0] sm:$0xff]
    %v1419 = vld [vmem:[#allocation5 + $0xd8] sm:$0xff]
    %v1420 = vld [vmem:[#allocation5 + $0xe0] sm:$0xff]
    %v1421 = vld [vmem:[#allocation5 + $0xe8] sm:$0xff]
    %v1422 = vld [vmem:[#allocation5 + $0xf0] sm:$0xff]
    %v1423 = vld [vmem:[#allocation5 + $0xf8] sm:$0xff]
    %v1424 = vld [vmem:[#allocation5 + $0x100] sm:$0xff]
    %v1425 = vld [vmem:[#allocation5 + $0x108] sm:$0xff]
    %v1426 = vld [vmem:[#allocation5 + $0x110] sm:$0xff]
    %v1427 = vld [vmem:[#allocation5 + $0x118] sm:$0xff]
    %v1428 = vld [vmem:[#allocation5 + $0x120] sm:$0xff]
    %v1429 = vld [vmem:[#allocation5 + $0x128] sm:$0xff]
    %v1430 = vld [vmem:[#allocation5 + $0x130] sm:$0xff]
    %v1431 = vld [vmem:[#allocation5 + $0x138] sm:$0xff]
    %v1432 = vld [vmem:[#allocation5 + $0x140] sm:$0xff]
    %v1433 = vld [vmem:[#allocation5 + $0x148] sm:$0xff]
    %v1434 = vld [vmem:[#allocation5 + $0x150] sm:$0xff]
    %v1435 = vld [vmem:[#allocation5 + $0x158] sm:$0xff]
    %v1436 = vld [vmem:[#allocation5 + $0x160] sm:$0xff]
    %v1437 = vld [vmem:[#allocation5 + $0x168] sm:$0xff]
    %v1438 = vld [vmem:[#allocation5 + $0x170] sm:$0xff]
    %v1439 = vld [vmem:[#allocation5 + $0x178] sm:$0xff]
    %v1440 = vld [vmem:[#allocation5 + $0x180] sm:$0xff]
    %v1441 = vld [vmem:[#allocation5 + $0x188] sm:$0xff]
    %v1442 = vld [vmem:[#allocation5 + $0x190] sm:$0xff]
    %v1443 = vld [vmem:[#allocation5 + $0x198] sm:$0xff]
    %v1444 = vld [vmem:[#allocation5 + $0x1a0] sm:$0xff]
    %v1445 = vld [vmem:[#allocation5 + $0x1a8] sm:$0xff]
    %v1446 = vld [vmem:[#allocation5 + $0x1b0] sm:$0xff]
    %v1447 = vld [vmem:[#allocation5 + $0x1b8] sm:$0xff]
    %v1448 = vld [vmem:[#allocation5 + $0x1c0] sm:$0xff]
    %v1449 = vld [vmem:[#allocation5 + $0x1c8] sm:$0xff]
    %v1450 = vld [vmem:[#allocation5 + $0x1d0] sm:$0xff]
    %v1451 = vld [vmem:[#allocation5 + $0x1d8] sm:$0xff]
    %v1452 = vld [vmem:[#allocation5 + $0x1e0] sm:$0xff]
    %v1453 = vld [vmem:[#allocation5 + $0x1e8] sm:$0xff]
    %v1454 = vld [vmem:[#allocation5 + $0x1f0] sm:$0xff]
    %v1455 = vld [vmem:[#allocation5 + $0x1f8] sm:$0xff]
    %v1456 = vld [vmem:[%s3] sm:$0xff]
    %v1457 = vld [vmem:[%s3 + $0x8] sm:$0xff]
    %v1458 = vld [vmem:[%s3 + $0x10] sm:$0xff]
    %v1459 = vld [vmem:[%s3 + $0x18] sm:$0xff]
    %v1460 = vperm.slane %v1456, 0
    %v1461 = vlaneseq
    %v1462 = vshrl.u32 %v1461, 7
    %1464 = vset.pattern.permute.xlu0 %v1462
    %1465 = vperm.xlu0 %1464, %v1460
    %v1466 = vpop.permute.xlu0 %1465
    %v1467 = vlaneseq
    %v1468 = vshrl.u32 %v1467, 7
    %v1469 = vadd.s32 %v1468, 8
    %1470 = vset.pattern.permute.xlu0 %v1469
    %1471 = vperm.xlu0 %1470, %v1460
    %v1472 = vpop.permute.xlu0 %1471
    %v1473 = vperm.slane %v1456, 1
    %v1474 = vlaneseq
    %v1475 = vshrl.u32 %v1474, 7
    %1477 = vset.pattern.permute.xlu0 %v1475
    %1478 = vperm.xlu0 %1477, %v1473
    %v1479 = vpop.permute.xlu0 %1478
    %v1480 = vlaneseq
    %v1481 = vshrl.u32 %v1480, 7
    %v1482 = vadd.s32 %v1481, 8
    %1483 = vset.pattern.permute.xlu0 %v1482
    %1484 = vperm.xlu0 %1483, %v1473
    %v1485 = vpop.permute.xlu0 %1484
    %v1486 = vperm.slane %v1456, 2
    %v1487 = vlaneseq
    %v1488 = vshrl.u32 %v1487, 7
    %1490 = vset.pattern.permute.xlu0 %v1488
    %1491 = vperm.xlu0 %1490, %v1486
    %v1492 = vpop.permute.xlu0 %1491
    %v1493 = vlaneseq
    %v1494 = vshrl.u32 %v1493, 7
    %v1495 = vadd.s32 %v1494, 8
    %1496 = vset.pattern.permute.xlu0 %v1495
    %1497 = vperm.xlu0 %1496, %v1486
    %v1498 = vpop.permute.xlu0 %1497
    %v1499 = vperm.slane %v1456, 3
    %v1500 = vlaneseq
    %v1501 = vshrl.u32 %v1500, 7
    %1503 = vset.pattern.permute.xlu0 %v1501
    %1504 = vperm.xlu0 %1503, %v1499
    %v1505 = vpop.permute.xlu0 %1504
    %v1506 = vlaneseq
    %v1507 = vshrl.u32 %v1506, 7
    %v1508 = vadd.s32 %v1507, 8
    %1509 = vset.pattern.permute.xlu0 %v1508
    %1510 = vperm.xlu0 %1509, %v1499
    %v1511 = vpop.permute.xlu0 %1510
    %v1512 = vperm.slane %v1456, 4
    %v1513 = vlaneseq
    %v1514 = vshrl.u32 %v1513, 7
    %1516 = vset.pattern.permute.xlu0 %v1514
    %1517 = vperm.xlu0 %1516, %v1512
    %v1518 = vpop.permute.xlu0 %1517
    %v1519 = vlaneseq
    %v1520 = vshrl.u32 %v1519, 7
    %v1521 = vadd.s32 %v1520, 8
    %1522 = vset.pattern.permute.xlu0 %v1521
    %1523 = vperm.xlu0 %1522, %v1512
    %v1524 = vpop.permute.xlu0 %1523
    %v1525 = vperm.slane %v1456, 5
    %v1526 = vlaneseq
    %v1527 = vshrl.u32 %v1526, 7
    %1529 = vset.pattern.permute.xlu0 %v1527
    %1530 = vperm.xlu0 %1529, %v1525
    %v1531 = vpop.permute.xlu0 %1530
    %v1532 = vlaneseq
    %v1533 = vshrl.u32 %v1532, 7
    %v1534 = vadd.s32 %v1533, 8
    %1535 = vset.pattern.permute.xlu0 %v1534
    %1536 = vperm.xlu0 %1535, %v1525
    %v1537 = vpop.permute.xlu0 %1536
    %v1538 = vperm.slane %v1456, 6
    %v1539 = vlaneseq
    %v1540 = vshrl.u32 %v1539, 7
    %1542 = vset.pattern.permute.xlu0 %v1540
    %1543 = vperm.xlu0 %1542, %v1538
    %v1544 = vpop.permute.xlu0 %1543
    %v1545 = vlaneseq
    %v1546 = vshrl.u32 %v1545, 7
    %v1547 = vadd.s32 %v1546, 8
    %1548 = vset.pattern.permute.xlu0 %v1547
    %1549 = vperm.xlu0 %1548, %v1538
    %v1550 = vpop.permute.xlu0 %1549
    %v1551 = vperm.slane %v1456, 7
    %v1552 = vlaneseq
    %v1553 = vshrl.u32 %v1552, 7
    %1555 = vset.pattern.permute.xlu0 %v1553
    %1556 = vperm.xlu0 %1555, %v1551
    %v1557 = vpop.permute.xlu0 %1556
    %v1558 = vlaneseq
    %v1559 = vshrl.u32 %v1558, 7
    %v1560 = vadd.s32 %v1559, 8
    %1561 = vset.pattern.permute.xlu0 %v1560
    %1562 = vperm.xlu0 %1561, %v1551
    %v1563 = vpop.permute.xlu0 %1562
    %v1564 = vperm.slane %v1457, 0
    %v1565 = vlaneseq
    %v1566 = vshrl.u32 %v1565, 7
    %1568 = vset.pattern.permute.xlu0 %v1566
    %1569 = vperm.xlu0 %1568, %v1564
    %v1570 = vpop.permute.xlu0 %1569
    %v1571 = vlaneseq
    %v1572 = vshrl.u32 %v1571, 7
    %v1573 = vadd.s32 %v1572, 8
    %1574 = vset.pattern.permute.xlu0 %v1573
    %1575 = vperm.xlu0 %1574, %v1564
    %v1576 = vpop.permute.xlu0 %1575
    %v1577 = vperm.slane %v1457, 1
    %v1578 = vlaneseq
    %v1579 = vshrl.u32 %v1578, 7
    %1581 = vset.pattern.permute.xlu0 %v1579
    %1582 = vperm.xlu0 %1581, %v1577
    %v1583 = vpop.permute.xlu0 %1582
    %v1584 = vlaneseq
    %v1585 = vshrl.u32 %v1584, 7
    %v1586 = vadd.s32 %v1585, 8
    %1587 = vset.pattern.permute.xlu0 %v1586
    %1588 = vperm.xlu0 %1587, %v1577
    %v1589 = vpop.permute.xlu0 %1588
    %v1590 = vperm.slane %v1457, 2
    %v1591 = vlaneseq
    %v1592 = vshrl.u32 %v1591, 7
    %1594 = vset.pattern.permute.xlu0 %v1592
    %1595 = vperm.xlu0 %1594, %v1590
    %v1596 = vpop.permute.xlu0 %1595
    %v1597 = vlaneseq
    %v1598 = vshrl.u32 %v1597, 7
    %v1599 = vadd.s32 %v1598, 8
    %1600 = vset.pattern.permute.xlu0 %v1599
    %1601 = vperm.xlu0 %1600, %v1590
    %v1602 = vpop.permute.xlu0 %1601
    %v1603 = vperm.slane %v1457, 3
    %v1604 = vlaneseq
    %v1605 = vshrl.u32 %v1604, 7
    %1607 = vset.pattern.permute.xlu0 %v1605
    %1608 = vperm.xlu0 %1607, %v1603
    %v1609 = vpop.permute.xlu0 %1608
    %v1610 = vlaneseq
    %v1611 = vshrl.u32 %v1610, 7
    %v1612 = vadd.s32 %v1611, 8
    %1613 = vset.pattern.permute.xlu0 %v1612
    %1614 = vperm.xlu0 %1613, %v1603
    %v1615 = vpop.permute.xlu0 %1614
    %v1616 = vperm.slane %v1457, 4
    %v1617 = vlaneseq
    %v1618 = vshrl.u32 %v1617, 7
    %1620 = vset.pattern.permute.xlu0 %v1618
    %1621 = vperm.xlu0 %1620, %v1616
    %v1622 = vpop.permute.xlu0 %1621
    %v1623 = vlaneseq
    %v1624 = vshrl.u32 %v1623, 7
    %v1625 = vadd.s32 %v1624, 8
    %1626 = vset.pattern.permute.xlu0 %v1625
    %1627 = vperm.xlu0 %1626, %v1616
    %v1628 = vpop.permute.xlu0 %1627
    %v1629 = vperm.slane %v1457, 5
    %v1630 = vlaneseq
    %v1631 = vshrl.u32 %v1630, 7
    %1633 = vset.pattern.permute.xlu0 %v1631
    %1634 = vperm.xlu0 %1633, %v1629
    %v1635 = vpop.permute.xlu0 %1634
    %v1636 = vlaneseq
    %v1637 = vshrl.u32 %v1636, 7
    %v1638 = vadd.s32 %v1637, 8
    %1639 = vset.pattern.permute.xlu0 %v1638
    %1640 = vperm.xlu0 %1639, %v1629
    %v1641 = vpop.permute.xlu0 %1640
    %v1642 = vperm.slane %v1457, 6
    %v1643 = vlaneseq
    %v1644 = vshrl.u32 %v1643, 7
    %1646 = vset.pattern.permute.xlu0 %v1644
    %1647 = vperm.xlu0 %1646, %v1642
    %v1648 = vpop.permute.xlu0 %1647
    %v1649 = vlaneseq
    %v1650 = vshrl.u32 %v1649, 7
    %v1651 = vadd.s32 %v1650, 8
    %1652 = vset.pattern.permute.xlu0 %v1651
    %1653 = vperm.xlu0 %1652, %v1642
    %v1654 = vpop.permute.xlu0 %1653
    %v1655 = vperm.slane %v1457, 7
    %v1656 = vlaneseq
    %v1657 = vshrl.u32 %v1656, 7
    %1659 = vset.pattern.permute.xlu0 %v1657
    %1660 = vperm.xlu0 %1659, %v1655
    %v1661 = vpop.permute.xlu0 %1660
    %v1662 = vlaneseq
    %v1663 = vshrl.u32 %v1662, 7
    %v1664 = vadd.s32 %v1663, 8
    %1665 = vset.pattern.permute.xlu0 %v1664
    %1666 = vperm.xlu0 %1665, %v1655
    %v1667 = vpop.permute.xlu0 %1666
    %v1668 = vperm.slane %v1458, 0
    %v1669 = vlaneseq
    %v1670 = vshrl.u32 %v1669, 7
    %1672 = vset.pattern.permute.xlu0 %v1670
    %1673 = vperm.xlu0 %1672, %v1668
    %v1674 = vpop.permute.xlu0 %1673
    %v1675 = vlaneseq
    %v1676 = vshrl.u32 %v1675, 7
    %v1677 = vadd.s32 %v1676, 8
    %1678 = vset.pattern.permute.xlu0 %v1677
    %1679 = vperm.xlu0 %1678, %v1668
    %v1680 = vpop.permute.xlu0 %1679
    %v1681 = vperm.slane %v1458, 1
    %v1682 = vlaneseq
    %v1683 = vshrl.u32 %v1682, 7
    %1685 = vset.pattern.permute.xlu0 %v1683
    %1686 = vperm.xlu0 %1685, %v1681
    %v1687 = vpop.permute.xlu0 %1686
    %v1688 = vlaneseq
    %v1689 = vshrl.u32 %v1688, 7
    %v1690 = vadd.s32 %v1689, 8
    %1691 = vset.pattern.permute.xlu0 %v1690
    %1692 = vperm.xlu0 %1691, %v1681
    %v1693 = vpop.permute.xlu0 %1692
    %v1694 = vperm.slane %v1458, 2
    %v1695 = vlaneseq
    %v1696 = vshrl.u32 %v1695, 7
    %1698 = vset.pattern.permute.xlu0 %v1696
    %1699 = vperm.xlu0 %1698, %v1694
    %v1700 = vpop.permute.xlu0 %1699
    %v1701 = vlaneseq
    %v1702 = vshrl.u32 %v1701, 7
    %v1703 = vadd.s32 %v1702, 8
    %1704 = vset.pattern.permute.xlu0 %v1703
    %1705 = vperm.xlu0 %1704, %v1694
    %v1706 = vpop.permute.xlu0 %1705
    %v1707 = vperm.slane %v1458, 3
    %v1708 = vlaneseq
    %v1709 = vshrl.u32 %v1708, 7
    %1711 = vset.pattern.permute.xlu0 %v1709
    %1712 = vperm.xlu0 %1711, %v1707
    %v1713 = vpop.permute.xlu0 %1712
    %v1714 = vlaneseq
    %v1715 = vshrl.u32 %v1714, 7
    %v1716 = vadd.s32 %v1715, 8
    %1717 = vset.pattern.permute.xlu0 %v1716
    %1718 = vperm.xlu0 %1717, %v1707
    %v1719 = vpop.permute.xlu0 %1718
    %v1720 = vperm.slane %v1458, 4
    %v1721 = vlaneseq
    %v1722 = vshrl.u32 %v1721, 7
    %1724 = vset.pattern.permute.xlu0 %v1722
    %1725 = vperm.xlu0 %1724, %v1720
    %v1726 = vpop.permute.xlu0 %1725
    %v1727 = vlaneseq
    %v1728 = vshrl.u32 %v1727, 7
    %v1729 = vadd.s32 %v1728, 8
    %1730 = vset.pattern.permute.xlu0 %v1729
    %1731 = vperm.xlu0 %1730, %v1720
    %v1732 = vpop.permute.xlu0 %1731
    %v1733 = vperm.slane %v1458, 5
    %v1734 = vlaneseq
    %v1735 = vshrl.u32 %v1734, 7
    %1737 = vset.pattern.permute.xlu0 %v1735
    %1738 = vperm.xlu0 %1737, %v1733
    %v1739 = vpop.permute.xlu0 %1738
    %v1740 = vlaneseq
    %v1741 = vshrl.u32 %v1740, 7
    %v1742 = vadd.s32 %v1741, 8
    %1743 = vset.pattern.permute.xlu0 %v1742
    %1744 = vperm.xlu0 %1743, %v1733
    %v1745 = vpop.permute.xlu0 %1744
    %v1746 = vperm.slane %v1458, 6
    %v1747 = vlaneseq
    %v1748 = vshrl.u32 %v1747, 7
    %1750 = vset.pattern.permute.xlu0 %v1748
    %1751 = vperm.xlu0 %1750, %v1746
    %v1752 = vpop.permute.xlu0 %1751
    %v1753 = vlaneseq
    %v1754 = vshrl.u32 %v1753, 7
    %v1755 = vadd.s32 %v1754, 8
    %1756 = vset.pattern.permute.xlu0 %v1755
    %1757 = vperm.xlu0 %1756, %v1746
    %v1758 = vpop.permute.xlu0 %1757
    %v1759 = vperm.slane %v1458, 7
    %v1760 = vlaneseq
    %v1761 = vshrl.u32 %v1760, 7
    %1763 = vset.pattern.permute.xlu0 %v1761
    %1764 = vperm.xlu0 %1763, %v1759
    %v1765 = vpop.permute.xlu0 %1764
    %v1766 = vlaneseq
    %v1767 = vshrl.u32 %v1766, 7
    %v1768 = vadd.s32 %v1767, 8
    %1769 = vset.pattern.permute.xlu0 %v1768
    %1770 = vperm.xlu0 %1769, %v1759
    %v1771 = vpop.permute.xlu0 %1770
    %v1772 = vperm.slane %v1459, 0
    %v1773 = vlaneseq
    %v1774 = vshrl.u32 %v1773, 7
    %1776 = vset.pattern.permute.xlu0 %v1774
    %1777 = vperm.xlu0 %1776, %v1772
    %v1778 = vpop.permute.xlu0 %1777
    %v1779 = vlaneseq
    %v1780 = vshrl.u32 %v1779, 7
    %v1781 = vadd.s32 %v1780, 8
    %1782 = vset.pattern.permute.xlu0 %v1781
    %1783 = vperm.xlu0 %1782, %v1772
    %v1784 = vpop.permute.xlu0 %1783
    %v1785 = vperm.slane %v1459, 1
    %v1786 = vlaneseq
    %v1787 = vshrl.u32 %v1786, 7
    %1789 = vset.pattern.permute.xlu0 %v1787
    %1790 = vperm.xlu0 %1789, %v1785
    %v1791 = vpop.permute.xlu0 %1790
    %v1792 = vlaneseq
    %v1793 = vshrl.u32 %v1792, 7
    %v1794 = vadd.s32 %v1793, 8
    %1795 = vset.pattern.permute.xlu0 %v1794
    %1796 = vperm.xlu0 %1795, %v1785
    %v1797 = vpop.permute.xlu0 %1796
    %v1798 = vperm.slane %v1459, 2
    %v1799 = vlaneseq
    %v1800 = vshrl.u32 %v1799, 7
    %1802 = vset.pattern.permute.xlu0 %v1800
    %1803 = vperm.xlu0 %1802, %v1798
    %v1804 = vpop.permute.xlu0 %1803
    %v1805 = vlaneseq
    %v1806 = vshrl.u32 %v1805, 7
    %v1807 = vadd.s32 %v1806, 8
    %1808 = vset.pattern.permute.xlu0 %v1807
    %1809 = vperm.xlu0 %1808, %v1798
    %v1810 = vpop.permute.xlu0 %1809
    %v1811 = vperm.slane %v1459, 3
    %v1812 = vlaneseq
    %v1813 = vshrl.u32 %v1812, 7
    %1815 = vset.pattern.permute.xlu0 %v1813
    %1816 = vperm.xlu0 %1815, %v1811
    %v1817 = vpop.permute.xlu0 %1816
    %v1818 = vlaneseq
    %v1819 = vshrl.u32 %v1818, 7
    %v1820 = vadd.s32 %v1819, 8
    %1821 = vset.pattern.permute.xlu0 %v1820
    %1822 = vperm.xlu0 %1821, %v1811
    %v1823 = vpop.permute.xlu0 %1822
    %v1824 = vperm.slane %v1459, 4
    %v1825 = vlaneseq
    %v1826 = vshrl.u32 %v1825, 7
    %1828 = vset.pattern.permute.xlu0 %v1826
    %1829 = vperm.xlu0 %1828, %v1824
    %v1830 = vpop.permute.xlu0 %1829
    %v1831 = vlaneseq
    %v1832 = vshrl.u32 %v1831, 7
    %v1833 = vadd.s32 %v1832, 8
    %1834 = vset.pattern.permute.xlu0 %v1833
    %1835 = vperm.xlu0 %1834, %v1824
    %v1836 = vpop.permute.xlu0 %1835
    %v1837 = vperm.slane %v1459, 5
    %v1838 = vlaneseq
    %v1839 = vshrl.u32 %v1838, 7
    %1841 = vset.pattern.permute.xlu0 %v1839
    %1842 = vperm.xlu0 %1841, %v1837
    %v1843 = vpop.permute.xlu0 %1842
    %v1844 = vlaneseq
    %v1845 = vshrl.u32 %v1844, 7
    %v1846 = vadd.s32 %v1845, 8
    %1847 = vset.pattern.permute.xlu0 %v1846
    %1848 = vperm.xlu0 %1847, %v1837
    %v1849 = vpop.permute.xlu0 %1848
    %v1850 = vperm.slane %v1459, 6
    %v1851 = vlaneseq
    %v1852 = vshrl.u32 %v1851, 7
    %1854 = vset.pattern.permute.xlu0 %v1852
    %1855 = vperm.xlu0 %1854, %v1850
    %v1856 = vpop.permute.xlu0 %1855
    %v1857 = vlaneseq
    %v1858 = vshrl.u32 %v1857, 7
    %v1859 = vadd.s32 %v1858, 8
    %1860 = vset.pattern.permute.xlu0 %v1859
    %1861 = vperm.xlu0 %1860, %v1850
    %v1862 = vpop.permute.xlu0 %1861
    %v1863 = vperm.slane %v1459, 7
    %v1864 = vlaneseq
    %v1865 = vshrl.u32 %v1864, 7
    %1867 = vset.pattern.permute.xlu0 %v1865
    %1868 = vperm.xlu0 %1867, %v1863
    %v1869 = vpop.permute.xlu0 %1868
    %v1870 = vlaneseq
    %v1871 = vshrl.u32 %v1870, 7
    %v1872 = vadd.s32 %v1871, 8
    %1873 = vset.pattern.permute.xlu0 %v1872
    %1874 = vperm.xlu0 %1873, %v1863
    %v1875 = vpop.permute.xlu0 %1874
    %v1876 = vmul.f32 %v1392, %v1466
    %v1877 = vmul.f32 %v1393, %v1472
    %v1878 = vmul.f32 %v1394, %v1479
    %v1879 = vmul.f32 %v1395, %v1485
    %v1880 = vmul.f32 %v1396, %v1492
    %v1881 = vmul.f32 %v1397, %v1498
    %v1882 = vmul.f32 %v1398, %v1505
    %v1883 = vmul.f32 %v1399, %v1511
    %v1884 = vmul.f32 %v1400, %v1518
    %v1885 = vmul.f32 %v1401, %v1524
    %v1886 = vmul.f32 %v1402, %v1531
    %v1887 = vmul.f32 %v1403, %v1537
    %v1888 = vmul.f32 %v1404, %v1544
    %v1889 = vmul.f32 %v1405, %v1550
    %v1890 = vmul.f32 %v1406, %v1557
    %v1891 = vmul.f32 %v1407, %v1563
    %v1892 = vmul.f32 %v1408, %v1570
    %v1893 = vmul.f32 %v1409, %v1576
    %v1894 = vmul.f32 %v1410, %v1583
    %v1895 = vmul.f32 %v1411, %v1589
    %v1896 = vmul.f32 %v1412, %v1596
    %v1897 = vmul.f32 %v1413, %v1602
    %v1898 = vmul.f32 %v1414, %v1609
    %v1899 = vmul.f32 %v1415, %v1615
    %v1900 = vmul.f32 %v1416, %v1622
    %v1901 = vmul.f32 %v1417, %v1628
    %v1902 = vmul.f32 %v1418, %v1635
    %v1903 = vmul.f32 %v1419, %v1641
    %v1904 = vmul.f32 %v1420, %v1648
    %v1905 = vmul.f32 %v1421, %v1654
    %v1906 = vmul.f32 %v1422, %v1661
    %v1907 = vmul.f32 %v1423, %v1667
    %v1908 = vmul.f32 %v1424, %v1674
    %v1909 = vmul.f32 %v1425, %v1680
    %v1910 = vmul.f32 %v1426, %v1687
    %v1911 = vmul.f32 %v1427, %v1693
    %v1912 = vmul.f32 %v1428, %v1700
    %v1913 = vmul.f32 %v1429, %v1706
    %v1914 = vmul.f32 %v1430, %v1713
    %v1915 = vmul.f32 %v1431, %v1719
    %v1916 = vmul.f32 %v1432, %v1726
    %v1917 = vmul.f32 %v1433, %v1732
    %v1918 = vmul.f32 %v1434, %v1739
    %v1919 = vmul.f32 %v1435, %v1745
    %v1920 = vmul.f32 %v1436, %v1752
    %v1921 = vmul.f32 %v1437, %v1758
    %v1922 = vmul.f32 %v1438, %v1765
    %v1923 = vmul.f32 %v1439, %v1771
    %v1924 = vmul.f32 %v1440, %v1778
    %v1925 = vmul.f32 %v1441, %v1784
    %v1926 = vmul.f32 %v1442, %v1791
    %v1927 = vmul.f32 %v1443, %v1797
    %v1928 = vmul.f32 %v1444, %v1804
    %v1929 = vmul.f32 %v1445, %v1810
    %v1930 = vmul.f32 %v1446, %v1817
    %v1931 = vmul.f32 %v1447, %v1823
    %v1932 = vmul.f32 %v1448, %v1830
    %v1933 = vmul.f32 %v1449, %v1836
    %v1934 = vmul.f32 %v1450, %v1843
    %v1935 = vmul.f32 %v1451, %v1849
    %v1936 = vmul.f32 %v1452, %v1856
    %v1937 = vmul.f32 %v1453, %v1862
    %v1938 = vmul.f32 %v1454, %v1869
    %v1939 = vmul.f32 %v1455, %v1875
    %v1940 = vadd.f32 %v1876, %v1877
    %v1941 = vrot.slane %v1940, 4
    %v1942 = vadd.f32 %v1940, %v1941
    %v1943 = vrot.slane %v1942, 2
    %v1944 = vadd.f32 %v1942, %v1943
    %v1945 = vrot.slane %v1944, 1
    %v1946 = vadd.f32 %v1944, %v1945
    %v1947 = vadd.f32 %v1878, %v1879
    %v1948 = vrot.slane %v1947, 4
    %v1949 = vadd.f32 %v1947, %v1948
    %v1950 = vrot.slane %v1949, 2
    %v1951 = vadd.f32 %v1949, %v1950
    %v1952 = vrot.slane %v1951, 1
    %v1953 = vadd.f32 %v1951, %v1952
    %v1954 = vadd.f32 %v1880, %v1881
    %v1955 = vrot.slane %v1954, 4
    %v1956 = vadd.f32 %v1954, %v1955
    %v1957 = vrot.slane %v1956, 2
    %v1958 = vadd.f32 %v1956, %v1957
    %v1959 = vrot.slane %v1958, 1
    %v1960 = vadd.f32 %v1958, %v1959
    %v1961 = vadd.f32 %v1882, %v1883
    %v1962 = vrot.slane %v1961, 4
    %v1963 = vadd.f32 %v1961, %v1962
    %v1964 = vrot.slane %v1963, 2
    %v1965 = vadd.f32 %v1963, %v1964
    %v1966 = vrot.slane %v1965, 1
    %v1967 = vadd.f32 %v1965, %v1966
    %v1968 = vadd.f32 %v1884, %v1885
    %v1969 = vrot.slane %v1968, 4
    %v1970 = vadd.f32 %v1968, %v1969
    %v1971 = vrot.slane %v1970, 2
    %v1972 = vadd.f32 %v1970, %v1971
    %v1973 = vrot.slane %v1972, 1
    %v1974 = vadd.f32 %v1972, %v1973
    %v1975 = vadd.f32 %v1886, %v1887
    %v1976 = vrot.slane %v1975, 4
    %v1977 = vadd.f32 %v1975, %v1976
    %v1978 = vrot.slane %v1977, 2
    %v1979 = vadd.f32 %v1977, %v1978
    %v1980 = vrot.slane %v1979, 1
    %v1981 = vadd.f32 %v1979, %v1980
    %v1982 = vadd.f32 %v1888, %v1889
    %v1983 = vrot.slane %v1982, 4
    %v1984 = vadd.f32 %v1982, %v1983
    %v1985 = vrot.slane %v1984, 2
    %v1986 = vadd.f32 %v1984, %v1985
    %v1987 = vrot.slane %v1986, 1
    %v1988 = vadd.f32 %v1986, %v1987
    %v1989 = vadd.f32 %v1890, %v1891
    %v1990 = vrot.slane %v1989, 4
    %v1991 = vadd.f32 %v1989, %v1990
    %v1992 = vrot.slane %v1991, 2
    %v1993 = vadd.f32 %v1991, %v1992
    %v1994 = vrot.slane %v1993, 1
    %v1995 = vadd.f32 %v1993, %v1994
    %v1996 = vadd.f32 %v1892, %v1893
    %v1997 = vrot.slane %v1996, 4
    %v1998 = vadd.f32 %v1996, %v1997
    %v1999 = vrot.slane %v1998, 2
    %v2000 = vadd.f32 %v1998, %v1999
    %v2001 = vrot.slane %v2000, 1
    %v2002 = vadd.f32 %v2000, %v2001
    %v2003 = vadd.f32 %v1894, %v1895
    %v2004 = vrot.slane %v2003, 4
    %v2005 = vadd.f32 %v2003, %v2004
    %v2006 = vrot.slane %v2005, 2
    %v2007 = vadd.f32 %v2005, %v2006
    %v2008 = vrot.slane %v2007, 1
    %v2009 = vadd.f32 %v2007, %v2008
    %v2010 = vadd.f32 %v1896, %v1897
    %v2011 = vrot.slane %v2010, 4
    %v2012 = vadd.f32 %v2010, %v2011
    %v2013 = vrot.slane %v2012, 2
    %v2014 = vadd.f32 %v2012, %v2013
    %v2015 = vrot.slane %v2014, 1
    %v2016 = vadd.f32 %v2014, %v2015
    %v2017 = vadd.f32 %v1898, %v1899
    %v2018 = vrot.slane %v2017, 4
    %v2019 = vadd.f32 %v2017, %v2018
    %v2020 = vrot.slane %v2019, 2
    %v2021 = vadd.f32 %v2019, %v2020
    %v2022 = vrot.slane %v2021, 1
    %v2023 = vadd.f32 %v2021, %v2022
    %v2024 = vadd.f32 %v1900, %v1901
    %v2025 = vrot.slane %v2024, 4
    %v2026 = vadd.f32 %v2024, %v2025
    %v2027 = vrot.slane %v2026, 2
    %v2028 = vadd.f32 %v2026, %v2027
    %v2029 = vrot.slane %v2028, 1
    %v2030 = vadd.f32 %v2028, %v2029
    %v2031 = vadd.f32 %v1902, %v1903
    %v2032 = vrot.slane %v2031, 4
    %v2033 = vadd.f32 %v2031, %v2032
    %v2034 = vrot.slane %v2033, 2
    %v2035 = vadd.f32 %v2033, %v2034
    %v2036 = vrot.slane %v2035, 1
    %v2037 = vadd.f32 %v2035, %v2036
    %v2038 = vadd.f32 %v1904, %v1905
    %v2039 = vrot.slane %v2038, 4
    %v2040 = vadd.f32 %v2038, %v2039
    %v2041 = vrot.slane %v2040, 2
    %v2042 = vadd.f32 %v2040, %v2041
    %v2043 = vrot.slane %v2042, 1
    %v2044 = vadd.f32 %v2042, %v2043
    %v2045 = vadd.f32 %v1906, %v1907
    %v2046 = vrot.slane %v2045, 4
    %v2047 = vadd.f32 %v2045, %v2046
    %v2048 = vrot.slane %v2047, 2
    %v2049 = vadd.f32 %v2047, %v2048
    %v2050 = vrot.slane %v2049, 1
    %v2051 = vadd.f32 %v2049, %v2050
    %v2052 = vadd.f32 %v1908, %v1909
    %v2053 = vrot.slane %v2052, 4
    %v2054 = vadd.f32 %v2052, %v2053
    %v2055 = vrot.slane %v2054, 2
    %v2056 = vadd.f32 %v2054, %v2055
    %v2057 = vrot.slane %v2056, 1
    %v2058 = vadd.f32 %v2056, %v2057
    %v2059 = vadd.f32 %v1910, %v1911
    %v2060 = vrot.slane %v2059, 4
    %v2061 = vadd.f32 %v2059, %v2060
    %v2062 = vrot.slane %v2061, 2
    %v2063 = vadd.f32 %v2061, %v2062
    %v2064 = vrot.slane %v2063, 1
    %v2065 = vadd.f32 %v2063, %v2064
    %v2066 = vadd.f32 %v1912, %v1913
    %v2067 = vrot.slane %v2066, 4
    %v2068 = vadd.f32 %v2066, %v2067
    %v2069 = vrot.slane %v2068, 2
    %v2070 = vadd.f32 %v2068, %v2069
    %v2071 = vrot.slane %v2070, 1
    %v2072 = vadd.f32 %v2070, %v2071
    %v2073 = vadd.f32 %v1914, %v1915
    %v2074 = vrot.slane %v2073, 4
    %v2075 = vadd.f32 %v2073, %v2074
    %v2076 = vrot.slane %v2075, 2
    %v2077 = vadd.f32 %v2075, %v2076
    %v2078 = vrot.slane %v2077, 1
    %v2079 = vadd.f32 %v2077, %v2078
    %v2080 = vadd.f32 %v1916, %v1917
    %v2081 = vrot.slane %v2080, 4
    %v2082 = vadd.f32 %v2080, %v2081
    %v2083 = vrot.slane %v2082, 2
    %v2084 = vadd.f32 %v2082, %v2083
    %v2085 = vrot.slane %v2084, 1
    %v2086 = vadd.f32 %v2084, %v2085
    %v2087 = vadd.f32 %v1918, %v1919
    %v2088 = vrot.slane %v2087, 4
    %v2089 = vadd.f32 %v2087, %v2088
    %v2090 = vrot.slane %v2089, 2
    %v2091 = vadd.f32 %v2089, %v2090
    %v2092 = vrot.slane %v2091, 1
    %v2093 = vadd.f32 %v2091, %v2092
    %v2094 = vadd.f32 %v1920, %v1921
    %v2095 = vrot.slane %v2094, 4
    %v2096 = vadd.f32 %v2094, %v2095
    %v2097 = vrot.slane %v2096, 2
    %v2098 = vadd.f32 %v2096, %v2097
    %v2099 = vrot.slane %v2098, 1
    %v2100 = vadd.f32 %v2098, %v2099
    %v2101 = vadd.f32 %v1922, %v1923
    %v2102 = vrot.slane %v2101, 4
    %v2103 = vadd.f32 %v2101, %v2102
    %v2104 = vrot.slane %v2103, 2
    %v2105 = vadd.f32 %v2103, %v2104
    %v2106 = vrot.slane %v2105, 1
    %v2107 = vadd.f32 %v2105, %v2106
    %v2108 = vadd.f32 %v1924, %v1925
    %v2109 = vrot.slane %v2108, 4
    %v2110 = vadd.f32 %v2108, %v2109
    %v2111 = vrot.slane %v2110, 2
    %v2112 = vadd.f32 %v2110, %v2111
    %v2113 = vrot.slane %v2112, 1
    %v2114 = vadd.f32 %v2112, %v2113
    %v2115 = vadd.f32 %v1926, %v1927
    %v2116 = vrot.slane %v2115, 4
    %v2117 = vadd.f32 %v2115, %v2116
    %v2118 = vrot.slane %v2117, 2
    %v2119 = vadd.f32 %v2117, %v2118
    %v2120 = vrot.slane %v2119, 1
    %v2121 = vadd.f32 %v2119, %v2120
    %v2122 = vadd.f32 %v1928, %v1929
    %v2123 = vrot.slane %v2122, 4
    %v2124 = vadd.f32 %v2122, %v2123
    %v2125 = vrot.slane %v2124, 2
    %v2126 = vadd.f32 %v2124, %v2125
    %v2127 = vrot.slane %v2126, 1
    %v2128 = vadd.f32 %v2126, %v2127
    %v2129 = vadd.f32 %v1930, %v1931
    %v2130 = vrot.slane %v2129, 4
    %v2131 = vadd.f32 %v2129, %v2130
    %v2132 = vrot.slane %v2131, 2
    %v2133 = vadd.f32 %v2131, %v2132
    %v2134 = vrot.slane %v2133, 1
    %v2135 = vadd.f32 %v2133, %v2134
    %v2136 = vadd.f32 %v1932, %v1933
    %v2137 = vrot.slane %v2136, 4
    %v2138 = vadd.f32 %v2136, %v2137
    %v2139 = vrot.slane %v2138, 2
    %v2140 = vadd.f32 %v2138, %v2139
    %v2141 = vrot.slane %v2140, 1
    %v2142 = vadd.f32 %v2140, %v2141
    %v2143 = vadd.f32 %v1934, %v1935
    %v2144 = vrot.slane %v2143, 4
    %v2145 = vadd.f32 %v2143, %v2144
    %v2146 = vrot.slane %v2145, 2
    %v2147 = vadd.f32 %v2145, %v2146
    %v2148 = vrot.slane %v2147, 1
    %v2149 = vadd.f32 %v2147, %v2148
    %v2150 = vadd.f32 %v1936, %v1937
    %v2151 = vrot.slane %v2150, 4
    %v2152 = vadd.f32 %v2150, %v2151
    %v2153 = vrot.slane %v2152, 2
    %v2154 = vadd.f32 %v2152, %v2153
    %v2155 = vrot.slane %v2154, 1
    %v2156 = vadd.f32 %v2154, %v2155
    %v2157 = vadd.f32 %v1938, %v1939
    %v2158 = vrot.slane %v2157, 4
    %v2159 = vadd.f32 %v2157, %v2158
    %v2160 = vrot.slane %v2159, 2
    %v2161 = vadd.f32 %v2159, %v2160
    %v2162 = vrot.slane %v2161, 1
    %v2163 = vadd.f32 %v2161, %v2162
    %v2164 = vsel %vm835, %v1456, 0.0
    %2165 = vadd.xlane.f32.xlu0 %v2164
    %v2166 = vpop.xlane.xlu0 %2165
    %v2167 = vsel %vm835, %v1457, 0.0
    %2168 = vadd.xlane.f32.xlu0 %v2167
    %v2169 = vpop.xlane.xlu0 %2168
    %v2170 = vsel %vm835, %v1458, 0.0
    %2171 = vadd.xlane.f32.xlu0 %v2170
    %v2172 = vpop.xlane.xlu0 %2171
    %v2173 = vsel %vm835, %v1459, 0.0
    %2174 = vadd.xlane.f32.xlu0 %v2173
    %v2175 = vpop.xlane.xlu0 %2174
    %v2180 = vrot.slane %v2166, 1
    %v2181 = vrot.slane %v2166, 2
    %v2182 = vrot.slane %v2166, 3
    %v2183 = vrot.slane %v2166, 4
    %v2184 = vrot.slane %v2166, 5
    %v2185 = vrot.slane %v2166, 6
    %v2186 = vrot.slane %v2166, 7
    %v2187 = vrot.slane %v2169, 1
    %v2188 = vrot.slane %v2169, 2
    %v2189 = vrot.slane %v2169, 3
    %v2190 = vrot.slane %v2169, 4
    %v2191 = vrot.slane %v2169, 5
    %v2192 = vrot.slane %v2169, 6
    %v2193 = vrot.slane %v2169, 7
    %v2194 = vrot.slane %v2172, 1
    %v2195 = vrot.slane %v2172, 2
    %v2196 = vrot.slane %v2172, 3
    %v2197 = vrot.slane %v2172, 4
    %v2198 = vrot.slane %v2172, 5
    %v2199 = vrot.slane %v2172, 6
    %v2200 = vrot.slane %v2172, 7
    %v2201 = vrot.slane %v2175, 1
    %v2202 = vrot.slane %v2175, 2
    %v2203 = vrot.slane %v2175, 3
    %v2204 = vrot.slane %v2175, 4
    %v2205 = vrot.slane %v2175, 5
    %v2206 = vrot.slane %v2175, 6
    %v2207 = vrot.slane %v2175, 7
    %v2240 = vrcp.pop %v2166
    %v2241 = vmul.f32 %v2166, %v2240
    %v2242 = vsub.f32 1.0, %v2241
    %v2243 = vmul.f32 %v2240, %v2242
    %v2244 = vadd.f32 %v2240, %v2243
    %vm2245 = vweird.f32 %v2166
    %vm2246 = vweird.f32 %v2240
    %vm2247 = vmor %vm2245, %vm2246
    %v2248 = vsel %vm2247, %v2240, %v2244
    %v2249 = vand.u32 2147483647, %v2166
    %vm2250 = vcmp.eq.f32.partialorder %v2249, 8.507059e+37
    %v2251 = vand.u32 %v2166, 2147483648
    %v2252 = vor.u32 1.1754944e-38, %v2251
    %v2253 = vsel %vm2250, %v2252, %v2248
    %v2254 = vmul.f32 %v1946, %v2253
    %v2255 = vrcp.pop %v2180
    %v2256 = vmul.f32 %v2180, %v2255
    %v2257 = vsub.f32 1.0, %v2256
    %v2258 = vmul.f32 %v2255, %v2257
    %v2259 = vadd.f32 %v2255, %v2258
    %vm2260 = vweird.f32 %v2180
    %vm2261 = vweird.f32 %v2255
    %vm2262 = vmor %vm2260, %vm2261
    %v2263 = vsel %vm2262, %v2255, %v2259
    %v2264 = vand.u32 2147483647, %v2180
    %vm2265 = vcmp.eq.f32.partialorder %v2264, 8.507059e+37
    %v2266 = vand.u32 %v2180, 2147483648
    %v2267 = vor.u32 1.1754944e-38, %v2266
    %v2268 = vsel %vm2265, %v2267, %v2263
    %v2269 = vmul.f32 %v1953, %v2268
    %v2270 = vrcp.pop %v2181
    %v2271 = vmul.f32 %v2181, %v2270
    %v2272 = vsub.f32 1.0, %v2271
    %v2273 = vmul.f32 %v2270, %v2272
    %v2274 = vadd.f32 %v2270, %v2273
    %vm2275 = vweird.f32 %v2181
    %vm2276 = vweird.f32 %v2270
    %vm2277 = vmor %vm2275, %vm2276
    %v2278 = vsel %vm2277, %v2270, %v2274
    %v2279 = vand.u32 2147483647, %v2181
    %vm2280 = vcmp.eq.f32.partialorder %v2279, 8.507059e+37
    %v2281 = vand.u32 %v2181, 2147483648
    %v2282 = vor.u32 1.1754944e-38, %v2281
    %v2283 = vsel %vm2280, %v2282, %v2278
    %v2284 = vmul.f32 %v1960, %v2283
    %v2285 = vrcp.pop %v2182
    %v2286 = vmul.f32 %v2182, %v2285
    %v2287 = vsub.f32 1.0, %v2286
    %v2288 = vmul.f32 %v2285, %v2287
    %v2289 = vadd.f32 %v2285, %v2288
    %vm2290 = vweird.f32 %v2182
    %vm2291 = vweird.f32 %v2285
    %vm2292 = vmor %vm2290, %vm2291
    %v2293 = vsel %vm2292, %v2285, %v2289
    %v2294 = vand.u32 2147483647, %v2182
    %vm2295 = vcmp.eq.f32.partialorder %v2294, 8.507059e+37
    %v2296 = vand.u32 %v2182, 2147483648
    %v2297 = vor.u32 1.1754944e-38, %v2296
    %v2298 = vsel %vm2295, %v2297, %v2293
    %v2299 = vmul.f32 %v1967, %v2298
    %v2300 = vrcp.pop %v2183
    %v2301 = vmul.f32 %v2183, %v2300
    %v2302 = vsub.f32 1.0, %v2301
    %v2303 = vmul.f32 %v2300, %v2302
    %v2304 = vadd.f32 %v2300, %v2303
    %vm2305 = vweird.f32 %v2183
    %vm2306 = vweird.f32 %v2300
    %vm2307 = vmor %vm2305, %vm2306
    %v2308 = vsel %vm2307, %v2300, %v2304
    %v2309 = vand.u32 2147483647, %v2183
    %vm2310 = vcmp.eq.f32.partialorder %v2309, 8.507059e+37
    %v2311 = vand.u32 %v2183, 2147483648
    %v2312 = vor.u32 1.1754944e-38, %v2311
    %v2313 = vsel %vm2310, %v2312, %v2308
    %v2314 = vmul.f32 %v1974, %v2313
    %v2315 = vrcp.pop %v2184
    %v2316 = vmul.f32 %v2184, %v2315
    %v2317 = vsub.f32 1.0, %v2316
    %v2318 = vmul.f32 %v2315, %v2317
    %v2319 = vadd.f32 %v2315, %v2318
    %vm2320 = vweird.f32 %v2184
    %vm2321 = vweird.f32 %v2315
    %vm2322 = vmor %vm2320, %vm2321
    %v2323 = vsel %vm2322, %v2315, %v2319
    %v2324 = vand.u32 2147483647, %v2184
    %vm2325 = vcmp.eq.f32.partialorder %v2324, 8.507059e+37
    %v2326 = vand.u32 %v2184, 2147483648
    %v2327 = vor.u32 1.1754944e-38, %v2326
    %v2328 = vsel %vm2325, %v2327, %v2323
    %v2329 = vmul.f32 %v1981, %v2328
    %v2330 = vrcp.pop %v2185
    %v2331 = vmul.f32 %v2185, %v2330
    %v2332 = vsub.f32 1.0, %v2331
    %v2333 = vmul.f32 %v2330, %v2332
    %v2334 = vadd.f32 %v2330, %v2333
    %vm2335 = vweird.f32 %v2185
    %vm2336 = vweird.f32 %v2330
    %vm2337 = vmor %vm2335, %vm2336
    %v2338 = vsel %vm2337, %v2330, %v2334
    %v2339 = vand.u32 2147483647, %v2185
    %vm2340 = vcmp.eq.f32.partialorder %v2339, 8.507059e+37
    %v2341 = vand.u32 %v2185, 2147483648
    %v2342 = vor.u32 1.1754944e-38, %v2341
    %v2343 = vsel %vm2340, %v2342, %v2338
    %v2344 = vmul.f32 %v1988, %v2343
    %v2345 = vrcp.pop %v2186
    %v2346 = vmul.f32 %v2186, %v2345
    %v2347 = vsub.f32 1.0, %v2346
    %v2348 = vmul.f32 %v2345, %v2347
    %v2349 = vadd.f32 %v2345, %v2348
    %vm2350 = vweird.f32 %v2186
    %vm2351 = vweird.f32 %v2345
    %vm2352 = vmor %vm2350, %vm2351
    %v2353 = vsel %vm2352, %v2345, %v2349
    %v2354 = vand.u32 2147483647, %v2186
    %vm2355 = vcmp.eq.f32.partialorder %v2354, 8.507059e+37
    %v2356 = vand.u32 %v2186, 2147483648
    %v2357 = vor.u32 1.1754944e-38, %v2356
    %v2358 = vsel %vm2355, %v2357, %v2353
    %v2359 = vmul.f32 %v1995, %v2358
    %v2360 = vrcp.pop %v2169
    %v2361 = vmul.f32 %v2169, %v2360
    %v2362 = vsub.f32 1.0, %v2361
    %v2363 = vmul.f32 %v2360, %v2362
    %v2364 = vadd.f32 %v2360, %v2363
    %vm2365 = vweird.f32 %v2169
    %vm2366 = vweird.f32 %v2360
    %vm2367 = vmor %vm2365, %vm2366
    %v2368 = vsel %vm2367, %v2360, %v2364
    %v2369 = vand.u32 2147483647, %v2169
    %vm2370 = vcmp.eq.f32.partialorder %v2369, 8.507059e+37
    %v2371 = vand.u32 %v2169, 2147483648
    %v2372 = vor.u32 1.1754944e-38, %v2371
    %v2373 = vsel %vm2370, %v2372, %v2368
    %v2374 = vmul.f32 %v2002, %v2373
    %v2375 = vrcp.pop %v2187
    %v2376 = vmul.f32 %v2187, %v2375
    %v2377 = vsub.f32 1.0, %v2376
    %v2378 = vmul.f32 %v2375, %v2377
    %v2379 = vadd.f32 %v2375, %v2378
    %vm2380 = vweird.f32 %v2187
    %vm2381 = vweird.f32 %v2375
    %vm2382 = vmor %vm2380, %vm2381
    %v2383 = vsel %vm2382, %v2375, %v2379
    %v2384 = vand.u32 2147483647, %v2187
    %vm2385 = vcmp.eq.f32.partialorder %v2384, 8.507059e+37
    %v2386 = vand.u32 %v2187, 2147483648
    %v2387 = vor.u32 1.1754944e-38, %v2386
    %v2388 = vsel %vm2385, %v2387, %v2383
    %v2389 = vmul.f32 %v2009, %v2388
    %v2390 = vrcp.pop %v2188
    %v2391 = vmul.f32 %v2188, %v2390
    %v2392 = vsub.f32 1.0, %v2391
    %v2393 = vmul.f32 %v2390, %v2392
    %v2394 = vadd.f32 %v2390, %v2393
    %vm2395 = vweird.f32 %v2188
    %vm2396 = vweird.f32 %v2390
    %vm2397 = vmor %vm2395, %vm2396
    %v2398 = vsel %vm2397, %v2390, %v2394
    %v2399 = vand.u32 2147483647, %v2188
    %vm2400 = vcmp.eq.f32.partialorder %v2399, 8.507059e+37
    %v2401 = vand.u32 %v2188, 2147483648
    %v2402 = vor.u32 1.1754944e-38, %v2401
    %v2403 = vsel %vm2400, %v2402, %v2398
    %v2404 = vmul.f32 %v2016, %v2403
    %v2405 = vrcp.pop %v2189
    %v2406 = vmul.f32 %v2189, %v2405
    %v2407 = vsub.f32 1.0, %v2406
    %v2408 = vmul.f32 %v2405, %v2407
    %v2409 = vadd.f32 %v2405, %v2408
    %vm2410 = vweird.f32 %v2189
    %vm2411 = vweird.f32 %v2405
    %vm2412 = vmor %vm2410, %vm2411
    %v2413 = vsel %vm2412, %v2405, %v2409
    %v2414 = vand.u32 2147483647, %v2189
    %vm2415 = vcmp.eq.f32.partialorder %v2414, 8.507059e+37
    %v2416 = vand.u32 %v2189, 2147483648
    %v2417 = vor.u32 1.1754944e-38, %v2416
    %v2418 = vsel %vm2415, %v2417, %v2413
    %v2419 = vmul.f32 %v2023, %v2418
    %v2420 = vrcp.pop %v2190
    %v2421 = vmul.f32 %v2190, %v2420
    %v2422 = vsub.f32 1.0, %v2421
    %v2423 = vmul.f32 %v2420, %v2422
    %v2424 = vadd.f32 %v2420, %v2423
    %vm2425 = vweird.f32 %v2190
    %vm2426 = vweird.f32 %v2420
    %vm2427 = vmor %vm2425, %vm2426
    %v2428 = vsel %vm2427, %v2420, %v2424
    %v2429 = vand.u32 2147483647, %v2190
    %vm2430 = vcmp.eq.f32.partialorder %v2429, 8.507059e+37
    %v2431 = vand.u32 %v2190, 2147483648
    %v2432 = vor.u32 1.1754944e-38, %v2431
    %v2433 = vsel %vm2430, %v2432, %v2428
    %v2434 = vmul.f32 %v2030, %v2433
    %v2435 = vrcp.pop %v2191
    %v2436 = vmul.f32 %v2191, %v2435
    %v2437 = vsub.f32 1.0, %v2436
    %v2438 = vmul.f32 %v2435, %v2437
    %v2439 = vadd.f32 %v2435, %v2438
    %vm2440 = vweird.f32 %v2191
    %vm2441 = vweird.f32 %v2435
    %vm2442 = vmor %vm2440, %vm2441
    %v2443 = vsel %vm2442, %v2435, %v2439
    %v2444 = vand.u32 2147483647, %v2191
    %vm2445 = vcmp.eq.f32.partialorder %v2444, 8.507059e+37
    %v2446 = vand.u32 %v2191, 2147483648
    %v2447 = vor.u32 1.1754944e-38, %v2446
    %v2448 = vsel %vm2445, %v2447, %v2443
    %v2449 = vmul.f32 %v2037, %v2448
    %v2450 = vrcp.pop %v2192
    %v2451 = vmul.f32 %v2192, %v2450
    %v2452 = vsub.f32 1.0, %v2451
    %v2453 = vmul.f32 %v2450, %v2452
    %v2454 = vadd.f32 %v2450, %v2453
    %vm2455 = vweird.f32 %v2192
    %vm2456 = vweird.f32 %v2450
    %vm2457 = vmor %vm2455, %vm2456
    %v2458 = vsel %vm2457, %v2450, %v2454
    %v2459 = vand.u32 2147483647, %v2192
    %vm2460 = vcmp.eq.f32.partialorder %v2459, 8.507059e+37
    %v2461 = vand.u32 %v2192, 2147483648
    %v2462 = vor.u32 1.1754944e-38, %v2461
    %v2463 = vsel %vm2460, %v2462, %v2458
    %v2464 = vmul.f32 %v2044, %v2463
    %v2465 = vrcp.pop %v2193
    %v2466 = vmul.f32 %v2193, %v2465
    %v2467 = vsub.f32 1.0, %v2466
    %v2468 = vmul.f32 %v2465, %v2467
    %v2469 = vadd.f32 %v2465, %v2468
    %vm2470 = vweird.f32 %v2193
    %vm2471 = vweird.f32 %v2465
    %vm2472 = vmor %vm2470, %vm2471
    %v2473 = vsel %vm2472, %v2465, %v2469
    %v2474 = vand.u32 2147483647, %v2193
    %vm2475 = vcmp.eq.f32.partialorder %v2474, 8.507059e+37
    %v2476 = vand.u32 %v2193, 2147483648
    %v2477 = vor.u32 1.1754944e-38, %v2476
    %v2478 = vsel %vm2475, %v2477, %v2473
    %v2479 = vmul.f32 %v2051, %v2478
    %v2480 = vrcp.pop %v2172
    %v2481 = vmul.f32 %v2172, %v2480
    %v2482 = vsub.f32 1.0, %v2481
    %v2483 = vmul.f32 %v2480, %v2482
    %v2484 = vadd.f32 %v2480, %v2483
    %vm2485 = vweird.f32 %v2172
    %vm2486 = vweird.f32 %v2480
    %vm2487 = vmor %vm2485, %vm2486
    %v2488 = vsel %vm2487, %v2480, %v2484
    %v2489 = vand.u32 2147483647, %v2172
    %vm2490 = vcmp.eq.f32.partialorder %v2489, 8.507059e+37
    %v2491 = vand.u32 %v2172, 2147483648
    %v2492 = vor.u32 1.1754944e-38, %v2491
    %v2493 = vsel %vm2490, %v2492, %v2488
    %v2494 = vmul.f32 %v2058, %v2493
    %v2495 = vrcp.pop %v2194
    %v2496 = vmul.f32 %v2194, %v2495
    %v2497 = vsub.f32 1.0, %v2496
    %v2498 = vmul.f32 %v2495, %v2497
    %v2499 = vadd.f32 %v2495, %v2498
    %vm2500 = vweird.f32 %v2194
    %vm2501 = vweird.f32 %v2495
    %vm2502 = vmor %vm2500, %vm2501
    %v2503 = vsel %vm2502, %v2495, %v2499
    %v2504 = vand.u32 2147483647, %v2194
    %vm2505 = vcmp.eq.f32.partialorder %v2504, 8.507059e+37
    %v2506 = vand.u32 %v2194, 2147483648
    %v2507 = vor.u32 1.1754944e-38, %v2506
    %v2508 = vsel %vm2505, %v2507, %v2503
    %v2509 = vmul.f32 %v2065, %v2508
    %v2510 = vrcp.pop %v2195
    %v2511 = vmul.f32 %v2195, %v2510
    %v2512 = vsub.f32 1.0, %v2511
    %v2513 = vmul.f32 %v2510, %v2512
    %v2514 = vadd.f32 %v2510, %v2513
    %vm2515 = vweird.f32 %v2195
    %vm2516 = vweird.f32 %v2510
    %vm2517 = vmor %vm2515, %vm2516
    %v2518 = vsel %vm2517, %v2510, %v2514
    %v2519 = vand.u32 2147483647, %v2195
    %vm2520 = vcmp.eq.f32.partialorder %v2519, 8.507059e+37
    %v2521 = vand.u32 %v2195, 2147483648
    %v2522 = vor.u32 1.1754944e-38, %v2521
    %v2523 = vsel %vm2520, %v2522, %v2518
    %v2524 = vmul.f32 %v2072, %v2523
    %v2525 = vrcp.pop %v2196
    %v2526 = vmul.f32 %v2196, %v2525
    %v2527 = vsub.f32 1.0, %v2526
    %v2528 = vmul.f32 %v2525, %v2527
    %v2529 = vadd.f32 %v2525, %v2528
    %vm2530 = vweird.f32 %v2196
    %vm2531 = vweird.f32 %v2525
    %vm2532 = vmor %vm2530, %vm2531
    %v2533 = vsel %vm2532, %v2525, %v2529
    %v2534 = vand.u32 2147483647, %v2196
    %vm2535 = vcmp.eq.f32.partialorder %v2534, 8.507059e+37
    %v2536 = vand.u32 %v2196, 2147483648
    %v2537 = vor.u32 1.1754944e-38, %v2536
    %v2538 = vsel %vm2535, %v2537, %v2533
    %v2539 = vmul.f32 %v2079, %v2538
    %v2540 = vrcp.pop %v2197
    %v2541 = vmul.f32 %v2197, %v2540
    %v2542 = vsub.f32 1.0, %v2541
    %v2543 = vmul.f32 %v2540, %v2542
    %v2544 = vadd.f32 %v2540, %v2543
    %vm2545 = vweird.f32 %v2197
    %vm2546 = vweird.f32 %v2540
    %vm2547 = vmor %vm2545, %vm2546
    %v2548 = vsel %vm2547, %v2540, %v2544
    %v2549 = vand.u32 2147483647, %v2197
    %vm2550 = vcmp.eq.f32.partialorder %v2549, 8.507059e+37
    %v2551 = vand.u32 %v2197, 2147483648
    %v2552 = vor.u32 1.1754944e-38, %v2551
    %v2553 = vsel %vm2550, %v2552, %v2548
    %v2554 = vmul.f32 %v2086, %v2553
    %v2555 = vrcp.pop %v2198
    %v2556 = vmul.f32 %v2198, %v2555
    %v2557 = vsub.f32 1.0, %v2556
    %v2558 = vmul.f32 %v2555, %v2557
    %v2559 = vadd.f32 %v2555, %v2558
    %vm2560 = vweird.f32 %v2198
    %vm2561 = vweird.f32 %v2555
    %vm2562 = vmor %vm2560, %vm2561
    %v2563 = vsel %vm2562, %v2555, %v2559
    %v2564 = vand.u32 2147483647, %v2198
    %vm2565 = vcmp.eq.f32.partialorder %v2564, 8.507059e+37
    %v2566 = vand.u32 %v2198, 2147483648
    %v2567 = vor.u32 1.1754944e-38, %v2566
    %v2568 = vsel %vm2565, %v2567, %v2563
    %v2569 = vmul.f32 %v2093, %v2568
    %v2570 = vrcp.pop %v2199
    %v2571 = vmul.f32 %v2199, %v2570
    %v2572 = vsub.f32 1.0, %v2571
    %v2573 = vmul.f32 %v2570, %v2572
    %v2574 = vadd.f32 %v2570, %v2573
    %vm2575 = vweird.f32 %v2199
    %vm2576 = vweird.f32 %v2570
    %vm2577 = vmor %vm2575, %vm2576
    %v2578 = vsel %vm2577, %v2570, %v2574
    %v2579 = vand.u32 2147483647, %v2199
    %vm2580 = vcmp.eq.f32.partialorder %v2579, 8.507059e+37
    %v2581 = vand.u32 %v2199, 2147483648
    %v2582 = vor.u32 1.1754944e-38, %v2581
    %v2583 = vsel %vm2580, %v2582, %v2578
    %v2584 = vmul.f32 %v2100, %v2583
    %v2585 = vrcp.pop %v2200
    %v2586 = vmul.f32 %v2200, %v2585
    %v2587 = vsub.f32 1.0, %v2586
    %v2588 = vmul.f32 %v2585, %v2587
    %v2589 = vadd.f32 %v2585, %v2588
    %vm2590 = vweird.f32 %v2200
    %vm2591 = vweird.f32 %v2585
    %vm2592 = vmor %vm2590, %vm2591
    %v2593 = vsel %vm2592, %v2585, %v2589
    %v2594 = vand.u32 2147483647, %v2200
    %vm2595 = vcmp.eq.f32.partialorder %v2594, 8.507059e+37
    %v2596 = vand.u32 %v2200, 2147483648
    %v2597 = vor.u32 1.1754944e-38, %v2596
    %v2598 = vsel %vm2595, %v2597, %v2593
    %v2599 = vmul.f32 %v2107, %v2598
    %v2600 = vrcp.pop %v2175
    %v2601 = vmul.f32 %v2175, %v2600
    %v2602 = vsub.f32 1.0, %v2601
    %v2603 = vmul.f32 %v2600, %v2602
    %v2604 = vadd.f32 %v2600, %v2603
    %vm2605 = vweird.f32 %v2175
    %vm2606 = vweird.f32 %v2600
    %vm2607 = vmor %vm2605, %vm2606
    %v2608 = vsel %vm2607, %v2600, %v2604
    %v2609 = vand.u32 2147483647, %v2175
    %vm2610 = vcmp.eq.f32.partialorder %v2609, 8.507059e+37
    %v2611 = vand.u32 %v2175, 2147483648
    %v2612 = vor.u32 1.1754944e-38, %v2611
    %v2613 = vsel %vm2610, %v2612, %v2608
    %v2614 = vmul.f32 %v2114, %v2613
    %v2615 = vrcp.pop %v2201
    %v2616 = vmul.f32 %v2201, %v2615
    %v2617 = vsub.f32 1.0, %v2616
    %v2618 = vmul.f32 %v2615, %v2617
    %v2619 = vadd.f32 %v2615, %v2618
    %vm2620 = vweird.f32 %v2201
    %vm2621 = vweird.f32 %v2615
    %vm2622 = vmor %vm2620, %vm2621
    %v2623 = vsel %vm2622, %v2615, %v2619
    %v2624 = vand.u32 2147483647, %v2201
    %vm2625 = vcmp.eq.f32.partialorder %v2624, 8.507059e+37
    %v2626 = vand.u32 %v2201, 2147483648
    %v2627 = vor.u32 1.1754944e-38, %v2626
    %v2628 = vsel %vm2625, %v2627, %v2623
    %v2629 = vmul.f32 %v2121, %v2628
    %v2630 = vrcp.pop %v2202
    %v2631 = vmul.f32 %v2202, %v2630
    %v2632 = vsub.f32 1.0, %v2631
    %v2633 = vmul.f32 %v2630, %v2632
    %v2634 = vadd.f32 %v2630, %v2633
    %vm2635 = vweird.f32 %v2202
    %vm2636 = vweird.f32 %v2630
    %vm2637 = vmor %vm2635, %vm2636
    %v2638 = vsel %vm2637, %v2630, %v2634
    %v2639 = vand.u32 2147483647, %v2202
    %vm2640 = vcmp.eq.f32.partialorder %v2639, 8.507059e+37
    %v2641 = vand.u32 %v2202, 2147483648
    %v2642 = vor.u32 1.1754944e-38, %v2641
    %v2643 = vsel %vm2640, %v2642, %v2638
    %v2644 = vmul.f32 %v2128, %v2643
    %v2645 = vrcp.pop %v2203
    %v2646 = vmul.f32 %v2203, %v2645
    %v2647 = vsub.f32 1.0, %v2646
    %v2648 = vmul.f32 %v2645, %v2647
    %v2649 = vadd.f32 %v2645, %v2648
    %vm2650 = vweird.f32 %v2203
    %vm2651 = vweird.f32 %v2645
    %vm2652 = vmor %vm2650, %vm2651
    %v2653 = vsel %vm2652, %v2645, %v2649
    %v2654 = vand.u32 2147483647, %v2203
    %vm2655 = vcmp.eq.f32.partialorder %v2654, 8.507059e+37
    %v2656 = vand.u32 %v2203, 2147483648
    %v2657 = vor.u32 1.1754944e-38, %v2656
    %v2658 = vsel %vm2655, %v2657, %v2653
    %v2659 = vmul.f32 %v2135, %v2658
    %v2660 = vrcp.pop %v2204
    %v2661 = vmul.f32 %v2204, %v2660
    %v2662 = vsub.f32 1.0, %v2661
    %v2663 = vmul.f32 %v2660, %v2662
    %v2664 = vadd.f32 %v2660, %v2663
    %vm2665 = vweird.f32 %v2204
    %vm2666 = vweird.f32 %v2660
    %vm2667 = vmor %vm2665, %vm2666
    %v2668 = vsel %vm2667, %v2660, %v2664
    %v2669 = vand.u32 2147483647, %v2204
    %vm2670 = vcmp.eq.f32.partialorder %v2669, 8.507059e+37
    %v2671 = vand.u32 %v2204, 2147483648
    %v2672 = vor.u32 1.1754944e-38, %v2671
    %v2673 = vsel %vm2670, %v2672, %v2668
    %v2674 = vmul.f32 %v2142, %v2673
    %v2675 = vrcp.pop %v2205
    %v2676 = vmul.f32 %v2205, %v2675
    %v2677 = vsub.f32 1.0, %v2676
    %v2678 = vmul.f32 %v2675, %v2677
    %v2679 = vadd.f32 %v2675, %v2678
    %vm2680 = vweird.f32 %v2205
    %vm2681 = vweird.f32 %v2675
    %vm2682 = vmor %vm2680, %vm2681
    %v2683 = vsel %vm2682, %v2675, %v2679
    %v2684 = vand.u32 2147483647, %v2205
    %vm2685 = vcmp.eq.f32.partialorder %v2684, 8.507059e+37
    %v2686 = vand.u32 %v2205, 2147483648
    %v2687 = vor.u32 1.1754944e-38, %v2686
    %v2688 = vsel %vm2685, %v2687, %v2683
    %v2689 = vmul.f32 %v2149, %v2688
    %v2690 = vrcp.pop %v2206
    %v2691 = vmul.f32 %v2206, %v2690
    %v2692 = vsub.f32 1.0, %v2691
    %v2693 = vmul.f32 %v2690, %v2692
    %v2694 = vadd.f32 %v2690, %v2693
    %vm2695 = vweird.f32 %v2206
    %vm2696 = vweird.f32 %v2690
    %vm2697 = vmor %vm2695, %vm2696
    %v2698 = vsel %vm2697, %v2690, %v2694
    %v2699 = vand.u32 2147483647, %v2206
    %vm2700 = vcmp.eq.f32.partialorder %v2699, 8.507059e+37
    %v2701 = vand.u32 %v2206, 2147483648
    %v2702 = vor.u32 1.1754944e-38, %v2701
    %v2703 = vsel %vm2700, %v2702, %v2698
    %v2704 = vmul.f32 %v2156, %v2703
    %v2705 = vrcp.pop %v2207
    %v2706 = vmul.f32 %v2207, %v2705
    %v2707 = vsub.f32 1.0, %v2706
    %v2708 = vmul.f32 %v2705, %v2707
    %v2709 = vadd.f32 %v2705, %v2708
    %vm2710 = vweird.f32 %v2207
    %vm2711 = vweird.f32 %v2705
    %vm2712 = vmor %vm2710, %vm2711
    %v2713 = vsel %vm2712, %v2705, %v2709
    %v2714 = vand.u32 2147483647, %v2207
    %vm2715 = vcmp.eq.f32.partialorder %v2714, 8.507059e+37
    %v2716 = vand.u32 %v2207, 2147483648
    %v2717 = vor.u32 1.1754944e-38, %v2716
    %v2718 = vsel %vm2715, %v2717, %v2713
    %v2719 = vmul.f32 %v2163, %v2718
    %v2752 = vrot.slane %v941, 7
    %vm2753 = vcmask 1041409
    %v2754 = vsel %vm2753, %v2752, %v926
    %v2755 = vrot.slane %v956, 6
    %vm2756 = vcmask 1042434
    %v2757 = vsel %vm2756, %v2755, %v2754
    %v2758 = vrot.slane %v971, 5
    %vm2759 = vcmask 1043459
    %v2760 = vsel %vm2759, %v2758, %v2757
    %v2761 = vrot.slane %v986, 4
    %vm2762 = vcmask 1044484
    %v2763 = vsel %vm2762, %v2761, %v2760
    %v2764 = vrot.slane %v1001, 3
    %vm2765 = vcmask 1045509
    %v2766 = vsel %vm2765, %v2764, %v2763
    %v2767 = vrot.slane %v1016, 2
    %vm2768 = vcmask 1046534
    %v2769 = vsel %vm2768, %v2767, %v2766
    %v2770 = vrot.slane %v1031, 1
    %vm2771 = vcmask 1047559
    %v2772 = vsel %vm2771, %v2770, %v2769
    %v2773 = vrot.slane %v1061, 7
    %v2774 = vsel %vm2753, %v2773, %v1046
    %v2775 = vrot.slane %v1076, 6
    %v2776 = vsel %vm2756, %v2775, %v2774
    %v2777 = vrot.slane %v1091, 5
    %v2778 = vsel %vm2759, %v2777, %v2776
    %v2779 = vrot.slane %v1106, 4
    %v2780 = vsel %vm2762, %v2779, %v2778
    %v2781 = vrot.slane %v1121, 3
    %v2782 = vsel %vm2765, %v2781, %v2780
    %v2783 = vrot.slane %v1136, 2
    %v2784 = vsel %vm2768, %v2783, %v2782
    %v2785 = vrot.slane %v1151, 1
    %v2786 = vsel %vm2771, %v2785, %v2784
    %v2787 = vrot.slane %v1181, 7
    %v2788 = vsel %vm2753, %v2787, %v1166
    %v2789 = vrot.slane %v1196, 6
    %v2790 = vsel %vm2756, %v2789, %v2788
    %v2791 = vrot.slane %v1211, 5
    %v2792 = vsel %vm2759, %v2791, %v2790
    %v2793 = vrot.slane %v1226, 4
    %v2794 = vsel %vm2762, %v2793, %v2792
    %v2795 = vrot.slane %v1241, 3
    %v2796 = vsel %vm2765, %v2795, %v2794
    %v2797 = vrot.slane %v1256, 2
    %v2798 = vsel %vm2768, %v2797, %v2796
    %v2799 = vrot.slane %v1271, 1
    %v2800 = vsel %vm2771, %v2799, %v2798
    %v2801 = vrot.slane %v1301, 7
    %v2802 = vsel %vm2753, %v2801, %v1286
    %v2803 = vrot.slane %v1316, 6
    %v2804 = vsel %vm2756, %v2803, %v2802
    %v2805 = vrot.slane %v1331, 5
    %v2806 = vsel %vm2759, %v2805, %v2804
    %v2807 = vrot.slane %v1346, 4
    %v2808 = vsel %vm2762, %v2807, %v2806
    %v2809 = vrot.slane %v1361, 3
    %v2810 = vsel %vm2765, %v2809, %v2808
    %v2811 = vrot.slane %v1376, 2
    %v2812 = vsel %vm2768, %v2811, %v2810
    %v2813 = vrot.slane %v1391, 1
    %v2814 = vsel %vm2771, %v2813, %v2812
    %v2851 = vrot.slane %v2269, 7
    %v2852 = vsel %vm2753, %v2851, %v2254
    %v2853 = vrot.slane %v2284, 6
    %v2854 = vsel %vm2756, %v2853, %v2852
    %v2855 = vrot.slane %v2299, 5
    %v2856 = vsel %vm2759, %v2855, %v2854
    %v2857 = vrot.slane %v2314, 4
    %v2858 = vsel %vm2762, %v2857, %v2856
    %v2859 = vrot.slane %v2329, 3
    %v2860 = vsel %vm2765, %v2859, %v2858
    %v2861 = vrot.slane %v2344, 2
    %v2862 = vsel %vm2768, %v2861, %v2860
    %v2863 = vrot.slane %v2359, 1
    %v2864 = vsel %vm2771, %v2863, %v2862
    %v2865 = vrot.slane %v2389, 7
    %v2866 = vsel %vm2753, %v2865, %v2374
    %v2867 = vrot.slane %v2404, 6
    %v2868 = vsel %vm2756, %v2867, %v2866
    %v2869 = vrot.slane %v2419, 5
    %v2870 = vsel %vm2759, %v2869, %v2868
    %v2871 = vrot.slane %v2434, 4
    %v2872 = vsel %vm2762, %v2871, %v2870
    %v2873 = vrot.slane %v2449, 3
    %v2874 = vsel %vm2765, %v2873, %v2872
    %v2875 = vrot.slane %v2464, 2
    %v2876 = vsel %vm2768, %v2875, %v2874
    %v2877 = vrot.slane %v2479, 1
    %v2878 = vsel %vm2771, %v2877, %v2876
    %v2879 = vrot.slane %v2509, 7
    %v2880 = vsel %vm2753, %v2879, %v2494
    %v2881 = vrot.slane %v2524, 6
    %v2882 = vsel %vm2756, %v2881, %v2880
    %v2883 = vrot.slane %v2539, 5
    %v2884 = vsel %vm2759, %v2883, %v2882
    %v2885 = vrot.slane %v2554, 4
    %v2886 = vsel %vm2762, %v2885, %v2884
    %v2887 = vrot.slane %v2569, 3
    %v2888 = vsel %vm2765, %v2887, %v2886
    %v2889 = vrot.slane %v2584, 2
    %v2890 = vsel %vm2768, %v2889, %v2888
    %v2891 = vrot.slane %v2599, 1
    %v2892 = vsel %vm2771, %v2891, %v2890
    %v2893 = vrot.slane %v2629, 7
    %v2894 = vsel %vm2753, %v2893, %v2614
    %v2895 = vrot.slane %v2644, 6
    %v2896 = vsel %vm2756, %v2895, %v2894
    %v2897 = vrot.slane %v2659, 5
    %v2898 = vsel %vm2759, %v2897, %v2896
    %v2899 = vrot.slane %v2674, 4
    %v2900 = vsel %vm2762, %v2899, %v2898
    %v2901 = vrot.slane %v2689, 3
    %v2902 = vsel %vm2765, %v2901, %v2900
    %v2903 = vrot.slane %v2704, 2
    %v2904 = vsel %vm2768, %v2903, %v2902
    %v2905 = vrot.slane %v2719, 1
    %v2906 = vsel %vm2771, %v2905, %v2904
    %v2911 = vpack.c.bf16 %v2786, %v2772
    %v2912 = vpack.c.bf16 %v2814, %v2800
    %v2913 = vpack.c.bf16 %v2878, %v2864
    %v2914 = vpack.c.bf16 %v2906, %v2892
    %v2915 = vld [vmem:[%s4] sm:$0xf]
    %v2916 = vld [vmem:[%s4 + $0x4] sm:$0xf]
    %v2917 = vld [vmem:[%s4 + $0x8] sm:$0xf]
    %v2918 = vld [vmem:[%s4 + $0xc] sm:$0xf]
    %v2919 = vld [vmem:[%s4 + $0x10] sm:$0xf]
    %v2920 = vld [vmem:[%s4 + $0x14] sm:$0xf]
    %v2921 = vld [vmem:[%s4 + $0x18] sm:$0xf]
    %v2922 = vld [vmem:[%s4 + $0x1c] sm:$0xf]
    %v2923 = vld [vmem:[%s4 + $0x20] sm:$0xf]
    %v2924 = vld [vmem:[%s4 + $0x24] sm:$0xf]
    %v2925 = vld [vmem:[%s4 + $0x28] sm:$0xf]
    %v2926 = vld [vmem:[%s4 + $0x2c] sm:$0xf]
    %v2927 = vld [vmem:[%s4 + $0x30] sm:$0xf]
    %v2928 = vld [vmem:[%s4 + $0x34] sm:$0xf]
    %v2929 = vld [vmem:[%s4 + $0x38] sm:$0xf]
    %v2930 = vld [vmem:[%s4 + $0x3c] sm:$0xf]
    %v2931 = vld [vmem:[%s5] sm:$0x1]
    %v2933 = vperm.slane %v2931, 0
    %v2951 = vunpack.c.l.b16 %v2915
    %v2952 = vunpack.c.l.b16 %v2916
    %v2953 = vunpack.c.l.b16 %v2917
    %v2954 = vunpack.c.l.b16 %v2918
    %v2955 = vunpack.c.l.b16 %v2919
    %v2956 = vunpack.c.l.b16 %v2920
    %v2957 = vunpack.c.l.b16 %v2921
    %v2958 = vunpack.c.l.b16 %v2922
    %v2959 = vunpack.c.l.b16 %v2923
    %v2960 = vunpack.c.l.b16 %v2924
    %v2961 = vunpack.c.l.b16 %v2925
    %v2962 = vunpack.c.l.b16 %v2926
    %v2963 = vunpack.c.l.b16 %v2927
    %v2964 = vunpack.c.l.b16 %v2928
    %v2965 = vunpack.c.l.b16 %v2929
    %v2966 = vunpack.c.l.b16 %v2930
    %v2967 = vpack.c.b16 %v2952, %v2951
    %v2968 = vpack.c.b16 %v2954, %v2953
    %v2969 = vpack.c.b16 %v2956, %v2955
    %v2970 = vpack.c.b16 %v2958, %v2957
    %v2971 = vpack.c.b16 %v2960, %v2959
    %v2972 = vpack.c.b16 %v2962, %v2961
    %v2973 = vpack.c.b16 %v2964, %v2963
    %v2974 = vpack.c.b16 %v2966, %v2965
    %2983 = vmatpush.bf16.msra.mxu0 %v2974
    %2984 = vmatpush.bf16.msra.mxu0 %v2973
    %2985 = vmatpush.bf16.msra.mxu0 %v2972
    %2986 = vmatpush.bf16.msra.mxu0 %v2971
    %2987 = vmatpush.bf16.msra.mxu0 %v2970
    %2988 = vmatpush.bf16.msra.mxu0 %v2969
    %2989 = vmatpush.bf16.msra.mxu0 %v2968
    %2990 = vmatpush.bf16.msra.mxu0 %v2967
    %2991 = vmatmul.bf16.gmra.mxu0 %v2911
    %v2992 = vpop.f32.mrf.mxu0
    %v2993 = vadd.f32 %v2933, %v2992
    %v2994 = vpop.f32.mrf.mxu0
    %v2995 = vadd.f32 %v2933, %v2994
    %2996 = vmatmul.bf16.gmra.mxu0 %v2912
    %v2997 = vpop.f32.mrf.mxu0
    %v2998 = vadd.f32 %v2933, %v2997
    %v2999 = vpop.f32.mrf.mxu0
    %v3000 = vadd.f32 %v2933, %v2999
    %3001 = vmatmul.bf16.gmra.mxu0 %v2913
    %v3002 = vpop.f32.mrf.mxu0
    %v3003 = vadd.f32 %v2933, %v3002
    %v3004 = vpop.f32.mrf.mxu0
    %v3005 = vadd.f32 %v2933, %v3004
    %3006 = vmatmul.bf16.gmra.mxu0 %v2914
    %v3007 = vpop.f32.mrf.mxu0
    %v3008 = vadd.f32 %v2933, %v3007
    %v3009 = vpop.f32.mrf.mxu0
    %v3010 = vadd.f32 %v2933, %v3009
    %3011 = vdwg.mxu0
    %v3012 = vmul.f32 %v2993, %v2993
    %v3013 = vmul.f32 %v2995, %v2995
    %v3014 = vmul.f32 %v2998, %v2998
    %v3015 = vmul.f32 %v3000, %v3000
    %v3016 = vmul.f32 %v3003, %v3003
    %v3017 = vmul.f32 %v3005, %v3005
    %v3018 = vmul.f32 %v3008, %v3008
    %v3019 = vmul.f32 %v3010, %v3010
    %3020 = vadd.xlane.f32.xlu0 %v3012
    %v3021 = vpop.xlane.xlu0 %3020
    %3022 = vadd.xlane.f32.xlu0 %v3013
    %v3023 = vpop.xlane.xlu0 %3022
    %3024 = vadd.xlane.f32.xlu0 %v3014
    %v3025 = vpop.xlane.xlu0 %3024
    %3026 = vadd.xlane.f32.xlu0 %v3015
    %v3027 = vpop.xlane.xlu0 %3026
    %3028 = vadd.xlane.f32.xlu0 %v3016
    %v3029 = vpop.xlane.xlu0 %3028
    %3030 = vadd.xlane.f32.xlu0 %v3017
    %v3031 = vpop.xlane.xlu0 %3030
    %3032 = vadd.xlane.f32.xlu0 %v3018
    %v3033 = vpop.xlane.xlu0 %3032
    %3034 = vadd.xlane.f32.xlu0 %v3019
    %v3035 = vpop.xlane.xlu0 %3034
    %v3036 = vmax.f32 %v3021, 1e-24
    %v3037 = vmax.f32 %v3023, 1e-24
    %v3038 = vmax.f32 %v3025, 1e-24
    %v3039 = vmax.f32 %v3027, 1e-24
    %v3040 = vmax.f32 %v3029, 1e-24
    %v3041 = vmax.f32 %v3031, 1e-24
    %v3042 = vmax.f32 %v3033, 1e-24
    %v3043 = vmax.f32 %v3035, 1e-24
    %v3044 = vrsqrt.pop %v3036
    %v3045 = vmul.f32 %v3044, %v3036
    %v3046 = vmul.f32 %v3045, %v3044
    %v3047 = vmul.f32 0.5, %v3046
    %v3048 = vsub.f32 1.5, %v3047
    %v3049 = vmul.f32 %v3044, %v3048
    %vm3050 = vweird.f32 %v3036
    %vm3051 = vweird.f32 %v3044
    %vm3052 = vmor %vm3050, %vm3051
    %v3053 = vsel %vm3052, %v3044, %v3049
    %v3054 = vrsqrt.pop %v3037
    %v3055 = vmul.f32 %v3054, %v3037
    %v3056 = vmul.f32 %v3055, %v3054
    %v3057 = vmul.f32 0.5, %v3056
    %v3058 = vsub.f32 1.5, %v3057
    %v3059 = vmul.f32 %v3054, %v3058
    %vm3060 = vweird.f32 %v3037
    %vm3061 = vweird.f32 %v3054
    %vm3062 = vmor %vm3060, %vm3061
    %v3063 = vsel %vm3062, %v3054, %v3059
    %v3064 = vrsqrt.pop %v3038
    %v3065 = vmul.f32 %v3064, %v3038
    %v3066 = vmul.f32 %v3065, %v3064
    %v3067 = vmul.f32 0.5, %v3066
    %v3068 = vsub.f32 1.5, %v3067
    %v3069 = vmul.f32 %v3064, %v3068
    %vm3070 = vweird.f32 %v3038
    %vm3071 = vweird.f32 %v3064
    %vm3072 = vmor %vm3070, %vm3071
    %v3073 = vsel %vm3072, %v3064, %v3069
    %v3074 = vrsqrt.pop %v3039
    %v3075 = vmul.f32 %v3074, %v3039
    %v3076 = vmul.f32 %v3075, %v3074
    %v3077 = vmul.f32 0.5, %v3076
    %v3078 = vsub.f32 1.5, %v3077
    %v3079 = vmul.f32 %v3074, %v3078
    %vm3080 = vweird.f32 %v3039
    %vm3081 = vweird.f32 %v3074
    %vm3082 = vmor %vm3080, %vm3081
    %v3083 = vsel %vm3082, %v3074, %v3079
    %v3084 = vrsqrt.pop %v3040
    %v3085 = vmul.f32 %v3084, %v3040
    %v3086 = vmul.f32 %v3085, %v3084
    %v3087 = vmul.f32 0.5, %v3086
    %v3088 = vsub.f32 1.5, %v3087
    %v3089 = vmul.f32 %v3084, %v3088
    %vm3090 = vweird.f32 %v3040
    %vm3091 = vweird.f32 %v3084
    %vm3092 = vmor %vm3090, %vm3091
    %v3093 = vsel %vm3092, %v3084, %v3089
    %v3094 = vrsqrt.pop %v3041
    %v3095 = vmul.f32 %v3094, %v3041
    %v3096 = vmul.f32 %v3095, %v3094
    %v3097 = vmul.f32 0.5, %v3096
    %v3098 = vsub.f32 1.5, %v3097
    %v3099 = vmul.f32 %v3094, %v3098
    %vm3100 = vweird.f32 %v3041
    %vm3101 = vweird.f32 %v3094
    %vm3102 = vmor %vm3100, %vm3101
    %v3103 = vsel %vm3102, %v3094, %v3099
    %v3104 = vrsqrt.pop %v3042
    %v3105 = vmul.f32 %v3104, %v3042
    %v3106 = vmul.f32 %v3105, %v3104
    %v3107 = vmul.f32 0.5, %v3106
    %v3108 = vsub.f32 1.5, %v3107
    %v3109 = vmul.f32 %v3104, %v3108
    %vm3110 = vweird.f32 %v3042
    %vm3111 = vweird.f32 %v3104
    %vm3112 = vmor %vm3110, %vm3111
    %v3113 = vsel %vm3112, %v3104, %v3109
    %v3114 = vrsqrt.pop %v3043
    %v3115 = vmul.f32 %v3114, %v3043
    %v3116 = vmul.f32 %v3115, %v3114
    %v3117 = vmul.f32 0.5, %v3116
    %v3118 = vsub.f32 1.5, %v3117
    %v3119 = vmul.f32 %v3114, %v3118
    %vm3120 = vweird.f32 %v3043
    %vm3121 = vweird.f32 %v3114
    %vm3122 = vmor %vm3120, %vm3121
    %v3123 = vsel %vm3122, %v3114, %v3119
    %v3124 = vmul.f32 %v2993, %v3053
    %v3125 = vmul.f32 %v2995, %v3063
    %v3126 = vmul.f32 %v2998, %v3073
    %v3127 = vmul.f32 %v3000, %v3083
    %v3128 = vmul.f32 %v3003, %v3093
    %v3129 = vmul.f32 %v3005, %v3103
    %v3130 = vmul.f32 %v3008, %v3113
    %v3131 = vmul.f32 %v3010, %v3123
    %3132 = vst [vmem:[#allocation10] sm:$0xff] %v3124
    %3133 = vst [vmem:[#allocation10 + $0x8] sm:$0xff] %v3125
    %3134 = vst [vmem:[#allocation10 + $0x10] sm:$0xff] %v3126
    %3135 = vst [vmem:[#allocation10 + $0x18] sm:$0xff] %v3127
    %3136 = vst [vmem:[#allocation11] sm:$0xff] %v3128
    %3137 = vst [vmem:[#allocation11 + $0x8] sm:$0xff] %v3129
    %3138 = vst [vmem:[#allocation11 + $0x10] sm:$0xff] %v3130
    %3139 = vst [vmem:[#allocation11 + $0x18] sm:$0xff] %v3131
    %v3140 = vpack.c.bf16 %v3125, %v3124
    %v3141 = vpack.c.bf16 %v3127, %v3126
    %v3142 = vpack.c.bf16 %v3129, %v3128
    %v3143 = vpack.c.bf16 %v3131, %v3130
    %3144 = vmatpush.bf16.xpose.msra.mxu0 0
    %3145 = vmatpush.bf16.xpose.msra.mxu0 0
    %3146 = vmatpush.bf16.xpose.msra.mxu0 0
    %3147 = vmatpush.bf16.xpose.msra.mxu0 0
    %3148 = vmatpush.bf16.xpose.msra.mxu0 %v3143
    %3149 = vmatpush.bf16.xpose.msra.mxu0 %v3142
    %3150 = vmatpush.bf16.xpose.msra.mxu0 %v3141
    %3151 = vmatpush.bf16.xpose.msra.mxu0 %v3140
    %3152 = vmatmul.bf16.gmra.mxu0 %v3140
    %v3153 = vpop.f32.mrf.mxu0
    %v3154 = vadd.f32 0.0, %v3153
    %v3155 = vpop.f32.mrf.mxu0
    %v3156 = vadd.f32 0.0, %v3155
    %3157 = vmatmul.bf16.gmra.mxu0 %v3141
    %v3158 = vpop.f32.mrf.mxu0
    %v3159 = vadd.f32 0.0, %v3158
    %v3160 = vpop.f32.mrf.mxu0
    %v3161 = vadd.f32 0.0, %v3160
    %3162 = vmatmul.bf16.gmra.mxu0 %v3142
    %v3163 = vpop.f32.mrf.mxu0
    %v3164 = vadd.f32 0.0, %v3163
    %v3165 = vpop.f32.mrf.mxu0
    %v3166 = vadd.f32 0.0, %v3165
    %3167 = vmatmul.bf16.gmra.mxu0 %v3143
    %v3168 = vpop.f32.mrf.mxu0
    %v3169 = vadd.f32 0.0, %v3168
    %v3170 = vpop.f32.mrf.mxu0
    %v3171 = vadd.f32 0.0, %v3170
    %3172 = vdwg.mxu0
    %v3173 = vlaneseq
    %v3174 = vshrl.u32 %v3173, 7
    %v3175 = vadd.s32 %v3174, 8
    %v3176 = vadd.s32 %v3174, 16
    %v3177 = vadd.s32 %v3174, 24
    %v3178 = vlaneseq
    %v3179 = vand.u32 %v3178, 127
    %vm3180 = vcmp.eq.s32.totalorder %v3174, %v3179
    %vm3181 = vcmp.eq.s32.totalorder %v3175, %v3179
    %vm3182 = vcmp.eq.s32.totalorder %v3176, %v3179
    %vm3183 = vcmp.eq.s32.totalorder %v3177, %v3179
    %v3184 = vsel %vm3180, 0.0, %v3154
    %v3185 = vsel %vm3181, 0.0, %v3156
    %v3186 = vsel %vm3182, 0.0, %v3159
    %v3187 = vsel %vm3183, 0.0, %v3161
    %3192 = vrot.lane.b32.xlu0 %v3164, 96
    %v3193 = vpop.permute.xlu0 %3192
    %3194 = vrot.lane.b32.xlu0 %v3166, 96
    %v3195 = vpop.permute.xlu0 %3194
    %3196 = vrot.lane.b32.xlu0 %v3169, 96
    %v3197 = vpop.permute.xlu0 %3196
    %3198 = vrot.lane.b32.xlu0 %v3171, 96
    %v3199 = vpop.permute.xlu0 %3198
    %v3204 = vsel %vm3180, 0.0, %v3193
    %v3205 = vsel %vm3181, 0.0, %v3195
    %v3206 = vsel %vm3182, 0.0, %v3197
    %v3207 = vsel %vm3183, 0.0, %v3199
    %3212 = vrot.lane.b32.xlu0 %v3154, 96
    %v3213 = vpop.permute.xlu0 %3212
    %3214 = vrot.lane.b32.xlu0 %v3156, 96
    %v3215 = vpop.permute.xlu0 %3214
    %3216 = vrot.lane.b32.xlu0 %v3159, 96
    %v3217 = vpop.permute.xlu0 %3216
    %3218 = vrot.lane.b32.xlu0 %v3161, 96
    %v3219 = vpop.permute.xlu0 %3218
    %3228 = vrot.lane.b32.xlu0 %v3184, 32
    %v3229 = vpop.permute.xlu0 %3228
    %3230 = vrot.lane.b32.xlu0 %v3185, 32
    %v3231 = vpop.permute.xlu0 %3230
    %3232 = vrot.lane.b32.xlu0 %v3186, 32
    %v3233 = vpop.permute.xlu0 %3232
    %3234 = vrot.lane.b32.xlu0 %v3187, 32
    %v3235 = vpop.permute.xlu0 %3234
    %3244 = vrot.lane.b32.xlu0 %v3204, 64
    %v3245 = vpop.permute.xlu0 %3244
    %3246 = vrot.lane.b32.xlu0 %v3205, 64
    %v3247 = vpop.permute.xlu0 %3246
    %3248 = vrot.lane.b32.xlu0 %v3206, 64
    %v3249 = vpop.permute.xlu0 %3248
    %3250 = vrot.lane.b32.xlu0 %v3207, 64
    %v3251 = vpop.permute.xlu0 %3250
    %vm3256 = vcmask 261120
    %v3257 = vsel %vm3256, %v3213, %v3229
    %v3258 = vsel %vm3256, %v3215, %v3231
    %v3259 = vsel %vm3256, %v3217, %v3233
    %v3260 = vsel %vm3256, %v3219, %v3235
    %vm3261 = vcmask 523264
    %v3262 = vsel %vm3261, %v3257, %v3245
    %v3263 = vsel %vm3261, %v3258, %v3247
    %v3264 = vsel %vm3261, %v3259, %v3249
    %v3265 = vsel %vm3261, %v3260, %v3251
    %vm3266 = vcmask 785408
    %v3267 = vsel %vm3266, %v3262, %v3193
    %v3268 = vsel %vm3266, %v3263, %v3195
    %v3269 = vsel %vm3266, %v3264, %v3197
    %v3270 = vsel %vm3266, %v3265, %v3199
    %v3271 = vmul.f32 %v3267, 20.0
    %v3272 = vmul.f32 %v3268, 20.0
    %v3273 = vmul.f32 %v3269, 20.0
    %v3274 = vmul.f32 %v3270, 20.0
    %3275 = vst [vmem:[#allocation7] sm:$0xff] %v3271
    %3276 = vst [vmem:[#allocation7 + $0x8] sm:$0xff] %v3272
    %3277 = vst [vmem:[#allocation7 + $0x10] sm:$0xff] %v3273
    %3278 = vst [vmem:[#allocation7 + $0x18] sm:$0xff] %v3274
    %3279 = vmax.xlane.f32.xlu0 %v3271
    %v3280 = vpop.xlane.xlu0 %3279
    %3281 = vmax.xlane.f32.xlu0 %v3272
    %v3282 = vpop.xlane.xlu0 %3281
    %3283 = vmax.xlane.f32.xlu0 %v3273
    %v3284 = vpop.xlane.xlu0 %3283
    %3285 = vmax.xlane.f32.xlu0 %v3274
    %v3286 = vpop.xlane.xlu0 %3285
    %v3287 = vsub.f32 %v3271, %v3280
    %v3288 = vsub.f32 %v3272, %v3282
    %v3289 = vsub.f32 %v3273, %v3284
    %v3290 = vsub.f32 %v3274, %v3286
    %v3291 = vmul.f32 %v3287, 1.442695
    %v3292 = vpow.pop %v3291
    %v3293 = vmul.f32 %v3288, 1.442695
    %v3294 = vpow.pop %v3293
    %v3295 = vmul.f32 %v3289, 1.442695
    %v3296 = vpow.pop %v3295
    %v3297 = vmul.f32 %v3290, 1.442695
    %v3298 = vpow.pop %v3297
    %3299 = vadd.xlane.f32.xlu0 %v3292
    %v3300 = vpop.xlane.xlu0 %3299
    %3301 = vadd.xlane.f32.xlu0 %v3294
    %v3302 = vpop.xlane.xlu0 %3301
    %3303 = vadd.xlane.f32.xlu0 %v3296
    %v3304 = vpop.xlane.xlu0 %3303
    %3305 = vadd.xlane.f32.xlu0 %v3298
    %v3306 = vpop.xlane.xlu0 %3305
    %v3307 = vlog2.pop %v3300
    %v3308 = vmul.f32 %v3307, 0.6931472
    %v3309 = vlog2.pop %v3302
    %v3310 = vmul.f32 %v3309, 0.6931472
    %v3311 = vlog2.pop %v3304
    %v3312 = vmul.f32 %v3311, 0.6931472
    %v3313 = vlog2.pop %v3306
    %v3314 = vmul.f32 %v3313, 0.6931472
    %v3315 = vadd.f32 %v3280, %v3308
    %v3316 = vadd.f32 %v3282, %v3310
    %v3317 = vadd.f32 %v3284, %v3312
    %v3318 = vadd.f32 %v3286, %v3314
    %v3319 = vsel %vm3180, %v3213, 0.0
    %v3320 = vsel %vm3181, %v3215, 0.0
    %v3321 = vsel %vm3182, %v3217, 0.0
    %v3322 = vsel %vm3183, %v3219, 0.0
    %v3323 = vsel %vm3256, %v3319, 0.0
    %3324 = vadd.xlane.f32.xlu0 %v3323
    %v3325 = vpop.xlane.xlu0 %3324
    %v3326 = vsel %vm3256, %v3320, 0.0
    %3327 = vadd.xlane.f32.xlu0 %v3326
    %v3328 = vpop.xlane.xlu0 %3327
    %v3329 = vsel %vm3256, %v3321, 0.0
    %3330 = vadd.xlane.f32.xlu0 %v3329
    %v3331 = vpop.xlane.xlu0 %3330
    %v3332 = vsel %vm3256, %v3322, 0.0
    %3333 = vadd.xlane.f32.xlu0 %v3332
    %v3334 = vpop.xlane.xlu0 %3333
    %v3335 = vmul.f32 %v3325, 20.0
    %v3336 = vmul.f32 %v3328, 20.0
    %v3337 = vmul.f32 %v3331, 20.0
    %v3338 = vmul.f32 %v3334, 20.0
    %v3339 = vsub.f32 %v3315, %v3335
    %v3340 = vsub.f32 %v3316, %v3336
    %v3341 = vsub.f32 %v3317, %v3337
    %v3342 = vsub.f32 %v3318, %v3338
    %vm3343 = vcmask 7168
    %v3344 = vsel %vm3343, %v3339, 0.0
    %v3345 = vsel %vm3343, %v3340, 0.0
    %v3346 = vadd.f32 %v3344, %v3345
    %v3347 = vsel %vm3343, %v3341, 0.0
    %v3348 = vadd.f32 %v3346, %v3347
    %v3349 = vsel %vm3343, %v3342, 0.0
    %v3350 = vadd.f32 %v3348, %v3349
    %3351 = vadd.xlane.f32.xlu0 %v3350
    %v3352 = vpop.xlane.xlu0 %3351
    %v3353 = vrot.slane %v3352, 4
    %v3354 = vadd.f32 %v3352, %v3353
    %v3355 = vrot.slane %v3354, 2
    %v3356 = vadd.f32 %v3354, %v3355
    %v3357 = vrot.slane %v3356, 1
    %v3358 = vadd.f32 %v3356, %v3357
    %s3359 = vtos %v3358
    %v3360 = vstv %s3359
    %v3361 = vmul.f32 %v3360, 0.03125
    %vm3362 = vcmask 0
    %3363 = vst.msk [vmem:[#allocation8] sm:$0x1] %vm3362, %v3361
    // Predicated region
    $region34: #{tpu_custom_call.1} parent=1 // pred_check
      _
    $region35: #{tpu_custom_call.1} parent=1 // pred_check_branch
      %3365 = sbr.rel (0) target = $region37
    $region36: #{tpu_custom_call.1} parent=1 // pred_region
      %3367 = vsyncadd [#allocation4], 0
      %s3368 = sshll.u32 [#allocation7], 4
      %s3369 = int_to_ptr.vmem [resolvable:$true] %s3368
      %s3370 = sshll.u32 %s6, 4
      %s3371 = int_to_ptr.hbm [resolvable:$true] %s3370
      %3376 = dma.vmem_to_hbm [thread:$0]  %s3369, 512, %s3371, [#allocation4], 128, 128, 8
    $region37: #{tpu_custom_call.1} parent=1 // pred_fallthru
      _
    // Predicated region
    $region38: #{tpu_custom_call.1} parent=1 // pred_check
      _
    $region39: #{tpu_custom_call.1} parent=1 // pred_check_branch
      %3378 = sbr.rel (0) target = $region41
    $region40: #{tpu_custom_call.1} parent=1 // pred_region
      %3380 = vsyncadd [#allocation9], 0
      %s3382 = sshll.u32 [#allocation8], 4
      %s3383 = int_to_ptr.vmem [resolvable:$true] %s3382
      %s3384 = sshll.u32 %s7, 4
      %s3385 = int_to_ptr.hbm [resolvable:$true] %s3384
      %3387 = dma.vmem_to_hbm [thread:$0]  %s3383, 16, %s3385, [#allocation9]
    $region41: #{tpu_custom_call.1} parent=1 // pred_fallthru
      _
    // Predicated region
    $region42: #{tpu_custom_call.1} parent=1 // pred_check
      _
    $region43: #{tpu_custom_call.1} parent=1 // pred_check_branch
      %3389 = sbr.rel (0) target = $region45
    $region44: #{tpu_custom_call.1} parent=1 // pred_region
      %3391 = vsyncadd [#allocation9], 0
      %s3392 = sshll.u32 [#allocation10], 4
      %s3393 = int_to_ptr.vmem [resolvable:$true] %s3392
      %s3394 = sshll.u32 %s8, 4
      %s3395 = int_to_ptr.hbm [resolvable:$true] %s3394
      %3400 = dma.vmem_to_hbm [thread:$0]  %s3393, 512, %s3395, [#allocation9], 128, 128, 8
    $region45: #{tpu_custom_call.1} parent=1 // pred_fallthru
      _
    // Predicated region
    $region46: #{tpu_custom_call.1} parent=1 // pred_check
      _
    $region47: #{tpu_custom_call.1} parent=1 // pred_check_branch
      %3402 = sbr.rel (0) target = $region49
    $region48: #{tpu_custom_call.1} parent=1 // pred_region
      %3404 = vsyncadd [#allocation12], 0
      %s3405 = sshll.u32 [#allocation11], 4
      %s3406 = int_to_ptr.vmem [resolvable:$true] %s3405
      %s3407 = sshll.u32 %s9, 4
      %s3408 = int_to_ptr.hbm [resolvable:$true] %s3407
      %3413 = dma.vmem_to_hbm [thread:$0]  %s3406, 512, %s3408, [#allocation12], 128, 128, 8
    $region49: #{tpu_custom_call.1} parent=1 // pred_fallthru
      _
    // Predicated region
    $region50: #{tpu_custom_call.1} parent=1 // pred_check
      _
    $region51: #{tpu_custom_call.1} parent=1 // pred_check_branch
      %3415 = sbr.rel (0) target = $region53
    $region52: #{tpu_custom_call.1} parent=1 // pred_region
      %3417 = dma.done [#allocation4], 512
    $region53: #{tpu_custom_call.1} parent=1 // pred_fallthru
      _
    // Predicated region
    $region54: #{tpu_custom_call.1} parent=1 // pred_check
      _
    $region55: #{tpu_custom_call.1} parent=1 // pred_check_branch
      %3419 = sbr.rel (0) target = $region57
    $region56: #{tpu_custom_call.1} parent=1 // pred_region
      %3421 = dma.done [#allocation9], 16
    $region57: #{tpu_custom_call.1} parent=1 // pred_fallthru
      _
    // Predicated region
    $region58: #{tpu_custom_call.1} parent=1 // pred_check
      _
    $region59: #{tpu_custom_call.1} parent=1 // pred_check_branch
      %3423 = sbr.rel (0) target = $region61
    $region60: #{tpu_custom_call.1} parent=1 // pred_region
      %3425 = dma.done [#allocation9], 512
    $region61: #{tpu_custom_call.1} parent=1 // pred_fallthru
      _
    // Predicated region
    $region62: #{tpu_custom_call.1} parent=1 // pred_check
      _
    $region63: #{tpu_custom_call.1} parent=1 // pred_check_branch
      %3427 = sbr.rel (0) target = $region65
    $region64: #{tpu_custom_call.1} parent=1 // pred_region
      %3429 = dma.done [#allocation12], 512
    $region65: #{tpu_custom_call.1} parent=1 // pred_fallthru
      _
    %3430 = vsyncpa [#allocation3], 1
    %3431 = vsyncpa [#allocation6], 1
    %3432 = vsyncpa [#allocation4], 1
    %3433 = vsyncpa [#allocation9], 1
    %3434 = vsyncpa [#allocation12], 1

</llo_original>
